<compile_context>
chip_gen: v7x
topology: tpu7x:2x2x1
jax: 0.10.0
libtpu: 0.0.40
codegen_flags: <defaults>
</compile_context>

<pallas_src>
import functools
import math

import jax
import jax.numpy as jnp
from jax.experimental import pallas as pl
from jax.experimental.pallas import tpu as pltpu

LANE = 128  # pad head outputs to a full lane width for unmasked stores


# ----------------------------------------------------------------------------
# Fused whole-model Pallas kernel
# ----------------------------------------------------------------------------
def _bert_fused_kernel(
    emb_ref, mask_ref,
    emb_g_ref, emb_b_ref,
    qkv_w_ref, qkv_b_ref,
    o_w_ref, o_b_ref,
    ln1_g_ref, ln1_b_ref,
    i_w_ref, i_b_ref,
    d_w_ref, d_b_ref,
    ln2_g_ref, ln2_b_ref,
    pool_w_ref, pool_b_ref,
    seq_w_ref, seq_b_ref,
    tok_w_ref, tok_b_ref,
    seq_out_ref, tok_out_ref,
    *, num_layers, num_heads, batch, seq_len, head_dim, eps):
  hidden = num_heads * head_dim

  def layernorm(x, g, b):
    # E[x^2] - E[x]^2 form: the two cross-lane reductions are independent
    # (dual-issue on the XLU) instead of the serial mean->(x-mean)^2->mean
    # chain. Clamp at 0 to guard against cancellation producing a tiny
    # negative variance.
    mean = jnp.mean(x, axis=-1, keepdims=True)
    mean_sq = jnp.mean(x * x, axis=-1, keepdims=True)
    var = jnp.maximum(mean_sq - mean * mean, 0.0)
    return (x - mean) * jax.lax.rsqrt(var + eps) * g + b

  def matmul(x, w, b):
    return jnp.dot(x, w, preferred_element_type=jnp.float32) + b

  # Embedding LayerNorm (no residual input).
  x = layernorm(emb_ref[...], emb_g_ref[...], emb_b_ref[...])     # [B*S, H]

  # Additive attention-mask bias, broadcast ONCE (hoisted out of the
  # layer/head loops; JAX does not CSE broadcast_in_dim).
  mask_b = jnp.broadcast_to(mask_ref[...][:, None, :],
                            (batch, seq_len, seq_len))             # [B, S, S]

  # NOTE: layers are serially dependent; Python unroll is fine for L=2.
  # TODO(synk): switch to lax.fori_loop with dynamic ref[layer] indexing for
  # deep (12+) layer configs to bound instruction memory / compile time.
  for layer in range(num_layers):
    # Fused (pre-scaled-Q)|K|V projection: one MXU pass with N = 3H.
    qkv = matmul(x, qkv_w_ref[layer], qkv_b_ref[layer])            # [B*S, 3H]
    qkv3 = qkv.reshape(batch, seq_len, 3 * hidden)                 # [B, S, 3H]

    ctx_heads = []
    for h in range(num_heads):
      q_h = qkv3[:, :, h * head_dim:(h + 1) * head_dim]
      k_h = qkv3[:, :, hidden + h * head_dim:
                 hidden + (h + 1) * head_dim]
      v_h = qkv3[:, :, 2 * hidden + h * head_dim:
                 2 * hidden + (h + 1) * head_dim]
      # Batched over B; contraction over head_dim (no k.T materialization).
      # Q was pre-scaled by 1/sqrt(head_dim) at pack time -> no score scaling.
      s = jnp.einsum("bqd,bkd->bqk", q_h, k_h,
                     preferred_element_type=jnp.float32)
      s = s + mask_b
      s = s - jnp.max(s, axis=-1, keepdims=True)
      p = jnp.exp(s)
      p = p * pl.reciprocal(jnp.sum(p, axis=-1, keepdims=True), approx=True)
      c_h = jnp.einsum("bqk,bkd->bqd", p, v_h,
                       preferred_element_type=jnp.float32)
      ctx_heads.append(c_h)
    # Heads are contiguous on the lane axis -> reshape to [B*S, H] is free.
    ctx = jnp.concatenate(ctx_heads, axis=-1).reshape(batch * seq_len, hidden)

    attn_out = matmul(ctx, o_w_ref[layer], o_b_ref[layer])
    x = layernorm(attn_out + x, ln1_g_ref[layer], ln1_b_ref[layer])

    ff = matmul(x, i_w_ref[layer], i_b_ref[layer])
    # TODO(synk): HF BERT uses exact erf-gelu; tanh approximation keeps the
    # guaranteed Mosaic EUP lowering path (small systematic numerical delta).
    ff = jax.nn.gelu(ff, approximate=True)
    ff = matmul(ff, d_w_ref[layer], d_b_ref[layer])
    x = layernorm(ff + x, ln2_g_ref[layer], ln2_b_ref[layer])

  # Pooler on the [CLS] rows: one reshape + static slice (no per-batch
  # dynamic-slice + concat).
  cls = x.reshape(batch, seq_len, hidden)[:, 0:1, :].reshape(batch, hidden)
  pooled = jnp.tanh(matmul(cls, pool_w_ref[...], pool_b_ref[...]))

  # Heads: weights are padded to 128 output lanes -> lane-dense stores.
  seq_out_ref[...] = matmul(pooled, seq_w_ref[...],
                            seq_b_ref[...]).astype(seq_out_ref.dtype)
  tok_out_ref[...] = matmul(x, tok_w_ref[...],
                            tok_b_ref[...]).astype(tok_out_ref.dtype)


def bert_fused_call(packed, emb, mask_bias, cfg):
  """emb: [B*S, H], mask_bias: [B, S] -> (seq_logits [B,128], tok_logits [B*S,128])."""
  B, S = mask_bias.shape
  kernel = functools.partial(
      _bert_fused_kernel,
      num_layers=cfg.num_hidden_layers,
      num_heads=cfg.num_attention_heads,
      batch=B,
      seq_len=S,
      head_dim=cfg.hidden_size // cfg.num_attention_heads,
      eps=cfg.layer_norm_eps)

  num_inputs = 22
  vmem_spec = lambda: pl.BlockSpec(memory_space=pltpu.MemorySpace.VMEM)
  return pl.pallas_call(
      kernel,
      out_shape=(jax.ShapeDtypeStruct((B, LANE), jnp.float32),
                 jax.ShapeDtypeStruct((B * S, LANE), jnp.float32)),
      in_specs=[vmem_spec() for _ in range(num_inputs)],
      out_specs=(vmem_spec(), vmem_spec()),
      compiler_params=pltpu.CompilerParams(
          vmem_limit_bytes=32 * 1024 * 1024),
  )(
      emb, mask_bias,
      packed["emb_ln_g"], packed["emb_ln_b"],
      packed["qkv_w"], packed["qkv_b"],
      packed["o_w"], packed["o_b"],
      packed["ln1_g"], packed["ln1_b"],
      packed["i_w"], packed["i_b"],
      packed["d_w"], packed["d_b"],
      packed["ln2_g"], packed["ln2_b"],
      packed["pool_w"], packed["pool_b"],
      packed["seq_w"], packed["seq_b"],
      packed["tok_w"], packed["tok_b"],
  )


# ----------------------------------------------------------------------------
# Model config / parameters / packing
# ----------------------------------------------------------------------------
class Config:
  vocab_size = 100
  hidden_size = 32
  num_hidden_layers = 2
  num_attention_heads = 2
  intermediate_size = 64
  max_position_embeddings = 32
  type_vocab_size = 2
  seq_num_labels = 5
  token_num_labels = 7
  hidden_dropout_prob = 0.1  # identity in eval mode
  layer_norm_eps = 1e-12


def _init_linear(key, din, dout):
  w = jax.random.normal(key, (din, dout), jnp.float32) * 0.02
  b = jnp.zeros((dout,), jnp.float32)
  return w, b


def init_params(cfg, key):
  keys = iter(jax.random.split(key, 64))
  p = {}
  p["word_emb"] = jax.random.normal(next(keys), (cfg.vocab_size, cfg.hidden_size)) * 0.02
  p["pos_emb"] = jax.random.normal(next(keys), (cfg.max_position_embeddings, cfg.hidden_size)) * 0.02
  p["type_emb"] = jax.random.normal(next(keys), (cfg.type_vocab_size, cfg.hidden_size)) * 0.02
  p["emb_ln_g"] = jnp.ones((cfg.hidden_size,), jnp.float32)
  p["emb_ln_b"] = jnp.zeros((cfg.hidden_size,), jnp.float32)
  layers = []
  for _ in range(cfg.num_hidden_layers):
    lp = {}
    lp["q_w"], lp["q_b"] = _init_linear(next(keys), cfg.hidden_size, cfg.hidden_size)
    lp["k_w"], lp["k_b"] = _init_linear(next(keys), cfg.hidden_size, cfg.hidden_size)
    lp["v_w"], lp["v_b"] = _init_linear(next(keys), cfg.hidden_size, cfg.hidden_size)
    lp["o_w"], lp["o_b"] = _init_linear(next(keys), cfg.hidden_size, cfg.hidden_size)
    lp["ln1_g"] = jnp.ones((cfg.hidden_size,), jnp.float32)
    lp["ln1_b"] = jnp.zeros((cfg.hidden_size,), jnp.float32)
    lp["i_w"], lp["i_b"] = _init_linear(next(keys), cfg.hidden_size, cfg.intermediate_size)
    lp["d_w"], lp["d_b"] = _init_linear(next(keys), cfg.intermediate_size, cfg.hidden_size)
    lp["ln2_g"] = jnp.ones((cfg.hidden_size,), jnp.float32)
    lp["ln2_b"] = jnp.zeros((cfg.hidden_size,), jnp.float32)
    layers.append(lp)
  p["layers"] = layers
  p["pool_w"], p["pool_b"] = _init_linear(next(keys), cfg.hidden_size, cfg.hidden_size)
  p["seq_w"], p["seq_b"] = _init_linear(next(keys), cfg.hidden_size, cfg.seq_num_labels)
  p["tok_w"], p["tok_b"] = _init_linear(next(keys), cfg.hidden_size, cfg.token_num_labels)
  return p


def pack_params(p, cfg):
  """Stack per-layer weights along a leading layer axis, fuse Q|K|V (with the
  Q columns pre-scaled by 1/sqrt(head_dim)), and pad the classification heads
  to 128 lane-dense output columns."""
  H = cfg.hidden_size
  scale = 1.0 / math.sqrt(cfg.hidden_size // cfg.num_attention_heads)

  def stack(fn):
    return jnp.stack([fn(lp) for lp in p["layers"]], axis=0)

  packed = {
      "word_emb": p["word_emb"],
      "pos_emb": p["pos_emb"],
      "type_emb": p["type_emb"],
      "emb_ln_g": p["emb_ln_g"].reshape(1, H),
      "emb_ln_b": p["emb_ln_b"].reshape(1, H),
      # fused (scaled-Q)|K|V:  [L, H, 3H] and [L, 1, 3H]
      "qkv_w": stack(lambda lp: jnp.concatenate(
          [lp["q_w"] * scale, lp["k_w"], lp["v_w"]], axis=1)),
      "qkv_b": stack(lambda lp: jnp.concatenate(
          [lp["q_b"] * scale, lp["k_b"], lp["v_b"]], axis=0).reshape(1, 3 * H)),
      "o_w": stack(lambda lp: lp["o_w"]),
      "o_b": stack(lambda lp: lp["o_b"].reshape(1, H)),
      "ln1_g": stack(lambda lp: lp["ln1_g"].reshape(1, H)),
      "ln1_b": stack(lambda lp: lp["ln1_b"].reshape(1, H)),
      "i_w": stack(lambda lp: lp["i_w"]),
      "i_b": stack(lambda lp: lp["i_b"].reshape(1, -1)),
      "d_w": stack(lambda lp: lp["d_w"]),
      "d_b": stack(lambda lp: lp["d_b"].reshape(1, H)),
      "ln2_g": stack(lambda lp: lp["ln2_g"].reshape(1, H)),
      "ln2_b": stack(lambda lp: lp["ln2_b"].reshape(1, H)),
      "pool_w": p["pool_w"],
      "pool_b": p["pool_b"].reshape(1, H),
  }

  def pad_head(w, b):
    n = w.shape[1]
    w_p = jnp.zeros((w.shape[0], LANE), w.dtype).at[:, :n].set(w)
    b_p = jnp.zeros((1, LANE), b.dtype).at[0, :n].set(b)
    return w_p, b_p

  packed["seq_w"], packed["seq_b"] = pad_head(p["seq_w"], p["seq_b"])
  packed["tok_w"], packed["tok_b"] = pad_head(p["tok_w"], p["tok_b"])
  return packed


# ----------------------------------------------------------------------------
# Forward pass (embedding gathers in JAX, everything else in the fused kernel)
# ----------------------------------------------------------------------------
def bert_forward(packed, input_ids, attention_mask, token_type_ids, cfg):
  B, S = input_ids.shape
  H = cfg.hidden_size

  # Embedding lookups stay in plain JAX (table gathers).
  positions = jnp.arange(S, dtype=jnp.int32)
  emb = (jnp.take(packed["word_emb"], input_ids, axis=0)
         + jnp.take(packed["pos_emb"], positions, axis=0)[None, :, :]
         + jnp.take(packed["type_emb"], token_type_ids, axis=0))
  emb = emb.reshape(B * S, H).astype(jnp.float32)

  # Additive attention-mask bias, [B, S] (broadcast over query rows in-kernel).
  mask_bias = (1.0 - attention_mask.astype(jnp.float32)) * -10000.0

  seq_logits, tok_logits = bert_fused_call(packed, emb, mask_bias, cfg)

  seq_output = seq_logits[:, :cfg.seq_num_labels]                       # [B, n_seq]
  token_output = tok_logits[:, :cfg.token_num_labels].reshape(
      B, S, cfg.token_num_labels)                                        # [B, S, n_tok]
  return seq_output, token_output


if __name__ == "__main__":
  cfg = Config()
  key = jax.random.PRNGKey(0)
  pkey, ikey = jax.random.split(key)

  params = init_params(cfg, pkey)
  packed = pack_params(params, cfg)

  B, S = 2, 8
  input_ids = jax.random.randint(ikey, (B, S), 0, cfg.vocab_size, dtype=jnp.int32)
  attention_mask = jnp.ones((B, S), dtype=jnp.int32)
  token_type_ids = jnp.zeros((B, S), dtype=jnp.int32)

  fwd = jax.jit(functools.partial(bert_forward, cfg=cfg))
  seq_output, token_output = fwd(packed, input_ids, attention_mask, token_type_ids)
  jax.block_until_ready((seq_output, token_output))

  assert seq_output.shape == (B, cfg.seq_num_labels)
  assert token_output.shape == (B, S, cfg.token_num_labels)
  assert bool(jnp.all(jnp.isfinite(seq_output))) and bool(jnp.all(jnp.isfinite(token_output)))
  print("KERNEL_OK")
</pallas_src>

<mosaic_0001>
module attributes {stable_mosaic.version = 11 : i64} {
  func.func @_bert_fused_kernel(%arg0: memref<16x32xf32, #tpu.memory_space<vmem>>, %arg1: memref<2x8xf32, #tpu.memory_space<vmem>>, %arg2: memref<1x32xf32, #tpu.memory_space<vmem>>, %arg3: memref<1x32xf32, #tpu.memory_space<vmem>>, %arg4: memref<2x32x96xf32, #tpu.memory_space<vmem>>, %arg5: memref<2x1x96xf32, #tpu.memory_space<vmem>>, %arg6: memref<2x32x32xf32, #tpu.memory_space<vmem>>, %arg7: memref<2x1x32xf32, #tpu.memory_space<vmem>>, %arg8: memref<2x1x32xf32, #tpu.memory_space<vmem>>, %arg9: memref<2x1x32xf32, #tpu.memory_space<vmem>>, %arg10: memref<2x32x64xf32, #tpu.memory_space<vmem>>, %arg11: memref<2x1x64xf32, #tpu.memory_space<vmem>>, %arg12: memref<2x64x32xf32, #tpu.memory_space<vmem>>, %arg13: memref<2x1x32xf32, #tpu.memory_space<vmem>>, %arg14: memref<2x1x32xf32, #tpu.memory_space<vmem>>, %arg15: memref<2x1x32xf32, #tpu.memory_space<vmem>>, %arg16: memref<32x32xf32, #tpu.memory_space<vmem>>, %arg17: memref<1x32xf32, #tpu.memory_space<vmem>>, %arg18: memref<32x128xf32, #tpu.memory_space<vmem>>, %arg19: memref<1x128xf32, #tpu.memory_space<vmem>>, %arg20: memref<32x128xf32, #tpu.memory_space<vmem>>, %arg21: memref<1x128xf32, #tpu.memory_space<vmem>>, %arg22: memref<2x128xf32, #tpu.memory_space<vmem>>, %arg23: memref<16x128xf32, #tpu.memory_space<vmem>>) attributes {dimension_semantics = [], scalar_prefetch = 0 : i64, scratch_operands = 0 : i64, tpu.core_type = #tpu.core_type<tc>} {
    %c0 = arith.constant 0 : index
    %c0_0 = arith.constant 0 : index
    %0 = vector.load %arg0[%c0, %c0_0] : memref<16x32xf32, #tpu.memory_space<vmem>>, vector<16x32xf32>
    %c0_1 = arith.constant 0 : index
    %c0_2 = arith.constant 0 : index
    %1 = vector.load %arg2[%c0_1, %c0_2] : memref<1x32xf32, #tpu.memory_space<vmem>>, vector<1x32xf32>
    %c0_3 = arith.constant 0 : index
    %c0_4 = arith.constant 0 : index
    %2 = vector.load %arg3[%c0_3, %c0_4] : memref<1x32xf32, #tpu.memory_space<vmem>>, vector<1x32xf32>
    %cst = arith.constant dense<0.000000e+00> : vector<16xf32>
    %3 = vector.multi_reduction <add>, %0, %cst [1] : vector<16x32xf32> to vector<16xf32>
    %4 = vector.shape_cast %3 : vector<16xf32> to vector<16x1xf32>
    %cst_5 = arith.constant 3.200000e+01 : f32
    %5 = vector.broadcast %cst_5 : f32 to vector<16x1xf32>
    %6 = arith.divf %4, %5 : vector<16x1xf32>
    %7 = arith.mulf %0, %0 : vector<16x32xf32>
    %cst_6 = arith.constant dense<0.000000e+00> : vector<16xf32>
    %8 = vector.multi_reduction <add>, %7, %cst_6 [1] : vector<16x32xf32> to vector<16xf32>
    %9 = vector.shape_cast %8 : vector<16xf32> to vector<16x1xf32>
    %cst_7 = arith.constant 3.200000e+01 : f32
    %10 = vector.broadcast %cst_7 : f32 to vector<16x1xf32>
    %11 = arith.divf %9, %10 : vector<16x1xf32>
    %12 = arith.mulf %6, %6 : vector<16x1xf32>
    %13 = arith.subf %11, %12 : vector<16x1xf32>
    %cst_8 = arith.constant 0.000000e+00 : f32
    %14 = vector.broadcast %cst_8 : f32 to vector<16x1xf32>
    %15 = arith.maximumf %13, %14 : vector<16x1xf32>
    %16 = vector.broadcast %6 : vector<16x1xf32> to vector<16x32xf32>
    %17 = arith.subf %0, %16 : vector<16x32xf32>
    %cst_9 = arith.constant 9.99999996E-13 : f32
    %18 = vector.broadcast %cst_9 : f32 to vector<16x1xf32>
    %19 = arith.addf %15, %18 : vector<16x1xf32>
    %20 = math.rsqrt %19 : vector<16x1xf32>
    %21 = vector.broadcast %20 : vector<16x1xf32> to vector<16x32xf32>
    %22 = arith.mulf %17, %21 : vector<16x32xf32>
    %23 = vector.broadcast %1 : vector<1x32xf32> to vector<16x32xf32>
    %24 = arith.mulf %22, %23 : vector<16x32xf32>
    %25 = vector.broadcast %2 : vector<1x32xf32> to vector<16x32xf32>
    %26 = arith.addf %24, %25 : vector<16x32xf32>
    %c0_10 = arith.constant 0 : index
    %c0_11 = arith.constant 0 : index
    %27 = vector.load %arg1[%c0_10, %c0_11] : memref<2x8xf32, #tpu.memory_space<vmem>>, vector<2x8xf32>
    %28 = vector.shape_cast %27 : vector<2x8xf32> to vector<2x1x8xf32>
    %29 = vector.shape_cast %28 : vector<2x1x8xf32> to vector<2x1x8xf32>
    %30 = vector.broadcast %29 : vector<2x1x8xf32> to vector<2x8x8xf32>
    %c0_12 = arith.constant 0 : index
    %c0_13 = arith.constant 0 : index
    %c0_14 = arith.constant 0 : index
    %31 = vector.load %arg4[%c0_12, %c0_13, %c0_14] : memref<2x32x96xf32, #tpu.memory_space<vmem>>, vector<1x32x96xf32>
    %32 = vector.shape_cast %31 : vector<1x32x96xf32> to vector<32x96xf32>
    %c0_15 = arith.constant 0 : index
    %c0_16 = arith.constant 0 : index
    %c0_17 = arith.constant 0 : index
    %33 = vector.load %arg5[%c0_15, %c0_16, %c0_17] : memref<2x1x96xf32, #tpu.memory_space<vmem>>, vector<1x1x96xf32>
    %34 = vector.shape_cast %33 : vector<1x1x96xf32> to vector<1x96xf32>
    %cst_18 = arith.constant dense<0.000000e+00> : vector<16x96xf32>
    %35 = tpu.matmul %26, %32, %cst_18 {dimension_numbers = #tpu.dot_dimension_numbers<[1], [0], [0], [1], [0, 0, 1, 1], [], []>} : vector<16x32xf32>, vector<32x96xf32>, vector<16x96xf32> -> vector<16x96xf32>
    %36 = vector.broadcast %34 : vector<1x96xf32> to vector<16x96xf32>
    %37 = arith.addf %35, %36 : vector<16x96xf32>
    %38 = vector.shape_cast %37 : vector<16x96xf32> to vector<2x8x96xf32>
    %39 = vector.extract_strided_slice %38 {offsets = [0, 0, 0], sizes = [2, 8, 16], strides = [1, 1, 1]} : vector<2x8x96xf32> to vector<2x8x16xf32>
    %40 = vector.extract_strided_slice %38 {offsets = [0, 0, 32], sizes = [2, 8, 16], strides = [1, 1, 1]} : vector<2x8x96xf32> to vector<2x8x16xf32>
    %41 = vector.extract_strided_slice %38 {offsets = [0, 0, 64], sizes = [2, 8, 16], strides = [1, 1, 1]} : vector<2x8x96xf32> to vector<2x8x16xf32>
    "tpu.trace_start"() <{level = 10 : i32, message = "bqd,bkd->bqk"}> : () -> ()
    %cst_19 = arith.constant dense<0.000000e+00> : vector<2x8x8xf32>
    %42 = tpu.matmul %39, %40, %cst_19 {dimension_numbers = #tpu.dot_dimension_numbers<[2], [2], [1], [1], [0, 0, 0, 1, 1, 1], [0], [0]>} : vector<2x8x16xf32>, vector<2x8x16xf32>, vector<2x8x8xf32> -> vector<2x8x8xf32>
    "tpu.trace_stop"() : () -> ()
    %43 = arith.addf %42, %30 : vector<2x8x8xf32>
    %cst_20 = arith.constant dense<0xFF800000> : vector<2x8xf32>
    %44 = vector.multi_reduction <maximumf>, %43, %cst_20 [2] : vector<2x8x8xf32> to vector<2x8xf32>
    %45 = vector.shape_cast %44 : vector<2x8xf32> to vector<2x8x1xf32>
    %46 = vector.broadcast %45 : vector<2x8x1xf32> to vector<2x8x8xf32>
    %47 = arith.subf %43, %46 : vector<2x8x8xf32>
    %48 = math.exp %47 : vector<2x8x8xf32>
    %cst_21 = arith.constant dense<0.000000e+00> : vector<2x8xf32>
    %49 = vector.multi_reduction <add>, %48, %cst_21 [2] : vector<2x8x8xf32> to vector<2x8xf32>
    %50 = vector.shape_cast %49 : vector<2x8xf32> to vector<2x8x1xf32>
    %51 = tpu.reciprocal %50 {approx = true} : vector<2x8x1xf32> -> vector<2x8x1xf32>
    %52 = vector.broadcast %51 : vector<2x8x1xf32> to vector<2x8x8xf32>
    %53 = arith.mulf %48, %52 : vector<2x8x8xf32>
    "tpu.trace_start"() <{level = 10 : i32, message = "bqk,bkd->bqd"}> : () -> ()
    %cst_22 = arith.constant dense<0.000000e+00> : vector<2x8x16xf32>
    %54 = tpu.matmul %53, %41, %cst_22 {dimension_numbers = #tpu.dot_dimension_numbers<[2], [1], [1], [2], [0, 0, 0, 1, 1, 2], [0], [0]>} : vector<2x8x8xf32>, vector<2x8x16xf32>, vector<2x8x16xf32> -> vector<2x8x16xf32>
    "tpu.trace_stop"() : () -> ()
    %55 = vector.extract_strided_slice %38 {offsets = [0, 0, 16], sizes = [2, 8, 16], strides = [1, 1, 1]} : vector<2x8x96xf32> to vector<2x8x16xf32>
    %56 = vector.extract_strided_slice %38 {offsets = [0, 0, 48], sizes = [2, 8, 16], strides = [1, 1, 1]} : vector<2x8x96xf32> to vector<2x8x16xf32>
    %57 = vector.extract_strided_slice %38 {offsets = [0, 0, 80], sizes = [2, 8, 16], strides = [1, 1, 1]} : vector<2x8x96xf32> to vector<2x8x16xf32>
    "tpu.trace_start"() <{level = 10 : i32, message = "bqd,bkd->bqk"}> : () -> ()
    %cst_23 = arith.constant dense<0.000000e+00> : vector<2x8x8xf32>
    %58 = tpu.matmul %55, %56, %cst_23 {dimension_numbers = #tpu.dot_dimension_numbers<[2], [2], [1], [1], [0, 0, 0, 1, 1, 1], [0], [0]>} : vector<2x8x16xf32>, vector<2x8x16xf32>, vector<2x8x8xf32> -> vector<2x8x8xf32>
    "tpu.trace_stop"() : () -> ()
    %59 = arith.addf %58, %30 : vector<2x8x8xf32>
    %cst_24 = arith.constant dense<0xFF800000> : vector<2x8xf32>
    %60 = vector.multi_reduction <maximumf>, %59, %cst_24 [2] : vector<2x8x8xf32> to vector<2x8xf32>
    %61 = vector.shape_cast %60 : vector<2x8xf32> to vector<2x8x1xf32>
    %62 = vector.broadcast %61 : vector<2x8x1xf32> to vector<2x8x8xf32>
    %63 = arith.subf %59, %62 : vector<2x8x8xf32>
    %64 = math.exp %63 : vector<2x8x8xf32>
    %cst_25 = arith.constant dense<0.000000e+00> : vector<2x8xf32>
    %65 = vector.multi_reduction <add>, %64, %cst_25 [2] : vector<2x8x8xf32> to vector<2x8xf32>
    %66 = vector.shape_cast %65 : vector<2x8xf32> to vector<2x8x1xf32>
    %67 = tpu.reciprocal %66 {approx = true} : vector<2x8x1xf32> -> vector<2x8x1xf32>
    %68 = vector.broadcast %67 : vector<2x8x1xf32> to vector<2x8x8xf32>
    %69 = arith.mulf %64, %68 : vector<2x8x8xf32>
    "tpu.trace_start"() <{level = 10 : i32, message = "bqk,bkd->bqd"}> : () -> ()
    %cst_26 = arith.constant dense<0.000000e+00> : vector<2x8x16xf32>
    %70 = tpu.matmul %69, %57, %cst_26 {dimension_numbers = #tpu.dot_dimension_numbers<[2], [1], [1], [2], [0, 0, 0, 1, 1, 2], [0], [0]>} : vector<2x8x8xf32>, vector<2x8x16xf32>, vector<2x8x16xf32> -> vector<2x8x16xf32>
    "tpu.trace_stop"() : () -> ()
    %71 = tpu.concatenate %54, %70 in 2 : vector<2x8x16xf32>, vector<2x8x16xf32> -> vector<2x8x32xf32>
    %72 = vector.shape_cast %71 : vector<2x8x32xf32> to vector<16x32xf32>
    %c0_27 = arith.constant 0 : index
    %c0_28 = arith.constant 0 : index
    %c0_29 = arith.constant 0 : index
    %73 = vector.load %arg6[%c0_27, %c0_28, %c0_29] : memref<2x32x32xf32, #tpu.memory_space<vmem>>, vector<1x32x32xf32>
    %74 = vector.shape_cast %73 : vector<1x32x32xf32> to vector<32x32xf32>
    %c0_30 = arith.constant 0 : index
    %c0_31 = arith.constant 0 : index
    %c0_32 = arith.constant 0 : index
    %75 = vector.load %arg7[%c0_30, %c0_31, %c0_32] : memref<2x1x32xf32, #tpu.memory_space<vmem>>, vector<1x1x32xf32>
    %76 = vector.shape_cast %75 : vector<1x1x32xf32> to vector<1x32xf32>
    %cst_33 = arith.constant dense<0.000000e+00> : vector<16x32xf32>
    %77 = tpu.matmul %72, %74, %cst_33 {dimension_numbers = #tpu.dot_dimension_numbers<[1], [0], [0], [1], [0, 0, 1, 1], [], []>} : vector<16x32xf32>, vector<32x32xf32>, vector<16x32xf32> -> vector<16x32xf32>
    %78 = vector.broadcast %76 : vector<1x32xf32> to vector<16x32xf32>
    %79 = arith.addf %77, %78 : vector<16x32xf32>
    %80 = arith.addf %79, %26 : vector<16x32xf32>
    %c0_34 = arith.constant 0 : index
    %c0_35 = arith.constant 0 : index
    %c0_36 = arith.constant 0 : index
    %81 = vector.load %arg8[%c0_34, %c0_35, %c0_36] : memref<2x1x32xf32, #tpu.memory_space<vmem>>, vector<1x1x32xf32>
    %82 = vector.shape_cast %81 : vector<1x1x32xf32> to vector<1x32xf32>
    %c0_37 = arith.constant 0 : index
    %c0_38 = arith.constant 0 : index
    %c0_39 = arith.constant 0 : index
    %83 = vector.load %arg9[%c0_37, %c0_38, %c0_39] : memref<2x1x32xf32, #tpu.memory_space<vmem>>, vector<1x1x32xf32>
    %84 = vector.shape_cast %83 : vector<1x1x32xf32> to vector<1x32xf32>
    %cst_40 = arith.constant dense<0.000000e+00> : vector<16xf32>
    %85 = vector.multi_reduction <add>, %80, %cst_40 [1] : vector<16x32xf32> to vector<16xf32>
    %86 = vector.shape_cast %85 : vector<16xf32> to vector<16x1xf32>
    %cst_41 = arith.constant 3.200000e+01 : f32
    %87 = vector.broadcast %cst_41 : f32 to vector<16x1xf32>
    %88 = arith.divf %86, %87 : vector<16x1xf32>
    %89 = arith.mulf %80, %80 : vector<16x32xf32>
    %cst_42 = arith.constant dense<0.000000e+00> : vector<16xf32>
    %90 = vector.multi_reduction <add>, %89, %cst_42 [1] : vector<16x32xf32> to vector<16xf32>
    %91 = vector.shape_cast %90 : vector<16xf32> to vector<16x1xf32>
    %cst_43 = arith.constant 3.200000e+01 : f32
    %92 = vector.broadcast %cst_43 : f32 to vector<16x1xf32>
    %93 = arith.divf %91, %92 : vector<16x1xf32>
    %94 = arith.mulf %88, %88 : vector<16x1xf32>
    %95 = arith.subf %93, %94 : vector<16x1xf32>
    %cst_44 = arith.constant 0.000000e+00 : f32
    %96 = vector.broadcast %cst_44 : f32 to vector<16x1xf32>
    %97 = arith.maximumf %95, %96 : vector<16x1xf32>
    %98 = vector.broadcast %88 : vector<16x1xf32> to vector<16x32xf32>
    %99 = arith.subf %80, %98 : vector<16x32xf32>
    %cst_45 = arith.constant 9.99999996E-13 : f32
    %100 = vector.broadcast %cst_45 : f32 to vector<16x1xf32>
    %101 = arith.addf %97, %100 : vector<16x1xf32>
    %102 = math.rsqrt %101 : vector<16x1xf32>
    %103 = vector.broadcast %102 : vector<16x1xf32> to vector<16x32xf32>
    %104 = arith.mulf %99, %103 : vector<16x32xf32>
    %105 = vector.broadcast %82 : vector<1x32xf32> to vector<16x32xf32>
    %106 = arith.mulf %104, %105 : vector<16x32xf32>
    %107 = vector.broadcast %84 : vector<1x32xf32> to vector<16x32xf32>
    %108 = arith.addf %106, %107 : vector<16x32xf32>
    %c0_46 = arith.constant 0 : index
    %c0_47 = arith.constant 0 : index
    %c0_48 = arith.constant 0 : index
    %109 = vector.load %arg10[%c0_46, %c0_47, %c0_48] : memref<2x32x64xf32, #tpu.memory_space<vmem>>, vector<1x32x64xf32>
    %110 = vector.shape_cast %109 : vector<1x32x64xf32> to vector<32x64xf32>
    %c0_49 = arith.constant 0 : index
    %c0_50 = arith.constant 0 : index
    %c0_51 = arith.constant 0 : index
    %111 = vector.load %arg11[%c0_49, %c0_50, %c0_51] : memref<2x1x64xf32, #tpu.memory_space<vmem>>, vector<1x1x64xf32>
    %112 = vector.shape_cast %111 : vector<1x1x64xf32> to vector<1x64xf32>
    %cst_52 = arith.constant dense<0.000000e+00> : vector<16x64xf32>
    %113 = tpu.matmul %108, %110, %cst_52 {dimension_numbers = #tpu.dot_dimension_numbers<[1], [0], [0], [1], [0, 0, 1, 1], [], []>} : vector<16x32xf32>, vector<32x64xf32>, vector<16x64xf32> -> vector<16x64xf32>
    %114 = vector.broadcast %112 : vector<1x64xf32> to vector<16x64xf32>
    %115 = arith.addf %113, %114 : vector<16x64xf32>
    %116 = arith.mulf %115, %115 : vector<16x64xf32>
    %117 = arith.mulf %115, %116 : vector<16x64xf32>
    %cst_53 = arith.constant 4.471500e-02 : f32
    %118 = vector.broadcast %cst_53 : f32 to vector<16x64xf32>
    %119 = arith.mulf %118, %117 : vector<16x64xf32>
    %120 = arith.addf %115, %119 : vector<16x64xf32>
    %cst_54 = arith.constant 0.797884583 : f32
    %121 = vector.broadcast %cst_54 : f32 to vector<16x64xf32>
    %122 = arith.mulf %121, %120 : vector<16x64xf32>
    %123 = math.tanh %122 : vector<16x64xf32>
    %cst_55 = arith.constant 1.000000e+00 : f32
    %124 = vector.broadcast %cst_55 : f32 to vector<16x64xf32>
    %125 = arith.addf %124, %123 : vector<16x64xf32>
    %cst_56 = arith.constant 5.000000e-01 : f32
    %126 = vector.broadcast %cst_56 : f32 to vector<16x64xf32>
    %127 = arith.mulf %126, %125 : vector<16x64xf32>
    %128 = arith.mulf %115, %127 : vector<16x64xf32>
    %c0_57 = arith.constant 0 : index
    %c0_58 = arith.constant 0 : index
    %c0_59 = arith.constant 0 : index
    %129 = vector.load %arg12[%c0_57, %c0_58, %c0_59] : memref<2x64x32xf32, #tpu.memory_space<vmem>>, vector<1x64x32xf32>
    %130 = vector.shape_cast %129 : vector<1x64x32xf32> to vector<64x32xf32>
    %c0_60 = arith.constant 0 : index
    %c0_61 = arith.constant 0 : index
    %c0_62 = arith.constant 0 : index
    %131 = vector.load %arg13[%c0_60, %c0_61, %c0_62] : memref<2x1x32xf32, #tpu.memory_space<vmem>>, vector<1x1x32xf32>
    %132 = vector.shape_cast %131 : vector<1x1x32xf32> to vector<1x32xf32>
    %cst_63 = arith.constant dense<0.000000e+00> : vector<16x32xf32>
    %133 = tpu.matmul %128, %130, %cst_63 {dimension_numbers = #tpu.dot_dimension_numbers<[1], [0], [0], [1], [0, 0, 1, 1], [], []>} : vector<16x64xf32>, vector<64x32xf32>, vector<16x32xf32> -> vector<16x32xf32>
    %134 = vector.broadcast %132 : vector<1x32xf32> to vector<16x32xf32>
    %135 = arith.addf %133, %134 : vector<16x32xf32>
    %136 = arith.addf %135, %108 : vector<16x32xf32>
    %c0_64 = arith.constant 0 : index
    %c0_65 = arith.constant 0 : index
    %c0_66 = arith.constant 0 : index
    %137 = vector.load %arg14[%c0_64, %c0_65, %c0_66] : memref<2x1x32xf32, #tpu.memory_space<vmem>>, vector<1x1x32xf32>
    %138 = vector.shape_cast %137 : vector<1x1x32xf32> to vector<1x32xf32>
    %c0_67 = arith.constant 0 : index
    %c0_68 = arith.constant 0 : index
    %c0_69 = arith.constant 0 : index
    %139 = vector.load %arg15[%c0_67, %c0_68, %c0_69] : memref<2x1x32xf32, #tpu.memory_space<vmem>>, vector<1x1x32xf32>
    %140 = vector.shape_cast %139 : vector<1x1x32xf32> to vector<1x32xf32>
    %cst_70 = arith.constant dense<0.000000e+00> : vector<16xf32>
    %141 = vector.multi_reduction <add>, %136, %cst_70 [1] : vector<16x32xf32> to vector<16xf32>
    %142 = vector.shape_cast %141 : vector<16xf32> to vector<16x1xf32>
    %cst_71 = arith.constant 3.200000e+01 : f32
    %143 = vector.broadcast %cst_71 : f32 to vector<16x1xf32>
    %144 = arith.divf %142, %143 : vector<16x1xf32>
    %145 = arith.mulf %136, %136 : vector<16x32xf32>
    %cst_72 = arith.constant dense<0.000000e+00> : vector<16xf32>
    %146 = vector.multi_reduction <add>, %145, %cst_72 [1] : vector<16x32xf32> to vector<16xf32>
    %147 = vector.shape_cast %146 : vector<16xf32> to vector<16x1xf32>
    %cst_73 = arith.constant 3.200000e+01 : f32
    %148 = vector.broadcast %cst_73 : f32 to vector<16x1xf32>
    %149 = arith.divf %147, %148 : vector<16x1xf32>
    %150 = arith.mulf %144, %144 : vector<16x1xf32>
    %151 = arith.subf %149, %150 : vector<16x1xf32>
    %cst_74 = arith.constant 0.000000e+00 : f32
    %152 = vector.broadcast %cst_74 : f32 to vector<16x1xf32>
    %153 = arith.maximumf %151, %152 : vector<16x1xf32>
    %154 = vector.broadcast %144 : vector<16x1xf32> to vector<16x32xf32>
    %155 = arith.subf %136, %154 : vector<16x32xf32>
    %cst_75 = arith.constant 9.99999996E-13 : f32
    %156 = vector.broadcast %cst_75 : f32 to vector<16x1xf32>
    %157 = arith.addf %153, %156 : vector<16x1xf32>
    %158 = math.rsqrt %157 : vector<16x1xf32>
    %159 = vector.broadcast %158 : vector<16x1xf32> to vector<16x32xf32>
    %160 = arith.mulf %155, %159 : vector<16x32xf32>
    %161 = vector.broadcast %138 : vector<1x32xf32> to vector<16x32xf32>
    %162 = arith.mulf %160, %161 : vector<16x32xf32>
    %163 = vector.broadcast %140 : vector<1x32xf32> to vector<16x32xf32>
    %164 = arith.addf %162, %163 : vector<16x32xf32>
    %c1 = arith.constant 1 : index
    %c0_76 = arith.constant 0 : index
    %c0_77 = arith.constant 0 : index
    %165 = vector.load %arg4[%c1, %c0_76, %c0_77] : memref<2x32x96xf32, #tpu.memory_space<vmem>>, vector<1x32x96xf32>
    %166 = vector.shape_cast %165 : vector<1x32x96xf32> to vector<32x96xf32>
    %c1_78 = arith.constant 1 : index
    %c0_79 = arith.constant 0 : index
    %c0_80 = arith.constant 0 : index
    %167 = vector.load %arg5[%c1_78, %c0_79, %c0_80] : memref<2x1x96xf32, #tpu.memory_space<vmem>>, vector<1x1x96xf32>
    %168 = vector.shape_cast %167 : vector<1x1x96xf32> to vector<1x96xf32>
    %cst_81 = arith.constant dense<0.000000e+00> : vector<16x96xf32>
    %169 = tpu.matmul %164, %166, %cst_81 {dimension_numbers = #tpu.dot_dimension_numbers<[1], [0], [0], [1], [0, 0, 1, 1], [], []>} : vector<16x32xf32>, vector<32x96xf32>, vector<16x96xf32> -> vector<16x96xf32>
    %170 = vector.broadcast %168 : vector<1x96xf32> to vector<16x96xf32>
    %171 = arith.addf %169, %170 : vector<16x96xf32>
    %172 = vector.shape_cast %171 : vector<16x96xf32> to vector<2x8x96xf32>
    %173 = vector.extract_strided_slice %172 {offsets = [0, 0, 0], sizes = [2, 8, 16], strides = [1, 1, 1]} : vector<2x8x96xf32> to vector<2x8x16xf32>
    %174 = vector.extract_strided_slice %172 {offsets = [0, 0, 32], sizes = [2, 8, 16], strides = [1, 1, 1]} : vector<2x8x96xf32> to vector<2x8x16xf32>
    %175 = vector.extract_strided_slice %172 {offsets = [0, 0, 64], sizes = [2, 8, 16], strides = [1, 1, 1]} : vector<2x8x96xf32> to vector<2x8x16xf32>
    "tpu.trace_start"() <{level = 10 : i32, message = "bqd,bkd->bqk"}> : () -> ()
    %cst_82 = arith.constant dense<0.000000e+00> : vector<2x8x8xf32>
    %176 = tpu.matmul %173, %174, %cst_82 {dimension_numbers = #tpu.dot_dimension_numbers<[2], [2], [1], [1], [0, 0, 0, 1, 1, 1], [0], [0]>} : vector<2x8x16xf32>, vector<2x8x16xf32>, vector<2x8x8xf32> -> vector<2x8x8xf32>
    "tpu.trace_stop"() : () -> ()
    %177 = arith.addf %176, %30 : vector<2x8x8xf32>
    %cst_83 = arith.constant dense<0xFF800000> : vector<2x8xf32>
    %178 = vector.multi_reduction <maximumf>, %177, %cst_83 [2] : vector<2x8x8xf32> to vector<2x8xf32>
    %179 = vector.shape_cast %178 : vector<2x8xf32> to vector<2x8x1xf32>
    %180 = vector.broadcast %179 : vector<2x8x1xf32> to vector<2x8x8xf32>
    %181 = arith.subf %177, %180 : vector<2x8x8xf32>
    %182 = math.exp %181 : vector<2x8x8xf32>
    %cst_84 = arith.constant dense<0.000000e+00> : vector<2x8xf32>
    %183 = vector.multi_reduction <add>, %182, %cst_84 [2] : vector<2x8x8xf32> to vector<2x8xf32>
    %184 = vector.shape_cast %183 : vector<2x8xf32> to vector<2x8x1xf32>
    %185 = tpu.reciprocal %184 {approx = true} : vector<2x8x1xf32> -> vector<2x8x1xf32>
    %186 = vector.broadcast %185 : vector<2x8x1xf32> to vector<2x8x8xf32>
    %187 = arith.mulf %182, %186 : vector<2x8x8xf32>
    "tpu.trace_start"() <{level = 10 : i32, message = "bqk,bkd->bqd"}> : () -> ()
    %cst_85 = arith.constant dense<0.000000e+00> : vector<2x8x16xf32>
    %188 = tpu.matmul %187, %175, %cst_85 {dimension_numbers = #tpu.dot_dimension_numbers<[2], [1], [1], [2], [0, 0, 0, 1, 1, 2], [0], [0]>} : vector<2x8x8xf32>, vector<2x8x16xf32>, vector<2x8x16xf32> -> vector<2x8x16xf32>
    "tpu.trace_stop"() : () -> ()
    %189 = vector.extract_strided_slice %172 {offsets = [0, 0, 16], sizes = [2, 8, 16], strides = [1, 1, 1]} : vector<2x8x96xf32> to vector<2x8x16xf32>
    %190 = vector.extract_strided_slice %172 {offsets = [0, 0, 48], sizes = [2, 8, 16], strides = [1, 1, 1]} : vector<2x8x96xf32> to vector<2x8x16xf32>
    %191 = vector.extract_strided_slice %172 {offsets = [0, 0, 80], sizes = [2, 8, 16], strides = [1, 1, 1]} : vector<2x8x96xf32> to vector<2x8x16xf32>
    "tpu.trace_start"() <{level = 10 : i32, message = "bqd,bkd->bqk"}> : () -> ()
    %cst_86 = arith.constant dense<0.000000e+00> : vector<2x8x8xf32>
    %192 = tpu.matmul %189, %190, %cst_86 {dimension_numbers = #tpu.dot_dimension_numbers<[2], [2], [1], [1], [0, 0, 0, 1, 1, 1], [0], [0]>} : vector<2x8x16xf32>, vector<2x8x16xf32>, vector<2x8x8xf32> -> vector<2x8x8xf32>
    "tpu.trace_stop"() : () -> ()
    %193 = arith.addf %192, %30 : vector<2x8x8xf32>
    %cst_87 = arith.constant dense<0xFF800000> : vector<2x8xf32>
    %194 = vector.multi_reduction <maximumf>, %193, %cst_87 [2] : vector<2x8x8xf32> to vector<2x8xf32>
    %195 = vector.shape_cast %194 : vector<2x8xf32> to vector<2x8x1xf32>
    %196 = vector.broadcast %195 : vector<2x8x1xf32> to vector<2x8x8xf32>
    %197 = arith.subf %193, %196 : vector<2x8x8xf32>
    %198 = math.exp %197 : vector<2x8x8xf32>
    %cst_88 = arith.constant dense<0.000000e+00> : vector<2x8xf32>
    %199 = vector.multi_reduction <add>, %198, %cst_88 [2] : vector<2x8x8xf32> to vector<2x8xf32>
    %200 = vector.shape_cast %199 : vector<2x8xf32> to vector<2x8x1xf32>
    %201 = tpu.reciprocal %200 {approx = true} : vector<2x8x1xf32> -> vector<2x8x1xf32>
    %202 = vector.broadcast %201 : vector<2x8x1xf32> to vector<2x8x8xf32>
    %203 = arith.mulf %198, %202 : vector<2x8x8xf32>
    "tpu.trace_start"() <{level = 10 : i32, message = "bqk,bkd->bqd"}> : () -> ()
    %cst_89 = arith.constant dense<0.000000e+00> : vector<2x8x16xf32>
    %204 = tpu.matmul %203, %191, %cst_89 {dimension_numbers = #tpu.dot_dimension_numbers<[2], [1], [1], [2], [0, 0, 0, 1, 1, 2], [0], [0]>} : vector<2x8x8xf32>, vector<2x8x16xf32>, vector<2x8x16xf32> -> vector<2x8x16xf32>
    "tpu.trace_stop"() : () -> ()
    %205 = tpu.concatenate %188, %204 in 2 : vector<2x8x16xf32>, vector<2x8x16xf32> -> vector<2x8x32xf32>
    %206 = vector.shape_cast %205 : vector<2x8x32xf32> to vector<16x32xf32>
    %c1_90 = arith.constant 1 : index
    %c0_91 = arith.constant 0 : index
    %c0_92 = arith.constant 0 : index
    %207 = vector.load %arg6[%c1_90, %c0_91, %c0_92] : memref<2x32x32xf32, #tpu.memory_space<vmem>>, vector<1x32x32xf32>
    %208 = vector.shape_cast %207 : vector<1x32x32xf32> to vector<32x32xf32>
    %c1_93 = arith.constant 1 : index
    %c0_94 = arith.constant 0 : index
    %c0_95 = arith.constant 0 : index
    %209 = vector.load %arg7[%c1_93, %c0_94, %c0_95] : memref<2x1x32xf32, #tpu.memory_space<vmem>>, vector<1x1x32xf32>
    %210 = vector.shape_cast %209 : vector<1x1x32xf32> to vector<1x32xf32>
    %cst_96 = arith.constant dense<0.000000e+00> : vector<16x32xf32>
    %211 = tpu.matmul %206, %208, %cst_96 {dimension_numbers = #tpu.dot_dimension_numbers<[1], [0], [0], [1], [0, 0, 1, 1], [], []>} : vector<16x32xf32>, vector<32x32xf32>, vector<16x32xf32> -> vector<16x32xf32>
    %212 = vector.broadcast %210 : vector<1x32xf32> to vector<16x32xf32>
    %213 = arith.addf %211, %212 : vector<16x32xf32>
    %214 = arith.addf %213, %164 : vector<16x32xf32>
    %c1_97 = arith.constant 1 : index
    %c0_98 = arith.constant 0 : index
    %c0_99 = arith.constant 0 : index
    %215 = vector.load %arg8[%c1_97, %c0_98, %c0_99] : memref<2x1x32xf32, #tpu.memory_space<vmem>>, vector<1x1x32xf32>
    %216 = vector.shape_cast %215 : vector<1x1x32xf32> to vector<1x32xf32>
    %c1_100 = arith.constant 1 : index
    %c0_101 = arith.constant 0 : index
    %c0_102 = arith.constant 0 : index
    %217 = vector.load %arg9[%c1_100, %c0_101, %c0_102] : memref<2x1x32xf32, #tpu.memory_space<vmem>>, vector<1x1x32xf32>
    %218 = vector.shape_cast %217 : vector<1x1x32xf32> to vector<1x32xf32>
    %cst_103 = arith.constant dense<0.000000e+00> : vector<16xf32>
    %219 = vector.multi_reduction <add>, %214, %cst_103 [1] : vector<16x32xf32> to vector<16xf32>
    %220 = vector.shape_cast %219 : vector<16xf32> to vector<16x1xf32>
    %cst_104 = arith.constant 3.200000e+01 : f32
    %221 = vector.broadcast %cst_104 : f32 to vector<16x1xf32>
    %222 = arith.divf %220, %221 : vector<16x1xf32>
    %223 = arith.mulf %214, %214 : vector<16x32xf32>
    %cst_105 = arith.constant dense<0.000000e+00> : vector<16xf32>
    %224 = vector.multi_reduction <add>, %223, %cst_105 [1] : vector<16x32xf32> to vector<16xf32>
    %225 = vector.shape_cast %224 : vector<16xf32> to vector<16x1xf32>
    %cst_106 = arith.constant 3.200000e+01 : f32
    %226 = vector.broadcast %cst_106 : f32 to vector<16x1xf32>
    %227 = arith.divf %225, %226 : vector<16x1xf32>
    %228 = arith.mulf %222, %222 : vector<16x1xf32>
    %229 = arith.subf %227, %228 : vector<16x1xf32>
    %cst_107 = arith.constant 0.000000e+00 : f32
    %230 = vector.broadcast %cst_107 : f32 to vector<16x1xf32>
    %231 = arith.maximumf %229, %230 : vector<16x1xf32>
    %232 = vector.broadcast %222 : vector<16x1xf32> to vector<16x32xf32>
    %233 = arith.subf %214, %232 : vector<16x32xf32>
    %cst_108 = arith.constant 9.99999996E-13 : f32
    %234 = vector.broadcast %cst_108 : f32 to vector<16x1xf32>
    %235 = arith.addf %231, %234 : vector<16x1xf32>
    %236 = math.rsqrt %235 : vector<16x1xf32>
    %237 = vector.broadcast %236 : vector<16x1xf32> to vector<16x32xf32>
    %238 = arith.mulf %233, %237 : vector<16x32xf32>
    %239 = vector.broadcast %216 : vector<1x32xf32> to vector<16x32xf32>
    %240 = arith.mulf %238, %239 : vector<16x32xf32>
    %241 = vector.broadcast %218 : vector<1x32xf32> to vector<16x32xf32>
    %242 = arith.addf %240, %241 : vector<16x32xf32>
    %c1_109 = arith.constant 1 : index
    %c0_110 = arith.constant 0 : index
    %c0_111 = arith.constant 0 : index
    %243 = vector.load %arg10[%c1_109, %c0_110, %c0_111] : memref<2x32x64xf32, #tpu.memory_space<vmem>>, vector<1x32x64xf32>
    %244 = vector.shape_cast %243 : vector<1x32x64xf32> to vector<32x64xf32>
    %c1_112 = arith.constant 1 : index
    %c0_113 = arith.constant 0 : index
    %c0_114 = arith.constant 0 : index
    %245 = vector.load %arg11[%c1_112, %c0_113, %c0_114] : memref<2x1x64xf32, #tpu.memory_space<vmem>>, vector<1x1x64xf32>
    %246 = vector.shape_cast %245 : vector<1x1x64xf32> to vector<1x64xf32>
    %cst_115 = arith.constant dense<0.000000e+00> : vector<16x64xf32>
    %247 = tpu.matmul %242, %244, %cst_115 {dimension_numbers = #tpu.dot_dimension_numbers<[1], [0], [0], [1], [0, 0, 1, 1], [], []>} : vector<16x32xf32>, vector<32x64xf32>, vector<16x64xf32> -> vector<16x64xf32>
    %248 = vector.broadcast %246 : vector<1x64xf32> to vector<16x64xf32>
    %249 = arith.addf %247, %248 : vector<16x64xf32>
    %250 = arith.mulf %249, %249 : vector<16x64xf32>
    %251 = arith.mulf %249, %250 : vector<16x64xf32>
    %cst_116 = arith.constant 4.471500e-02 : f32
    %252 = vector.broadcast %cst_116 : f32 to vector<16x64xf32>
    %253 = arith.mulf %252, %251 : vector<16x64xf32>
    %254 = arith.addf %249, %253 : vector<16x64xf32>
    %cst_117 = arith.constant 0.797884583 : f32
    %255 = vector.broadcast %cst_117 : f32 to vector<16x64xf32>
    %256 = arith.mulf %255, %254 : vector<16x64xf32>
    %257 = math.tanh %256 : vector<16x64xf32>
    %cst_118 = arith.constant 1.000000e+00 : f32
    %258 = vector.broadcast %cst_118 : f32 to vector<16x64xf32>
    %259 = arith.addf %258, %257 : vector<16x64xf32>
    %cst_119 = arith.constant 5.000000e-01 : f32
    %260 = vector.broadcast %cst_119 : f32 to vector<16x64xf32>
    %261 = arith.mulf %260, %259 : vector<16x64xf32>
    %262 = arith.mulf %249, %261 : vector<16x64xf32>
    %c1_120 = arith.constant 1 : index
    %c0_121 = arith.constant 0 : index
    %c0_122 = arith.constant 0 : index
    %263 = vector.load %arg12[%c1_120, %c0_121, %c0_122] : memref<2x64x32xf32, #tpu.memory_space<vmem>>, vector<1x64x32xf32>
    %264 = vector.shape_cast %263 : vector<1x64x32xf32> to vector<64x32xf32>
    %c1_123 = arith.constant 1 : index
    %c0_124 = arith.constant 0 : index
    %c0_125 = arith.constant 0 : index
    %265 = vector.load %arg13[%c1_123, %c0_124, %c0_125] : memref<2x1x32xf32, #tpu.memory_space<vmem>>, vector<1x1x32xf32>
    %266 = vector.shape_cast %265 : vector<1x1x32xf32> to vector<1x32xf32>
    %cst_126 = arith.constant dense<0.000000e+00> : vector<16x32xf32>
    %267 = tpu.matmul %262, %264, %cst_126 {dimension_numbers = #tpu.dot_dimension_numbers<[1], [0], [0], [1], [0, 0, 1, 1], [], []>} : vector<16x64xf32>, vector<64x32xf32>, vector<16x32xf32> -> vector<16x32xf32>
    %268 = vector.broadcast %266 : vector<1x32xf32> to vector<16x32xf32>
    %269 = arith.addf %267, %268 : vector<16x32xf32>
    %270 = arith.addf %269, %242 : vector<16x32xf32>
    %c1_127 = arith.constant 1 : index
    %c0_128 = arith.constant 0 : index
    %c0_129 = arith.constant 0 : index
    %271 = vector.load %arg14[%c1_127, %c0_128, %c0_129] : memref<2x1x32xf32, #tpu.memory_space<vmem>>, vector<1x1x32xf32>
    %272 = vector.shape_cast %271 : vector<1x1x32xf32> to vector<1x32xf32>
    %c1_130 = arith.constant 1 : index
    %c0_131 = arith.constant 0 : index
    %c0_132 = arith.constant 0 : index
    %273 = vector.load %arg15[%c1_130, %c0_131, %c0_132] : memref<2x1x32xf32, #tpu.memory_space<vmem>>, vector<1x1x32xf32>
    %274 = vector.shape_cast %273 : vector<1x1x32xf32> to vector<1x32xf32>
    %cst_133 = arith.constant dense<0.000000e+00> : vector<16xf32>
    %275 = vector.multi_reduction <add>, %270, %cst_133 [1] : vector<16x32xf32> to vector<16xf32>
    %276 = vector.shape_cast %275 : vector<16xf32> to vector<16x1xf32>
    %cst_134 = arith.constant 3.200000e+01 : f32
    %277 = vector.broadcast %cst_134 : f32 to vector<16x1xf32>
    %278 = arith.divf %276, %277 : vector<16x1xf32>
    %279 = arith.mulf %270, %270 : vector<16x32xf32>
    %cst_135 = arith.constant dense<0.000000e+00> : vector<16xf32>
    %280 = vector.multi_reduction <add>, %279, %cst_135 [1] : vector<16x32xf32> to vector<16xf32>
    %281 = vector.shape_cast %280 : vector<16xf32> to vector<16x1xf32>
    %cst_136 = arith.constant 3.200000e+01 : f32
    %282 = vector.broadcast %cst_136 : f32 to vector<16x1xf32>
    %283 = arith.divf %281, %282 : vector<16x1xf32>
    %284 = arith.mulf %278, %278 : vector<16x1xf32>
    %285 = arith.subf %283, %284 : vector<16x1xf32>
    %cst_137 = arith.constant 0.000000e+00 : f32
    %286 = vector.broadcast %cst_137 : f32 to vector<16x1xf32>
    %287 = arith.maximumf %285, %286 : vector<16x1xf32>
    %288 = vector.broadcast %278 : vector<16x1xf32> to vector<16x32xf32>
    %289 = arith.subf %270, %288 : vector<16x32xf32>
    %cst_138 = arith.constant 9.99999996E-13 : f32
    %290 = vector.broadcast %cst_138 : f32 to vector<16x1xf32>
    %291 = arith.addf %287, %290 : vector<16x1xf32>
    %292 = math.rsqrt %291 : vector<16x1xf32>
    %293 = vector.broadcast %292 : vector<16x1xf32> to vector<16x32xf32>
    %294 = arith.mulf %289, %293 : vector<16x32xf32>
    %295 = vector.broadcast %272 : vector<1x32xf32> to vector<16x32xf32>
    %296 = arith.mulf %294, %295 : vector<16x32xf32>
    %297 = vector.broadcast %274 : vector<1x32xf32> to vector<16x32xf32>
    %298 = arith.addf %296, %297 : vector<16x32xf32>
    %299 = vector.shape_cast %298 : vector<16x32xf32> to vector<2x8x32xf32>
    %300 = vector.extract_strided_slice %299 {offsets = [0, 0, 0], sizes = [2, 1, 32], strides = [1, 1, 1]} : vector<2x8x32xf32> to vector<2x1x32xf32>
    %301 = vector.shape_cast %300 : vector<2x1x32xf32> to vector<2x32xf32>
    %c0_139 = arith.constant 0 : index
    %c0_140 = arith.constant 0 : index
    %302 = vector.load %arg16[%c0_139, %c0_140] : memref<32x32xf32, #tpu.memory_space<vmem>>, vector<32x32xf32>
    %c0_141 = arith.constant 0 : index
    %c0_142 = arith.constant 0 : index
    %303 = vector.load %arg17[%c0_141, %c0_142] : memref<1x32xf32, #tpu.memory_space<vmem>>, vector<1x32xf32>
    %cst_143 = arith.constant dense<0.000000e+00> : vector<2x32xf32>
    %304 = tpu.matmul %301, %302, %cst_143 {dimension_numbers = #tpu.dot_dimension_numbers<[1], [0], [0], [1], [0, 0, 1, 1], [], []>} : vector<2x32xf32>, vector<32x32xf32>, vector<2x32xf32> -> vector<2x32xf32>
    %305 = vector.broadcast %303 : vector<1x32xf32> to vector<2x32xf32>
    %306 = arith.addf %304, %305 : vector<2x32xf32>
    %307 = math.tanh %306 : vector<2x32xf32>
    %c0_144 = arith.constant 0 : index
    %c0_145 = arith.constant 0 : index
    %308 = vector.load %arg18[%c0_144, %c0_145] : memref<32x128xf32, #tpu.memory_space<vmem>>, vector<32x128xf32>
    %c0_146 = arith.constant 0 : index
    %c0_147 = arith.constant 0 : index
    %309 = vector.load %arg19[%c0_146, %c0_147] : memref<1x128xf32, #tpu.memory_space<vmem>>, vector<1x128xf32>
    %cst_148 = arith.constant dense<0.000000e+00> : vector<2x128xf32>
    %310 = tpu.matmul %307, %308, %cst_148 {dimension_numbers = #tpu.dot_dimension_numbers<[1], [0], [0], [1], [0, 0, 1, 1], [], []>} : vector<2x32xf32>, vector<32x128xf32>, vector<2x128xf32> -> vector<2x128xf32>
    %311 = vector.broadcast %309 : vector<1x128xf32> to vector<2x128xf32>
    %312 = arith.addf %310, %311 : vector<2x128xf32>
    %c0_149 = arith.constant 0 : index
    %c0_150 = arith.constant 0 : index
    %313 = vector.load %arg22[%c0_149, %c0_150] : memref<2x128xf32, #tpu.memory_space<vmem>>, vector<2x128xf32>
    tpu.vector_store %arg22[%c0_149, %c0_150], %312 {strides = array<i32>} : memref<2x128xf32, #tpu.memory_space<vmem>>, vector<2x128xf32>,
    %c0_151 = arith.constant 0 : index
    %c0_152 = arith.constant 0 : index
    %314 = vector.load %arg20[%c0_151, %c0_152] : memref<32x128xf32, #tpu.memory_space<vmem>>, vector<32x128xf32>
    %c0_153 = arith.constant 0 : index
    %c0_154 = arith.constant 0 : index
    %315 = vector.load %arg21[%c0_153, %c0_154] : memref<1x128xf32, #tpu.memory_space<vmem>>, vector<1x128xf32>
    %cst_155 = arith.constant dense<0.000000e+00> : vector<16x128xf32>
    %316 = tpu.matmul %298, %314, %cst_155 {dimension_numbers = #tpu.dot_dimension_numbers<[1], [0], [0], [1], [0, 0, 1, 1], [], []>} : vector<16x32xf32>, vector<32x128xf32>, vector<16x128xf32> -> vector<16x128xf32>
    %317 = vector.broadcast %315 : vector<1x128xf32> to vector<16x128xf32>
    %318 = arith.addf %316, %317 : vector<16x128xf32>
    %c0_156 = arith.constant 0 : index
    %c0_157 = arith.constant 0 : index
    %319 = vector.load %arg23[%c0_156, %c0_157] : memref<16x128xf32, #tpu.memory_space<vmem>>, vector<16x128xf32>
    tpu.vector_store %arg23[%c0_156, %c0_157], %318 {strides = array<i32>} : memref<16x128xf32, #tpu.memory_space<vmem>>, vector<16x128xf32>,
    return
  }
}

</mosaic_0001>

<llo_original>
// kernel: bert_forward.1
$region0: #{bert_forward.1}
  #allocation0 [shape = 'u32[]', space=smem, size = 0x4, offset = 0x4, fixed_abs, tag = 'smem constant byte address 0x4 - core index']
  #allocation1 [shape = 'u32[144,128]{1,0:T(1,128)}', space=vmem, size = 0x12000, scoped, tag = 'internal scratch']
  %s0 = inlined_call_operand.vmem [shape: f32[16,32], index: 0, kind: input, shape index: {}]
  %s1 = inlined_call_operand.vmem [shape: f32[2,8], index: 1, kind: input, shape index: {}]
  %s2 = inlined_call_operand.vmem [shape: f32[1,32], index: 2, kind: input, shape index: {}]
  %s3 = inlined_call_operand.vmem [shape: f32[1,32], index: 3, kind: input, shape index: {}]
  %s4 = inlined_call_operand.vmem [shape: f32[2,32,96], index: 4, kind: input, shape index: {}]
  %s5 = inlined_call_operand.vmem [shape: f32[2,1,96], index: 5, kind: input, shape index: {}]
  %s6 = inlined_call_operand.vmem [shape: f32[2,32,32], index: 6, kind: input, shape index: {}]
  %s7 = inlined_call_operand.vmem [shape: f32[2,1,32], index: 7, kind: input, shape index: {}]
  %s8 = inlined_call_operand.vmem [shape: f32[2,1,32], index: 8, kind: input, shape index: {}]
  %s9 = inlined_call_operand.vmem [shape: f32[2,1,32], index: 9, kind: input, shape index: {}]
  %s10 = inlined_call_operand.vmem [shape: f32[2,32,64], index: 10, kind: input, shape index: {}]
  %s11 = inlined_call_operand.vmem [shape: f32[2,1,64], index: 11, kind: input, shape index: {}]
  %s12 = inlined_call_operand.vmem [shape: f32[2,64,32], index: 12, kind: input, shape index: {}]
  %s13 = inlined_call_operand.vmem [shape: f32[2,1,32], index: 13, kind: input, shape index: {}]
  %s14 = inlined_call_operand.vmem [shape: f32[2,1,32], index: 14, kind: input, shape index: {}]
  %s15 = inlined_call_operand.vmem [shape: f32[2,1,32], index: 15, kind: input, shape index: {}]
  %s16 = inlined_call_operand.vmem [shape: f32[32,32], index: 16, kind: input, shape index: {}]
  %s17 = inlined_call_operand.vmem [shape: f32[1,32], index: 17, kind: input, shape index: {}]
  %s18 = inlined_call_operand.vmem [shape: f32[32,128], index: 18, kind: input, shape index: {}]
  %s19 = inlined_call_operand.vmem [shape: f32[1,128], index: 19, kind: input, shape index: {}]
  %s20 = inlined_call_operand.vmem [shape: f32[32,128], index: 20, kind: input, shape index: {}]
  %s21 = inlined_call_operand.vmem [shape: f32[1,128], index: 21, kind: input, shape index: {}]
  %s22 = inlined_call_operand.hbm [shape: f32[2,128], index: 22, kind: output, shape index: {0}]
  %s23 = inlined_call_operand.vmem [shape: f32[16,128], index: 23, kind: output, shape index: {1}]
  %24 = xla_tuple %s22, %s23
  %s25 = sld [smem:[#allocation0]]
  $region106: #{bert_forward.1} parent=0
    _
  %s27 = ssub.s32 1, %s25
  %s28 = scalar_select 0, %s27, %s25
  $region1: #{bert_forward.1} parent=0
    #allocation2 [shape = 'u8[1024]{0}', space=vmem, size = 0x400, scoped, tag = 'output window, operand 0, single buffered']
    #allocation3 [shape = 's32[1]{0}', space=sflag, size = 0x4, scoped, tag = 'scoped memory for bert_forward.1']
    %29 = vsyncpa [#allocation3], 0
    // Predicated region
    $region2: #{bert_forward.1} parent=1 // pred_check
      _
    $region3: #{bert_forward.1} parent=1 // pred_check_branch
      %31 = sbr.rel (0) target = $region5
    $region4: #{bert_forward.1} parent=1 // pred_region
      _
    $region5: #{bert_forward.1} parent=1 // pred_fallthru
      _
    // Predicated region
    $region6: #{bert_forward.1} parent=1 // pred_check
      _
    $region7: #{bert_forward.1} parent=1 // pred_check_branch
      %33 = sbr.rel (0) target = $region9
    $region8: #{bert_forward.1} parent=1 // pred_region
      _
    $region9: #{bert_forward.1} parent=1 // pred_fallthru
      _
    // Predicated region
    $region10: #{bert_forward.1} parent=1 // pred_check
      _
    $region11: #{bert_forward.1} parent=1 // pred_check_branch
      %35 = sbr.rel (0) target = $region13
    $region12: #{bert_forward.1} parent=1 // pred_region
      _
    $region13: #{bert_forward.1} parent=1 // pred_fallthru
      _
    // Predicated region
    $region14: #{bert_forward.1} parent=1 // pred_check
      _
    $region15: #{bert_forward.1} parent=1 // pred_check_branch
      %37 = sbr.rel (0) target = $region17
    $region16: #{bert_forward.1} parent=1 // pred_region
      _
    $region17: #{bert_forward.1} parent=1 // pred_fallthru
      _
    // Predicated region
    $region18: #{bert_forward.1} parent=1 // pred_check
      _
    $region19: #{bert_forward.1} parent=1 // pred_check_branch
      %39 = sbr.rel (0) target = $region21
    $region20: #{bert_forward.1} parent=1 // pred_region
      _
    $region21: #{bert_forward.1} parent=1 // pred_fallthru
      _
    // Predicated region
    $region22: #{bert_forward.1} parent=1 // pred_check
      _
    $region23: #{bert_forward.1} parent=1 // pred_check_branch
      %41 = sbr.rel (0) target = $region25
    $region24: #{bert_forward.1} parent=1 // pred_region
      _
    $region25: #{bert_forward.1} parent=1 // pred_fallthru
      _
    // Predicated region
    $region26: #{bert_forward.1} parent=1 // pred_check
      _
    $region27: #{bert_forward.1} parent=1 // pred_check_branch
      %43 = sbr.rel (0) target = $region29
    $region28: #{bert_forward.1} parent=1 // pred_region
      _
    $region29: #{bert_forward.1} parent=1 // pred_fallthru
      _
    // Predicated region
    $region30: #{bert_forward.1} parent=1 // pred_check
      _
    $region31: #{bert_forward.1} parent=1 // pred_check_branch
      %45 = sbr.rel (0) target = $region33
    $region32: #{bert_forward.1} parent=1 // pred_region
      _
    $region33: #{bert_forward.1} parent=1 // pred_fallthru
      _
    // Predicated region
    $region34: #{bert_forward.1} parent=1 // pred_check
      _
    $region35: #{bert_forward.1} parent=1 // pred_check_branch
      %47 = sbr.rel (0) target = $region37
    $region36: #{bert_forward.1} parent=1 // pred_region
      _
    $region37: #{bert_forward.1} parent=1 // pred_fallthru
      _
    // Predicated region
    $region38: #{bert_forward.1} parent=1 // pred_check
      _
    $region39: #{bert_forward.1} parent=1 // pred_check_branch
      %49 = sbr.rel (0) target = $region41
    $region40: #{bert_forward.1} parent=1 // pred_region
      _
    $region41: #{bert_forward.1} parent=1 // pred_fallthru
      _
    // Predicated region
    $region42: #{bert_forward.1} parent=1 // pred_check
      _
    $region43: #{bert_forward.1} parent=1 // pred_check_branch
      %51 = sbr.rel (0) target = $region45
    $region44: #{bert_forward.1} parent=1 // pred_region
      _
    $region45: #{bert_forward.1} parent=1 // pred_fallthru
      _
    // Predicated region
    $region46: #{bert_forward.1} parent=1 // pred_check
      _
    $region47: #{bert_forward.1} parent=1 // pred_check_branch
      %53 = sbr.rel (0) target = $region49
    $region48: #{bert_forward.1} parent=1 // pred_region
      _
    $region49: #{bert_forward.1} parent=1 // pred_fallthru
      _
    // Predicated region
    $region50: #{bert_forward.1} parent=1 // pred_check
      _
    $region51: #{bert_forward.1} parent=1 // pred_check_branch
      %55 = sbr.rel (0) target = $region53
    $region52: #{bert_forward.1} parent=1 // pred_region
      _
    $region53: #{bert_forward.1} parent=1 // pred_fallthru
      _
    // Predicated region
    $region54: #{bert_forward.1} parent=1 // pred_check
      _
    $region55: #{bert_forward.1} parent=1 // pred_check_branch
      %57 = sbr.rel (0) target = $region57
    $region56: #{bert_forward.1} parent=1 // pred_region
      _
    $region57: #{bert_forward.1} parent=1 // pred_fallthru
      _
    // Predicated region
    $region58: #{bert_forward.1} parent=1 // pred_check
      _
    $region59: #{bert_forward.1} parent=1 // pred_check_branch
      %59 = sbr.rel (0) target = $region61
    $region60: #{bert_forward.1} parent=1 // pred_region
      _
    $region61: #{bert_forward.1} parent=1 // pred_fallthru
      _
    // Predicated region
    $region62: #{bert_forward.1} parent=1 // pred_check
      _
    $region63: #{bert_forward.1} parent=1 // pred_check_branch
      %61 = sbr.rel (0) target = $region65
    $region64: #{bert_forward.1} parent=1 // pred_region
      _
    $region65: #{bert_forward.1} parent=1 // pred_fallthru
      _
    // Predicated region
    $region66: #{bert_forward.1} parent=1 // pred_check
      _
    $region67: #{bert_forward.1} parent=1 // pred_check_branch
      %63 = sbr.rel (0) target = $region69
    $region68: #{bert_forward.1} parent=1 // pred_region
      _
    $region69: #{bert_forward.1} parent=1 // pred_fallthru
      _
    // Predicated region
    $region70: #{bert_forward.1} parent=1 // pred_check
      _
    $region71: #{bert_forward.1} parent=1 // pred_check_branch
      %65 = sbr.rel (0) target = $region73
    $region72: #{bert_forward.1} parent=1 // pred_region
      _
    $region73: #{bert_forward.1} parent=1 // pred_fallthru
      _
    // Predicated region
    $region74: #{bert_forward.1} parent=1 // pred_check
      _
    $region75: #{bert_forward.1} parent=1 // pred_check_branch
      %67 = sbr.rel (0) target = $region77
    $region76: #{bert_forward.1} parent=1 // pred_region
      _
    $region77: #{bert_forward.1} parent=1 // pred_fallthru
      _
    // Predicated region
    $region78: #{bert_forward.1} parent=1 // pred_check
      _
    $region79: #{bert_forward.1} parent=1 // pred_check_branch
      %69 = sbr.rel (0) target = $region81
    $region80: #{bert_forward.1} parent=1 // pred_region
      _
    $region81: #{bert_forward.1} parent=1 // pred_fallthru
      _
    // Predicated region
    $region82: #{bert_forward.1} parent=1 // pred_check
      _
    $region83: #{bert_forward.1} parent=1 // pred_check_branch
      %71 = sbr.rel (0) target = $region85
    $region84: #{bert_forward.1} parent=1 // pred_region
      _
    $region85: #{bert_forward.1} parent=1 // pred_fallthru
      _
    // Predicated region
    $region86: #{bert_forward.1} parent=1 // pred_check
      _
    $region87: #{bert_forward.1} parent=1 // pred_check_branch
      %73 = sbr.rel (0) target = $region89
    $region88: #{bert_forward.1} parent=1 // pred_region
      _
    $region89: #{bert_forward.1} parent=1 // pred_fallthru
      _
    %v74 = vld [vmem:[%s0] sm:$0xff]
    %v75 = vld [vmem:[%s0 + $0x8] sm:$0xff]
    %v76 = vld [vmem:[%s2] sm:$0x1]
    %v77 = vld [vmem:[%s3] sm:$0x1]
    %vm78 = vcmask 261120
    %v79 = vsel %vm78, %v74, 0.0
    %80 = vadd.xlane.f32.xlu0 %v79
    %v81 = vpop.xlane.xlu0 %80
    %v82 = vsel %vm78, %v75, 0.0
    %83 = vadd.xlane.f32.xlu0 %v82
    %v84 = vpop.xlane.xlu0 %83
    %v85 = vrcp.pop 32.0
    %v86 = vmul.f32 %v81, %v85
    %v87 = vmul.f32 %v84, %v85
    %v88 = vmul.f32 %v74, %v74
    %v89 = vmul.f32 %v75, %v75
    %v90 = vsel %vm78, %v88, 0.0
    %91 = vadd.xlane.f32.xlu0 %v90
    %v92 = vpop.xlane.xlu0 %91
    %v93 = vsel %vm78, %v89, 0.0
    %94 = vadd.xlane.f32.xlu0 %v93
    %v95 = vpop.xlane.xlu0 %94
    %v96 = vmul.f32 %v92, %v85
    %v97 = vmul.f32 %v95, %v85
    %v98 = vmul.f32 %v86, %v86
    %v99 = vmul.f32 %v87, %v87
    %v100 = vsub.f32 %v96, %v98
    %v101 = vsub.f32 %v97, %v99
    %v102 = vmax.f32 %v100, 0.0
    %v103 = vmax.f32 %v101, 0.0
    %v104 = vsub.f32 %v74, %v86
    %v105 = vsub.f32 %v75, %v87
    %v106 = vadd.f32 %v102, 1e-12
    %v107 = vadd.f32 %v103, 1e-12
    %v108 = vrsqrt.pop %v106
    %v109 = vrsqrt.pop %v107
    %v110 = vmul.f32 %v104, %v108
    %v111 = vmul.f32 %v105, %v109
    %v113 = vlaneseq
    %v114 = vshrl.u32 %v113, 7
    %v115 = vsub.s32 0, %v114
    %v116 = vrot.slane %v76, %v115
    %v118 = vmul.f32 %v110, %v116
    %v119 = vmul.f32 %v111, %v116
    %v121 = vlaneseq
    %v122 = vshrl.u32 %v121, 7
    %v123 = vsub.s32 0, %v122
    %v124 = vrot.slane %v77, %v123
    %v126 = vadd.f32 %v118, %v124
    %v127 = vadd.f32 %v119, %v124
    %v128 = vld [vmem:[%s1] sm:$0x3]
    %v131 = vunpack.c.l.s4 1966171168
    %v132 = vunpack.c.0.s8 %v131
    %v133 = vlaneseq
    %v134 = vshrl.u32 %v133, 7
    %v135 = vsub.s32 %v132, %v134
    %v136 = vrot.slane %v128, %v135
    %v137 = vcombine.high %v136, %v136
    %v139 = vunpack.c.l.s4 1966171168
    %v140 = vunpack.c.0.s8 %v139
    %v141 = vlaneseq
    %v142 = vshrl.u32 %v141, 7
    %v143 = vsub.s32 %v140, %v142
    %v144 = vrot.slane %v136, %v143
    %v146 = vunpack.c.l.s4 1966171168
    %v147 = vunpack.c.0.s8 %v146
    %v148 = vlaneseq
    %v149 = vshrl.u32 %v148, 7
    %v150 = vsub.s32 %v147, %v149
    %v151 = vrot.slane %v137, %v150
    %v152 = vlaneseq
    %v153 = vshrl.u32 %v152, 7
    %v154 = vsub.s32 0, %v153
    %v155 = vrot.slane %v144, %v154
    %v156 = vlaneseq
    %v157 = vshrl.u32 %v156, 7
    %v158 = vsub.s32 0, %v157
    %v159 = vrot.slane %v151, %v158
    %v162 = vld [vmem:[%s4] sm:$0xff]
    %v163 = vld [vmem:[%s4 + $0x8] sm:$0xff]
    %v164 = vld [vmem:[%s4 + $0x10] sm:$0xff]
    %v165 = vld [vmem:[%s4 + $0x18] sm:$0xff]
    %v166 = vld [vmem:[%s5] sm:$0x1]
    %v168 = vlaneseq
    %v169 = vshrl.u32 %v168, 7
    %v170 = vsub.s32 0, %v169
    %v171 = vrot.slane %v166, %v170
    %v174 = vsel %vm78, %v126, 0
    %v177 = vsel %vm78, %v127, 0
    %179 = vmatprep.subr.mxu0 0.0
    %180 = vmatpush1.msra.mxu0 %v162
    %181 = vmatprep.subr.mxu0 0.0
    %182 = vmatpush1.msra.mxu0 %v163
    %183 = vmatprep.subr.mxu0 0.0
    %184 = vmatpush1.msra.mxu0 %v164
    %185 = vmatprep.subr.mxu0 0.0
    %186 = vmatpush1.msra.mxu0 %v165
    %187 = vmatprep.subr.mxu0 0.0
    %188 = vmatpush1.msra.mxu0 0.0
    %189 = vmatprep.subr.mxu0 0.0
    %190 = vmatpush1.msra.mxu0 0.0
    %191 = vmatprep.subr.mxu0 0.0
    %192 = vmatpush1.msra.mxu0 0.0
    %193 = vmatprep.subr.mxu0 0.0
    %194 = vmatpush1.msra.mxu0 0.0
    %195 = vmatprep.subr.mxu0 0.0
    %196 = vmatpush1.msra.mxu0 0.0
    %197 = vmatprep.subr.mxu0 0.0
    %198 = vmatpush1.msra.mxu0 0.0
    %199 = vmatprep.subr.mxu0 0.0
    %200 = vmatpush1.msra.mxu0 0.0
    %201 = vmatprep.subr.mxu0 0.0
    %202 = vmatpush1.msra.mxu0 0.0
    %203 = vmatprep.subr.mxu0 0.0
    %204 = vmatpush1.msra.mxu0 0.0
    %205 = vmatprep.subr.mxu0 0.0
    %206 = vmatpush1.msra.mxu0 0.0
    %207 = vmatprep.subr.mxu0 0.0
    %208 = vmatpush1.msra.mxu0 0.0
    %209 = vmatprep.subr.mxu0 0.0
    %210 = vmatpush1.msra.mxu0 0.0
    %211 = vmatprep.subr.mxu0 0.0
    %212 = vmatpush1.msra.mxu0 0.0
    %213 = vmatprep.subr.mxu0 0.0
    %214 = vmatpush1.msra.mxu0 0.0
    %215 = vmatprep.subr.mxu0 0.0
    %216 = vmatpush1.msra.mxu0 0.0
    %217 = vmatprep.subr.mxu0 0.0
    %218 = vmatpush1.msra.mxu0 0.0
    %219 = vmatprep.subr.mxu0 0.0
    %220 = vmatpush1.msra.mxu0 0.0
    %221 = vmatprep.subr.mxu0 0.0
    %222 = vmatpush1.msra.mxu0 0.0
    %223 = vmatprep.subr.mxu0 0.0
    %224 = vmatpush1.msra.mxu0 0.0
    %225 = vmatprep.subr.mxu0 0.0
    %226 = vmatpush1.msra.mxu0 0.0
    %227 = vmatprep.subr.mxu0 0.0
    %228 = vmatpush1.msra.mxu0 0.0
    %229 = vmatprep.subr.mxu0 0.0
    %230 = vmatpush1.msra.mxu0 0.0
    %231 = vmatprep.subr.mxu0 0.0
    %232 = vmatpush1.msra.mxu0 0.0
    %233 = vmatprep.subr.mxu0 0.0
    %234 = vmatpush1.msra.mxu0 0.0
    %235 = vmatprep.subr.mxu0 0.0
    %236 = vmatpush1.msra.mxu0 0.0
    %237 = vmatprep.subr.mxu0 0.0
    %238 = vmatpush1.msra.mxu0 0.0
    %239 = vmatprep.subr.mxu0 0.0
    %240 = vmatpush1.msra.mxu0 0.0
    %241 = vmatprep.subr.mxu0 0.0
    %242 = vmatpush1.msra.mxu0 0.0
    %243 = vmatprep.mubr.f32.mxu0 0.0
    %244 = vmatmul.mubr.f32.gmra.mrb[0].mxu0 %v174
    %v245 = vpop.f32.mrb[0].mxu0
    %v246 = vadd.f32 %v171, %v245
    %v247 = vpop.f32.mrb[0].mxu0
    %248 = vmatprep.mubr.f32.mxu0 0.0
    %249 = vmatmul.mubr.f32.gmra.mrb[0].mxu0 %v177
    %v250 = vpop.f32.mrb[0].mxu0
    %v251 = vadd.f32 %v171, %v250
    %v252 = vpop.f32.mrb[0].mxu0
    %253 = vdwg.mxu0
    %255 = vrot.lane.b32.xlu0 %v246, 96
    %v256 = vpop.permute.xlu0 %255
    %vm257 = vcmask 130048
    %v258 = vsel %vm257, %v246, 0
    %v260 = vsel %vm257, %v256, 0
    %262 = vmatprep.subr.mxu0 0.0
    %263 = vmatpush1.xpose.msra.mxu0 %v260
    %264 = vmatprep.subr.mxu0 0.0
    %265 = vmatpush1.xpose.msra.mxu0 0.0
    %266 = vmatprep.subr.mxu0 0.0
    %267 = vmatpush1.xpose.msra.mxu0 0.0
    %268 = vmatprep.subr.mxu0 0.0
    %269 = vmatpush1.xpose.msra.mxu0 0.0
    %270 = vmatprep.subr.mxu0 0.0
    %271 = vmatpush1.xpose.msra.mxu0 0.0
    %272 = vmatprep.subr.mxu0 0.0
    %273 = vmatpush1.xpose.msra.mxu0 0.0
    %274 = vmatprep.subr.mxu0 0.0
    %275 = vmatpush1.xpose.msra.mxu0 0.0
    %276 = vmatprep.subr.mxu0 0.0
    %277 = vmatpush1.xpose.msra.mxu0 0.0
    %278 = vmatprep.subr.mxu0 0.0
    %279 = vmatpush1.xpose.msra.mxu0 0.0
    %280 = vmatprep.subr.mxu0 0.0
    %281 = vmatpush1.xpose.msra.mxu0 0.0
    %282 = vmatprep.subr.mxu0 0.0
    %283 = vmatpush1.xpose.msra.mxu0 0.0
    %284 = vmatprep.subr.mxu0 0.0
    %285 = vmatpush1.xpose.msra.mxu0 0.0
    %286 = vmatprep.subr.mxu0 0.0
    %287 = vmatpush1.xpose.msra.mxu0 0.0
    %288 = vmatprep.subr.mxu0 0.0
    %289 = vmatpush1.xpose.msra.mxu0 0.0
    %290 = vmatprep.subr.mxu0 0.0
    %291 = vmatpush1.xpose.msra.mxu0 0.0
    %292 = vmatprep.subr.mxu0 0.0
    %293 = vmatpush1.xpose.msra.mxu0 0.0
    %294 = vmatprep.subr.mxu0 0.0
    %295 = vmatpush1.xpose.msra.mxu0 0.0
    %296 = vmatprep.subr.mxu0 0.0
    %297 = vmatpush1.xpose.msra.mxu0 0.0
    %298 = vmatprep.subr.mxu0 0.0
    %299 = vmatpush1.xpose.msra.mxu0 0.0
    %300 = vmatprep.subr.mxu0 0.0
    %301 = vmatpush1.xpose.msra.mxu0 0.0
    %302 = vmatprep.subr.mxu0 0.0
    %303 = vmatpush1.xpose.msra.mxu0 0.0
    %304 = vmatprep.subr.mxu0 0.0
    %305 = vmatpush1.xpose.msra.mxu0 0.0
    %306 = vmatprep.subr.mxu0 0.0
    %307 = vmatpush1.xpose.msra.mxu0 0.0
    %308 = vmatprep.subr.mxu0 0.0
    %309 = vmatpush1.xpose.msra.mxu0 0.0
    %310 = vmatprep.subr.mxu0 0.0
    %311 = vmatpush1.xpose.msra.mxu0 0.0
    %312 = vmatprep.subr.mxu0 0.0
    %313 = vmatpush1.xpose.msra.mxu0 0.0
    %314 = vmatprep.subr.mxu0 0.0
    %315 = vmatpush1.xpose.msra.mxu0 0.0
    %316 = vmatprep.subr.mxu0 0.0
    %317 = vmatpush1.xpose.msra.mxu0 0.0
    %318 = vmatprep.subr.mxu0 0.0
    %319 = vmatpush1.xpose.msra.mxu0 0.0
    %320 = vmatprep.subr.mxu0 0.0
    %321 = vmatpush1.xpose.msra.mxu0 0.0
    %322 = vmatprep.subr.mxu0 0.0
    %323 = vmatpush1.xpose.msra.mxu0 0.0
    %324 = vmatprep.subr.mxu0 0.0
    %325 = vmatpush1.xpose.msra.mxu0 0.0
    %326 = vmatprep.mubr.f32.mxu0 0.0
    %327 = vmatmul.mubr.f32.gmra.mrb[0].mxu0 %v258
    %v328 = vpop.f32.mrb[0].mxu0
    %v329 = vadd.f32 %v155, %v328
    %v330 = vpop.f32.mrb[0].mxu0
    %331 = vdwg.mxu0
    %333 = vrot.lane.b32.xlu0 %v251, 96
    %v334 = vpop.permute.xlu0 %333
    %v335 = vsel %vm257, %v251, 0
    %v337 = vsel %vm257, %v334, 0
    %339 = vmatprep.subr.mxu0 0.0
    %340 = vmatpush1.xpose.msra.mxu0 %v337
    %341 = vmatprep.subr.mxu0 0.0
    %342 = vmatpush1.xpose.msra.mxu0 0.0
    %343 = vmatprep.subr.mxu0 0.0
    %344 = vmatpush1.xpose.msra.mxu0 0.0
    %345 = vmatprep.subr.mxu0 0.0
    %346 = vmatpush1.xpose.msra.mxu0 0.0
    %347 = vmatprep.subr.mxu0 0.0
    %348 = vmatpush1.xpose.msra.mxu0 0.0
    %349 = vmatprep.subr.mxu0 0.0
    %350 = vmatpush1.xpose.msra.mxu0 0.0
    %351 = vmatprep.subr.mxu0 0.0
    %352 = vmatpush1.xpose.msra.mxu0 0.0
    %353 = vmatprep.subr.mxu0 0.0
    %354 = vmatpush1.xpose.msra.mxu0 0.0
    %355 = vmatprep.subr.mxu0 0.0
    %356 = vmatpush1.xpose.msra.mxu0 0.0
    %357 = vmatprep.subr.mxu0 0.0
    %358 = vmatpush1.xpose.msra.mxu0 0.0
    %359 = vmatprep.subr.mxu0 0.0
    %360 = vmatpush1.xpose.msra.mxu0 0.0
    %361 = vmatprep.subr.mxu0 0.0
    %362 = vmatpush1.xpose.msra.mxu0 0.0
    %363 = vmatprep.subr.mxu0 0.0
    %364 = vmatpush1.xpose.msra.mxu0 0.0
    %365 = vmatprep.subr.mxu0 0.0
    %366 = vmatpush1.xpose.msra.mxu0 0.0
    %367 = vmatprep.subr.mxu0 0.0
    %368 = vmatpush1.xpose.msra.mxu0 0.0
    %369 = vmatprep.subr.mxu0 0.0
    %370 = vmatpush1.xpose.msra.mxu0 0.0
    %371 = vmatprep.subr.mxu0 0.0
    %372 = vmatpush1.xpose.msra.mxu0 0.0
    %373 = vmatprep.subr.mxu0 0.0
    %374 = vmatpush1.xpose.msra.mxu0 0.0
    %375 = vmatprep.subr.mxu0 0.0
    %376 = vmatpush1.xpose.msra.mxu0 0.0
    %377 = vmatprep.subr.mxu0 0.0
    %378 = vmatpush1.xpose.msra.mxu0 0.0
    %379 = vmatprep.subr.mxu0 0.0
    %380 = vmatpush1.xpose.msra.mxu0 0.0
    %381 = vmatprep.subr.mxu0 0.0
    %382 = vmatpush1.xpose.msra.mxu0 0.0
    %383 = vmatprep.subr.mxu0 0.0
    %384 = vmatpush1.xpose.msra.mxu0 0.0
    %385 = vmatprep.subr.mxu0 0.0
    %386 = vmatpush1.xpose.msra.mxu0 0.0
    %387 = vmatprep.subr.mxu0 0.0
    %388 = vmatpush1.xpose.msra.mxu0 0.0
    %389 = vmatprep.subr.mxu0 0.0
    %390 = vmatpush1.xpose.msra.mxu0 0.0
    %391 = vmatprep.subr.mxu0 0.0
    %392 = vmatpush1.xpose.msra.mxu0 0.0
    %393 = vmatprep.subr.mxu0 0.0
    %394 = vmatpush1.xpose.msra.mxu0 0.0
    %395 = vmatprep.subr.mxu0 0.0
    %396 = vmatpush1.xpose.msra.mxu0 0.0
    %397 = vmatprep.subr.mxu0 0.0
    %398 = vmatpush1.xpose.msra.mxu0 0.0
    %399 = vmatprep.subr.mxu0 0.0
    %400 = vmatpush1.xpose.msra.mxu0 0.0
    %401 = vmatprep.subr.mxu0 0.0
    %402 = vmatpush1.xpose.msra.mxu0 0.0
    %403 = vmatprep.mubr.f32.mxu0 0.0
    %404 = vmatmul.mubr.f32.gmra.mrb[0].mxu0 %v335
    %v405 = vpop.f32.mrb[0].mxu0
    %v406 = vadd.f32 %v159, %v405
    %v407 = vpop.f32.mrb[0].mxu0
    %408 = vdwg.mxu0
    %vm409 = vcmask 64512
    %v410 = vsel %vm409, %v329, -inf
    %411 = vmax.xlane.f32.xlu0 %v410
    %v412 = vpop.xlane.xlu0 %411
    %v413 = vsel %vm409, %v406, -inf
    %414 = vmax.xlane.f32.xlu0 %v413
    %v415 = vpop.xlane.xlu0 %414
    %v416 = vsub.f32 %v329, %v412
    %v417 = vsub.f32 %v406, %v415
    %v418 = vmul.f32 %v416, 1.442695
    %v419 = vpow.pop %v418
    %v420 = vmul.f32 %v417, 1.442695
    %v421 = vpow.pop %v420
    %v422 = vsel %vm409, %v419, 0.0
    %423 = vadd.xlane.f32.xlu0 %v422
    %v424 = vpop.xlane.xlu0 %423
    %v425 = vsel %vm409, %v421, 0.0
    %426 = vadd.xlane.f32.xlu0 %v425
    %v427 = vpop.xlane.xlu0 %426
    %v428 = vrcp.pop %v424
    %v429 = vrcp.pop %v427
    %v430 = vmul.f32 %v419, %v428
    %v431 = vmul.f32 %v421, %v429
    %432 = vrot.lane.b32.xlu0 %v246, 64
    %v433 = vpop.permute.xlu0 %432
    %v436 = vsel %vm409, %v430, 0
    %438 = vmatprep.subr.mxu0 0.0
    %439 = vmatpush1.msra.mxu0 %v433
    %440 = vmatprep.subr.mxu0 0.0
    %441 = vmatpush1.msra.mxu0 0.0
    %442 = vmatprep.subr.mxu0 0.0
    %443 = vmatpush1.msra.mxu0 0.0
    %444 = vmatprep.subr.mxu0 0.0
    %445 = vmatpush1.msra.mxu0 0.0
    %446 = vmatprep.subr.mxu0 0.0
    %447 = vmatpush1.msra.mxu0 0.0
    %448 = vmatprep.subr.mxu0 0.0
    %449 = vmatpush1.msra.mxu0 0.0
    %450 = vmatprep.subr.mxu0 0.0
    %451 = vmatpush1.msra.mxu0 0.0
    %452 = vmatprep.subr.mxu0 0.0
    %453 = vmatpush1.msra.mxu0 0.0
    %454 = vmatprep.subr.mxu0 0.0
    %455 = vmatpush1.msra.mxu0 0.0
    %456 = vmatprep.subr.mxu0 0.0
    %457 = vmatpush1.msra.mxu0 0.0
    %458 = vmatprep.subr.mxu0 0.0
    %459 = vmatpush1.msra.mxu0 0.0
    %460 = vmatprep.subr.mxu0 0.0
    %461 = vmatpush1.msra.mxu0 0.0
    %462 = vmatprep.subr.mxu0 0.0
    %463 = vmatpush1.msra.mxu0 0.0
    %464 = vmatprep.subr.mxu0 0.0
    %465 = vmatpush1.msra.mxu0 0.0
    %466 = vmatprep.subr.mxu0 0.0
    %467 = vmatpush1.msra.mxu0 0.0
    %468 = vmatprep.subr.mxu0 0.0
    %469 = vmatpush1.msra.mxu0 0.0
    %470 = vmatprep.subr.mxu0 0.0
    %471 = vmatpush1.msra.mxu0 0.0
    %472 = vmatprep.subr.mxu0 0.0
    %473 = vmatpush1.msra.mxu0 0.0
    %474 = vmatprep.subr.mxu0 0.0
    %475 = vmatpush1.msra.mxu0 0.0
    %476 = vmatprep.subr.mxu0 0.0
    %477 = vmatpush1.msra.mxu0 0.0
    %478 = vmatprep.subr.mxu0 0.0
    %479 = vmatpush1.msra.mxu0 0.0
    %480 = vmatprep.subr.mxu0 0.0
    %481 = vmatpush1.msra.mxu0 0.0
    %482 = vmatprep.subr.mxu0 0.0
    %483 = vmatpush1.msra.mxu0 0.0
    %484 = vmatprep.subr.mxu0 0.0
    %485 = vmatpush1.msra.mxu0 0.0
    %486 = vmatprep.subr.mxu0 0.0
    %487 = vmatpush1.msra.mxu0 0.0
    %488 = vmatprep.subr.mxu0 0.0
    %489 = vmatpush1.msra.mxu0 0.0
    %490 = vmatprep.subr.mxu0 0.0
    %491 = vmatpush1.msra.mxu0 0.0
    %492 = vmatprep.subr.mxu0 0.0
    %493 = vmatpush1.msra.mxu0 0.0
    %494 = vmatprep.subr.mxu0 0.0
    %495 = vmatpush1.msra.mxu0 0.0
    %496 = vmatprep.subr.mxu0 0.0
    %497 = vmatpush1.msra.mxu0 0.0
    %498 = vmatprep.subr.mxu0 0.0
    %499 = vmatpush1.msra.mxu0 0.0
    %500 = vmatprep.subr.mxu0 0.0
    %501 = vmatpush1.msra.mxu0 0.0
    %502 = vmatprep.mubr.f32.mxu0 0.0
    %503 = vmatmul.mubr.f32.gmra.mrb[0].mxu0 %v436
    %v504 = vpop.f32.mrb[0].mxu0
    %v505 = vadd.f32 0.0, %v504
    %v506 = vpop.f32.mrb[0].mxu0
    %507 = vdwg.mxu0
    %508 = vrot.lane.b32.xlu0 %v251, 64
    %v509 = vpop.permute.xlu0 %508
    %v512 = vsel %vm409, %v431, 0
    %514 = vmatprep.subr.mxu0 0.0
    %515 = vmatpush1.msra.mxu0 %v509
    %516 = vmatprep.subr.mxu0 0.0
    %517 = vmatpush1.msra.mxu0 0.0
    %518 = vmatprep.subr.mxu0 0.0
    %519 = vmatpush1.msra.mxu0 0.0
    %520 = vmatprep.subr.mxu0 0.0
    %521 = vmatpush1.msra.mxu0 0.0
    %522 = vmatprep.subr.mxu0 0.0
    %523 = vmatpush1.msra.mxu0 0.0
    %524 = vmatprep.subr.mxu0 0.0
    %525 = vmatpush1.msra.mxu0 0.0
    %526 = vmatprep.subr.mxu0 0.0
    %527 = vmatpush1.msra.mxu0 0.0
    %528 = vmatprep.subr.mxu0 0.0
    %529 = vmatpush1.msra.mxu0 0.0
    %530 = vmatprep.subr.mxu0 0.0
    %531 = vmatpush1.msra.mxu0 0.0
    %532 = vmatprep.subr.mxu0 0.0
    %533 = vmatpush1.msra.mxu0 0.0
    %534 = vmatprep.subr.mxu0 0.0
    %535 = vmatpush1.msra.mxu0 0.0
    %536 = vmatprep.subr.mxu0 0.0
    %537 = vmatpush1.msra.mxu0 0.0
    %538 = vmatprep.subr.mxu0 0.0
    %539 = vmatpush1.msra.mxu0 0.0
    %540 = vmatprep.subr.mxu0 0.0
    %541 = vmatpush1.msra.mxu0 0.0
    %542 = vmatprep.subr.mxu0 0.0
    %543 = vmatpush1.msra.mxu0 0.0
    %544 = vmatprep.subr.mxu0 0.0
    %545 = vmatpush1.msra.mxu0 0.0
    %546 = vmatprep.subr.mxu0 0.0
    %547 = vmatpush1.msra.mxu0 0.0
    %548 = vmatprep.subr.mxu0 0.0
    %549 = vmatpush1.msra.mxu0 0.0
    %550 = vmatprep.subr.mxu0 0.0
    %551 = vmatpush1.msra.mxu0 0.0
    %552 = vmatprep.subr.mxu0 0.0
    %553 = vmatpush1.msra.mxu0 0.0
    %554 = vmatprep.subr.mxu0 0.0
    %555 = vmatpush1.msra.mxu0 0.0
    %556 = vmatprep.subr.mxu0 0.0
    %557 = vmatpush1.msra.mxu0 0.0
    %558 = vmatprep.subr.mxu0 0.0
    %559 = vmatpush1.msra.mxu0 0.0
    %560 = vmatprep.subr.mxu0 0.0
    %561 = vmatpush1.msra.mxu0 0.0
    %562 = vmatprep.subr.mxu0 0.0
    %563 = vmatpush1.msra.mxu0 0.0
    %564 = vmatprep.subr.mxu0 0.0
    %565 = vmatpush1.msra.mxu0 0.0
    %566 = vmatprep.subr.mxu0 0.0
    %567 = vmatpush1.msra.mxu0 0.0
    %568 = vmatprep.subr.mxu0 0.0
    %569 = vmatpush1.msra.mxu0 0.0
    %570 = vmatprep.subr.mxu0 0.0
    %571 = vmatpush1.msra.mxu0 0.0
    %572 = vmatprep.subr.mxu0 0.0
    %573 = vmatpush1.msra.mxu0 0.0
    %574 = vmatprep.subr.mxu0 0.0
    %575 = vmatpush1.msra.mxu0 0.0
    %576 = vmatprep.subr.mxu0 0.0
    %577 = vmatpush1.msra.mxu0 0.0
    %578 = vmatprep.mubr.f32.mxu0 0.0
    %579 = vmatmul.mubr.f32.gmra.mrb[0].mxu0 %v512
    %v580 = vpop.f32.mrb[0].mxu0
    %v581 = vadd.f32 0.0, %v580
    %v582 = vpop.f32.mrb[0].mxu0
    %583 = vdwg.mxu0
    %584 = vrot.lane.b32.xlu0 %v246, 112
    %v585 = vpop.permute.xlu0 %584
    %586 = vrot.lane.b32.xlu0 %v246, 80
    %v587 = vpop.permute.xlu0 %586
    %v588 = vsel %vm257, %v585, 0
    %v590 = vsel %vm257, %v587, 0
    %592 = vmatprep.subr.mxu0 0.0
    %593 = vmatpush1.xpose.msra.mxu0 %v590
    %594 = vmatprep.subr.mxu0 0.0
    %595 = vmatpush1.xpose.msra.mxu0 0.0
    %596 = vmatprep.subr.mxu0 0.0
    %597 = vmatpush1.xpose.msra.mxu0 0.0
    %598 = vmatprep.subr.mxu0 0.0
    %599 = vmatpush1.xpose.msra.mxu0 0.0
    %600 = vmatprep.subr.mxu0 0.0
    %601 = vmatpush1.xpose.msra.mxu0 0.0
    %602 = vmatprep.subr.mxu0 0.0
    %603 = vmatpush1.xpose.msra.mxu0 0.0
    %604 = vmatprep.subr.mxu0 0.0
    %605 = vmatpush1.xpose.msra.mxu0 0.0
    %606 = vmatprep.subr.mxu0 0.0
    %607 = vmatpush1.xpose.msra.mxu0 0.0
    %608 = vmatprep.subr.mxu0 0.0
    %609 = vmatpush1.xpose.msra.mxu0 0.0
    %610 = vmatprep.subr.mxu0 0.0
    %611 = vmatpush1.xpose.msra.mxu0 0.0
    %612 = vmatprep.subr.mxu0 0.0
    %613 = vmatpush1.xpose.msra.mxu0 0.0
    %614 = vmatprep.subr.mxu0 0.0
    %615 = vmatpush1.xpose.msra.mxu0 0.0
    %616 = vmatprep.subr.mxu0 0.0
    %617 = vmatpush1.xpose.msra.mxu0 0.0
    %618 = vmatprep.subr.mxu0 0.0
    %619 = vmatpush1.xpose.msra.mxu0 0.0
    %620 = vmatprep.subr.mxu0 0.0
    %621 = vmatpush1.xpose.msra.mxu0 0.0
    %622 = vmatprep.subr.mxu0 0.0
    %623 = vmatpush1.xpose.msra.mxu0 0.0
    %624 = vmatprep.subr.mxu0 0.0
    %625 = vmatpush1.xpose.msra.mxu0 0.0
    %626 = vmatprep.subr.mxu0 0.0
    %627 = vmatpush1.xpose.msra.mxu0 0.0
    %628 = vmatprep.subr.mxu0 0.0
    %629 = vmatpush1.xpose.msra.mxu0 0.0
    %630 = vmatprep.subr.mxu0 0.0
    %631 = vmatpush1.xpose.msra.mxu0 0.0
    %632 = vmatprep.subr.mxu0 0.0
    %633 = vmatpush1.xpose.msra.mxu0 0.0
    %634 = vmatprep.subr.mxu0 0.0
    %635 = vmatpush1.xpose.msra.mxu0 0.0
    %636 = vmatprep.subr.mxu0 0.0
    %637 = vmatpush1.xpose.msra.mxu0 0.0
    %638 = vmatprep.subr.mxu0 0.0
    %639 = vmatpush1.xpose.msra.mxu0 0.0
    %640 = vmatprep.subr.mxu0 0.0
    %641 = vmatpush1.xpose.msra.mxu0 0.0
    %642 = vmatprep.subr.mxu0 0.0
    %643 = vmatpush1.xpose.msra.mxu0 0.0
    %644 = vmatprep.subr.mxu0 0.0
    %645 = vmatpush1.xpose.msra.mxu0 0.0
    %646 = vmatprep.subr.mxu0 0.0
    %647 = vmatpush1.xpose.msra.mxu0 0.0
    %648 = vmatprep.subr.mxu0 0.0
    %649 = vmatpush1.xpose.msra.mxu0 0.0
    %650 = vmatprep.subr.mxu0 0.0
    %651 = vmatpush1.xpose.msra.mxu0 0.0
    %652 = vmatprep.subr.mxu0 0.0
    %653 = vmatpush1.xpose.msra.mxu0 0.0
    %654 = vmatprep.subr.mxu0 0.0
    %655 = vmatpush1.xpose.msra.mxu0 0.0
    %656 = vmatprep.mubr.f32.mxu0 0.0
    %657 = vmatmul.mubr.f32.gmra.mrb[0].mxu0 %v588
    %v658 = vpop.f32.mrb[0].mxu0
    %v659 = vadd.f32 %v155, %v658
    %v660 = vpop.f32.mrb[0].mxu0
    %661 = vdwg.mxu0
    %662 = vrot.lane.b32.xlu0 %v251, 112
    %v663 = vpop.permute.xlu0 %662
    %664 = vrot.lane.b32.xlu0 %v251, 80
    %v665 = vpop.permute.xlu0 %664
    %v666 = vsel %vm257, %v663, 0
    %v668 = vsel %vm257, %v665, 0
    %670 = vmatprep.subr.mxu0 0.0
    %671 = vmatpush1.xpose.msra.mxu0 %v668
    %672 = vmatprep.subr.mxu0 0.0
    %673 = vmatpush1.xpose.msra.mxu0 0.0
    %674 = vmatprep.subr.mxu0 0.0
    %675 = vmatpush1.xpose.msra.mxu0 0.0
    %676 = vmatprep.subr.mxu0 0.0
    %677 = vmatpush1.xpose.msra.mxu0 0.0
    %678 = vmatprep.subr.mxu0 0.0
    %679 = vmatpush1.xpose.msra.mxu0 0.0
    %680 = vmatprep.subr.mxu0 0.0
    %681 = vmatpush1.xpose.msra.mxu0 0.0
    %682 = vmatprep.subr.mxu0 0.0
    %683 = vmatpush1.xpose.msra.mxu0 0.0
    %684 = vmatprep.subr.mxu0 0.0
    %685 = vmatpush1.xpose.msra.mxu0 0.0
    %686 = vmatprep.subr.mxu0 0.0
    %687 = vmatpush1.xpose.msra.mxu0 0.0
    %688 = vmatprep.subr.mxu0 0.0
    %689 = vmatpush1.xpose.msra.mxu0 0.0
    %690 = vmatprep.subr.mxu0 0.0
    %691 = vmatpush1.xpose.msra.mxu0 0.0
    %692 = vmatprep.subr.mxu0 0.0
    %693 = vmatpush1.xpose.msra.mxu0 0.0
    %694 = vmatprep.subr.mxu0 0.0
    %695 = vmatpush1.xpose.msra.mxu0 0.0
    %696 = vmatprep.subr.mxu0 0.0
    %697 = vmatpush1.xpose.msra.mxu0 0.0
    %698 = vmatprep.subr.mxu0 0.0
    %699 = vmatpush1.xpose.msra.mxu0 0.0
    %700 = vmatprep.subr.mxu0 0.0
    %701 = vmatpush1.xpose.msra.mxu0 0.0
    %702 = vmatprep.subr.mxu0 0.0
    %703 = vmatpush1.xpose.msra.mxu0 0.0
    %704 = vmatprep.subr.mxu0 0.0
    %705 = vmatpush1.xpose.msra.mxu0 0.0
    %706 = vmatprep.subr.mxu0 0.0
    %707 = vmatpush1.xpose.msra.mxu0 0.0
    %708 = vmatprep.subr.mxu0 0.0
    %709 = vmatpush1.xpose.msra.mxu0 0.0
    %710 = vmatprep.subr.mxu0 0.0
    %711 = vmatpush1.xpose.msra.mxu0 0.0
    %712 = vmatprep.subr.mxu0 0.0
    %713 = vmatpush1.xpose.msra.mxu0 0.0
    %714 = vmatprep.subr.mxu0 0.0
    %715 = vmatpush1.xpose.msra.mxu0 0.0
    %716 = vmatprep.subr.mxu0 0.0
    %717 = vmatpush1.xpose.msra.mxu0 0.0
    %718 = vmatprep.subr.mxu0 0.0
    %719 = vmatpush1.xpose.msra.mxu0 0.0
    %720 = vmatprep.subr.mxu0 0.0
    %721 = vmatpush1.xpose.msra.mxu0 0.0
    %722 = vmatprep.subr.mxu0 0.0
    %723 = vmatpush1.xpose.msra.mxu0 0.0
    %724 = vmatprep.subr.mxu0 0.0
    %725 = vmatpush1.xpose.msra.mxu0 0.0
    %726 = vmatprep.subr.mxu0 0.0
    %727 = vmatpush1.xpose.msra.mxu0 0.0
    %728 = vmatprep.subr.mxu0 0.0
    %729 = vmatpush1.xpose.msra.mxu0 0.0
    %730 = vmatprep.subr.mxu0 0.0
    %731 = vmatpush1.xpose.msra.mxu0 0.0
    %732 = vmatprep.subr.mxu0 0.0
    %733 = vmatpush1.xpose.msra.mxu0 0.0
    %734 = vmatprep.mubr.f32.mxu0 0.0
    %735 = vmatmul.mubr.f32.gmra.mrb[0].mxu0 %v666
    %v736 = vpop.f32.mrb[0].mxu0
    %v737 = vadd.f32 %v159, %v736
    %v738 = vpop.f32.mrb[0].mxu0
    %739 = vdwg.mxu0
    %v740 = vsel %vm409, %v659, -inf
    %741 = vmax.xlane.f32.xlu0 %v740
    %v742 = vpop.xlane.xlu0 %741
    %v743 = vsel %vm409, %v737, -inf
    %744 = vmax.xlane.f32.xlu0 %v743
    %v745 = vpop.xlane.xlu0 %744
    %v746 = vsub.f32 %v659, %v742
    %v747 = vsub.f32 %v737, %v745
    %v748 = vmul.f32 %v746, 1.442695
    %v749 = vpow.pop %v748
    %v750 = vmul.f32 %v747, 1.442695
    %v751 = vpow.pop %v750
    %v752 = vsel %vm409, %v749, 0.0
    %753 = vadd.xlane.f32.xlu0 %v752
    %v754 = vpop.xlane.xlu0 %753
    %v755 = vsel %vm409, %v751, 0.0
    %756 = vadd.xlane.f32.xlu0 %v755
    %v757 = vpop.xlane.xlu0 %756
    %v758 = vrcp.pop %v754
    %v759 = vrcp.pop %v757
    %v760 = vmul.f32 %v749, %v758
    %v761 = vmul.f32 %v751, %v759
    %762 = vrot.lane.b32.xlu0 %v246, 48
    %v763 = vpop.permute.xlu0 %762
    %v766 = vsel %vm409, %v760, 0
    %768 = vmatprep.subr.mxu0 0.0
    %769 = vmatpush1.msra.mxu0 %v763
    %770 = vmatprep.subr.mxu0 0.0
    %771 = vmatpush1.msra.mxu0 0.0
    %772 = vmatprep.subr.mxu0 0.0
    %773 = vmatpush1.msra.mxu0 0.0
    %774 = vmatprep.subr.mxu0 0.0
    %775 = vmatpush1.msra.mxu0 0.0
    %776 = vmatprep.subr.mxu0 0.0
    %777 = vmatpush1.msra.mxu0 0.0
    %778 = vmatprep.subr.mxu0 0.0
    %779 = vmatpush1.msra.mxu0 0.0
    %780 = vmatprep.subr.mxu0 0.0
    %781 = vmatpush1.msra.mxu0 0.0
    %782 = vmatprep.subr.mxu0 0.0
    %783 = vmatpush1.msra.mxu0 0.0
    %784 = vmatprep.subr.mxu0 0.0
    %785 = vmatpush1.msra.mxu0 0.0
    %786 = vmatprep.subr.mxu0 0.0
    %787 = vmatpush1.msra.mxu0 0.0
    %788 = vmatprep.subr.mxu0 0.0
    %789 = vmatpush1.msra.mxu0 0.0
    %790 = vmatprep.subr.mxu0 0.0
    %791 = vmatpush1.msra.mxu0 0.0
    %792 = vmatprep.subr.mxu0 0.0
    %793 = vmatpush1.msra.mxu0 0.0
    %794 = vmatprep.subr.mxu0 0.0
    %795 = vmatpush1.msra.mxu0 0.0
    %796 = vmatprep.subr.mxu0 0.0
    %797 = vmatpush1.msra.mxu0 0.0
    %798 = vmatprep.subr.mxu0 0.0
    %799 = vmatpush1.msra.mxu0 0.0
    %800 = vmatprep.subr.mxu0 0.0
    %801 = vmatpush1.msra.mxu0 0.0
    %802 = vmatprep.subr.mxu0 0.0
    %803 = vmatpush1.msra.mxu0 0.0
    %804 = vmatprep.subr.mxu0 0.0
    %805 = vmatpush1.msra.mxu0 0.0
    %806 = vmatprep.subr.mxu0 0.0
    %807 = vmatpush1.msra.mxu0 0.0
    %808 = vmatprep.subr.mxu0 0.0
    %809 = vmatpush1.msra.mxu0 0.0
    %810 = vmatprep.subr.mxu0 0.0
    %811 = vmatpush1.msra.mxu0 0.0
    %812 = vmatprep.subr.mxu0 0.0
    %813 = vmatpush1.msra.mxu0 0.0
    %814 = vmatprep.subr.mxu0 0.0
    %815 = vmatpush1.msra.mxu0 0.0
    %816 = vmatprep.subr.mxu0 0.0
    %817 = vmatpush1.msra.mxu0 0.0
    %818 = vmatprep.subr.mxu0 0.0
    %819 = vmatpush1.msra.mxu0 0.0
    %820 = vmatprep.subr.mxu0 0.0
    %821 = vmatpush1.msra.mxu0 0.0
    %822 = vmatprep.subr.mxu0 0.0
    %823 = vmatpush1.msra.mxu0 0.0
    %824 = vmatprep.subr.mxu0 0.0
    %825 = vmatpush1.msra.mxu0 0.0
    %826 = vmatprep.subr.mxu0 0.0
    %827 = vmatpush1.msra.mxu0 0.0
    %828 = vmatprep.subr.mxu0 0.0
    %829 = vmatpush1.msra.mxu0 0.0
    %830 = vmatprep.subr.mxu0 0.0
    %831 = vmatpush1.msra.mxu0 0.0
    %832 = vmatprep.mubr.f32.mxu0 0.0
    %833 = vmatmul.mubr.f32.gmra.mrb[0].mxu0 %v766
    %v834 = vpop.f32.mrb[0].mxu0
    %v835 = vadd.f32 0.0, %v834
    %v836 = vpop.f32.mrb[0].mxu0
    %837 = vdwg.mxu0
    %838 = vrot.lane.b32.xlu0 %v251, 48
    %v839 = vpop.permute.xlu0 %838
    %v842 = vsel %vm409, %v761, 0
    %844 = vmatprep.subr.mxu0 0.0
    %845 = vmatpush1.msra.mxu0 %v839
    %846 = vmatprep.subr.mxu0 0.0
    %847 = vmatpush1.msra.mxu0 0.0
    %848 = vmatprep.subr.mxu0 0.0
    %849 = vmatpush1.msra.mxu0 0.0
    %850 = vmatprep.subr.mxu0 0.0
    %851 = vmatpush1.msra.mxu0 0.0
    %852 = vmatprep.subr.mxu0 0.0
    %853 = vmatpush1.msra.mxu0 0.0
    %854 = vmatprep.subr.mxu0 0.0
    %855 = vmatpush1.msra.mxu0 0.0
    %856 = vmatprep.subr.mxu0 0.0
    %857 = vmatpush1.msra.mxu0 0.0
    %858 = vmatprep.subr.mxu0 0.0
    %859 = vmatpush1.msra.mxu0 0.0
    %860 = vmatprep.subr.mxu0 0.0
    %861 = vmatpush1.msra.mxu0 0.0
    %862 = vmatprep.subr.mxu0 0.0
    %863 = vmatpush1.msra.mxu0 0.0
    %864 = vmatprep.subr.mxu0 0.0
    %865 = vmatpush1.msra.mxu0 0.0
    %866 = vmatprep.subr.mxu0 0.0
    %867 = vmatpush1.msra.mxu0 0.0
    %868 = vmatprep.subr.mxu0 0.0
    %869 = vmatpush1.msra.mxu0 0.0
    %870 = vmatprep.subr.mxu0 0.0
    %871 = vmatpush1.msra.mxu0 0.0
    %872 = vmatprep.subr.mxu0 0.0
    %873 = vmatpush1.msra.mxu0 0.0
    %874 = vmatprep.subr.mxu0 0.0
    %875 = vmatpush1.msra.mxu0 0.0
    %876 = vmatprep.subr.mxu0 0.0
    %877 = vmatpush1.msra.mxu0 0.0
    %878 = vmatprep.subr.mxu0 0.0
    %879 = vmatpush1.msra.mxu0 0.0
    %880 = vmatprep.subr.mxu0 0.0
    %881 = vmatpush1.msra.mxu0 0.0
    %882 = vmatprep.subr.mxu0 0.0
    %883 = vmatpush1.msra.mxu0 0.0
    %884 = vmatprep.subr.mxu0 0.0
    %885 = vmatpush1.msra.mxu0 0.0
    %886 = vmatprep.subr.mxu0 0.0
    %887 = vmatpush1.msra.mxu0 0.0
    %888 = vmatprep.subr.mxu0 0.0
    %889 = vmatpush1.msra.mxu0 0.0
    %890 = vmatprep.subr.mxu0 0.0
    %891 = vmatpush1.msra.mxu0 0.0
    %892 = vmatprep.subr.mxu0 0.0
    %893 = vmatpush1.msra.mxu0 0.0
    %894 = vmatprep.subr.mxu0 0.0
    %895 = vmatpush1.msra.mxu0 0.0
    %896 = vmatprep.subr.mxu0 0.0
    %897 = vmatpush1.msra.mxu0 0.0
    %898 = vmatprep.subr.mxu0 0.0
    %899 = vmatpush1.msra.mxu0 0.0
    %900 = vmatprep.subr.mxu0 0.0
    %901 = vmatpush1.msra.mxu0 0.0
    %902 = vmatprep.subr.mxu0 0.0
    %903 = vmatpush1.msra.mxu0 0.0
    %904 = vmatprep.subr.mxu0 0.0
    %905 = vmatpush1.msra.mxu0 0.0
    %906 = vmatprep.subr.mxu0 0.0
    %907 = vmatpush1.msra.mxu0 0.0
    %908 = vmatprep.mubr.f32.mxu0 0.0
    %909 = vmatmul.mubr.f32.gmra.mrb[0].mxu0 %v842
    %v910 = vpop.f32.mrb[0].mxu0
    %v911 = vadd.f32 0.0, %v910
    %v912 = vpop.f32.mrb[0].mxu0
    %913 = vdwg.mxu0
    %916 = vrot.lane.b32.xlu0 %v835, 16
    %v917 = vpop.permute.xlu0 %916
    %918 = vrot.lane.b32.xlu0 %v911, 16
    %v919 = vpop.permute.xlu0 %918
    %v922 = vsel %vm257, %v505, %v917
    %v923 = vsel %vm257, %v581, %v919
    %v924 = vld [vmem:[%s6] sm:$0xff]
    %v925 = vld [vmem:[%s6 + $0x8] sm:$0xff]
    %v926 = vld [vmem:[%s6 + $0x10] sm:$0xff]
    %v927 = vld [vmem:[%s6 + $0x18] sm:$0xff]
    %v928 = vld [vmem:[%s7] sm:$0x1]
    %v930 = vlaneseq
    %v931 = vshrl.u32 %v930, 7
    %v932 = vsub.s32 0, %v931
    %v933 = vrot.slane %v928, %v932
    %v936 = vsel %vm78, %v922, 0
    %v939 = vsel %vm78, %v923, 0
    %941 = vmatprep.subr.mxu0 0.0
    %942 = vmatpush1.msra.mxu0 %v924
    %943 = vmatprep.subr.mxu0 0.0
    %944 = vmatpush1.msra.mxu0 %v925
    %945 = vmatprep.subr.mxu0 0.0
    %946 = vmatpush1.msra.mxu0 %v926
    %947 = vmatprep.subr.mxu0 0.0
    %948 = vmatpush1.msra.mxu0 %v927
    %949 = vmatprep.subr.mxu0 0.0
    %950 = vmatpush1.msra.mxu0 0.0
    %951 = vmatprep.subr.mxu0 0.0
    %952 = vmatpush1.msra.mxu0 0.0
    %953 = vmatprep.subr.mxu0 0.0
    %954 = vmatpush1.msra.mxu0 0.0
    %955 = vmatprep.subr.mxu0 0.0
    %956 = vmatpush1.msra.mxu0 0.0
    %957 = vmatprep.subr.mxu0 0.0
    %958 = vmatpush1.msra.mxu0 0.0
    %959 = vmatprep.subr.mxu0 0.0
    %960 = vmatpush1.msra.mxu0 0.0
    %961 = vmatprep.subr.mxu0 0.0
    %962 = vmatpush1.msra.mxu0 0.0
    %963 = vmatprep.subr.mxu0 0.0
    %964 = vmatpush1.msra.mxu0 0.0
    %965 = vmatprep.subr.mxu0 0.0
    %966 = vmatpush1.msra.mxu0 0.0
    %967 = vmatprep.subr.mxu0 0.0
    %968 = vmatpush1.msra.mxu0 0.0
    %969 = vmatprep.subr.mxu0 0.0
    %970 = vmatpush1.msra.mxu0 0.0
    %971 = vmatprep.subr.mxu0 0.0
    %972 = vmatpush1.msra.mxu0 0.0
    %973 = vmatprep.subr.mxu0 0.0
    %974 = vmatpush1.msra.mxu0 0.0
    %975 = vmatprep.subr.mxu0 0.0
    %976 = vmatpush1.msra.mxu0 0.0
    %977 = vmatprep.subr.mxu0 0.0
    %978 = vmatpush1.msra.mxu0 0.0
    %979 = vmatprep.subr.mxu0 0.0
    %980 = vmatpush1.msra.mxu0 0.0
    %981 = vmatprep.subr.mxu0 0.0
    %982 = vmatpush1.msra.mxu0 0.0
    %983 = vmatprep.subr.mxu0 0.0
    %984 = vmatpush1.msra.mxu0 0.0
    %985 = vmatprep.subr.mxu0 0.0
    %986 = vmatpush1.msra.mxu0 0.0
    %987 = vmatprep.subr.mxu0 0.0
    %988 = vmatpush1.msra.mxu0 0.0
    %989 = vmatprep.subr.mxu0 0.0
    %990 = vmatpush1.msra.mxu0 0.0
    %991 = vmatprep.subr.mxu0 0.0
    %992 = vmatpush1.msra.mxu0 0.0
    %993 = vmatprep.subr.mxu0 0.0
    %994 = vmatpush1.msra.mxu0 0.0
    %995 = vmatprep.subr.mxu0 0.0
    %996 = vmatpush1.msra.mxu0 0.0
    %997 = vmatprep.subr.mxu0 0.0
    %998 = vmatpush1.msra.mxu0 0.0
    %999 = vmatprep.subr.mxu0 0.0
    %1000 = vmatpush1.msra.mxu0 0.0
    %1001 = vmatprep.subr.mxu0 0.0
    %1002 = vmatpush1.msra.mxu0 0.0
    %1003 = vmatprep.subr.mxu0 0.0
    %1004 = vmatpush1.msra.mxu0 0.0
    %1005 = vmatprep.mubr.f32.mxu0 0.0
    %1006 = vmatmul.mubr.f32.gmra.mrb[0].mxu0 %v936
    %v1007 = vpop.f32.mrb[0].mxu0
    %v1008 = vadd.f32 %v933, %v1007
    %v1009 = vpop.f32.mrb[0].mxu0
    %1010 = vmatprep.mubr.f32.mxu0 0.0
    %1011 = vmatmul.mubr.f32.gmra.mrb[0].mxu0 %v939
    %v1012 = vpop.f32.mrb[0].mxu0
    %v1013 = vadd.f32 %v933, %v1012
    %v1014 = vpop.f32.mrb[0].mxu0
    %1015 = vdwg.mxu0
    %v1016 = vadd.f32 %v1008, %v126
    %v1017 = vadd.f32 %v1013, %v127
    %v1018 = vld [vmem:[%s8] sm:$0x1]
    %v1019 = vld [vmem:[%s9] sm:$0x1]
    %v1020 = vsel %vm78, %v1016, 0.0
    %1021 = vadd.xlane.f32.xlu0 %v1020
    %v1022 = vpop.xlane.xlu0 %1021
    %v1023 = vsel %vm78, %v1017, 0.0
    %1024 = vadd.xlane.f32.xlu0 %v1023
    %v1025 = vpop.xlane.xlu0 %1024
    %v1026 = vmul.f32 %v1022, %v85
    %v1027 = vmul.f32 %v1025, %v85
    %v1028 = vmul.f32 %v1016, %v1016
    %v1029 = vmul.f32 %v1017, %v1017
    %v1030 = vsel %vm78, %v1028, 0.0
    %1031 = vadd.xlane.f32.xlu0 %v1030
    %v1032 = vpop.xlane.xlu0 %1031
    %v1033 = vsel %vm78, %v1029, 0.0
    %1034 = vadd.xlane.f32.xlu0 %v1033
    %v1035 = vpop.xlane.xlu0 %1034
    %v1036 = vmul.f32 %v1032, %v85
    %v1037 = vmul.f32 %v1035, %v85
    %v1038 = vmul.f32 %v1026, %v1026
    %v1039 = vmul.f32 %v1027, %v1027
    %v1040 = vsub.f32 %v1036, %v1038
    %v1041 = vsub.f32 %v1037, %v1039
    %v1042 = vmax.f32 %v1040, 0.0
    %v1043 = vmax.f32 %v1041, 0.0
    %v1044 = vsub.f32 %v1016, %v1026
    %v1045 = vsub.f32 %v1017, %v1027
    %v1046 = vadd.f32 %v1042, 1e-12
    %v1047 = vadd.f32 %v1043, 1e-12
    %v1048 = vrsqrt.pop %v1046
    %v1049 = vrsqrt.pop %v1047
    %v1050 = vmul.f32 %v1044, %v1048
    %v1051 = vmul.f32 %v1045, %v1049
    %v1053 = vlaneseq
    %v1054 = vshrl.u32 %v1053, 7
    %v1055 = vsub.s32 0, %v1054
    %v1056 = vrot.slane %v1018, %v1055
    %v1058 = vmul.f32 %v1050, %v1056
    %v1059 = vmul.f32 %v1051, %v1056
    %v1061 = vlaneseq
    %v1062 = vshrl.u32 %v1061, 7
    %v1063 = vsub.s32 0, %v1062
    %v1064 = vrot.slane %v1019, %v1063
    %v1066 = vadd.f32 %v1058, %v1064
    %v1067 = vadd.f32 %v1059, %v1064
    %v1068 = vld [vmem:[%s10] sm:$0xff]
    %v1069 = vld [vmem:[%s10 + $0x8] sm:$0xff]
    %v1070 = vld [vmem:[%s10 + $0x10] sm:$0xff]
    %v1071 = vld [vmem:[%s10 + $0x18] sm:$0xff]
    %v1072 = vld [vmem:[%s11] sm:$0x1]
    %v1074 = vlaneseq
    %v1075 = vshrl.u32 %v1074, 7
    %v1076 = vsub.s32 0, %v1075
    %v1077 = vrot.slane %v1072, %v1076
    %v1080 = vsel %vm78, %v1066, 0
    %v1083 = vsel %vm78, %v1067, 0
    %1085 = vmatprep.subr.mxu0 0.0
    %1086 = vmatpush1.msra.mxu0 %v1068
    %1087 = vmatprep.subr.mxu0 0.0
    %1088 = vmatpush1.msra.mxu0 %v1069
    %1089 = vmatprep.subr.mxu0 0.0
    %1090 = vmatpush1.msra.mxu0 %v1070
    %1091 = vmatprep.subr.mxu0 0.0
    %1092 = vmatpush1.msra.mxu0 %v1071
    %1093 = vmatprep.subr.mxu0 0.0
    %1094 = vmatpush1.msra.mxu0 0.0
    %1095 = vmatprep.subr.mxu0 0.0
    %1096 = vmatpush1.msra.mxu0 0.0
    %1097 = vmatprep.subr.mxu0 0.0
    %1098 = vmatpush1.msra.mxu0 0.0
    %1099 = vmatprep.subr.mxu0 0.0
    %1100 = vmatpush1.msra.mxu0 0.0
    %1101 = vmatprep.subr.mxu0 0.0
    %1102 = vmatpush1.msra.mxu0 0.0
    %1103 = vmatprep.subr.mxu0 0.0
    %1104 = vmatpush1.msra.mxu0 0.0
    %1105 = vmatprep.subr.mxu0 0.0
    %1106 = vmatpush1.msra.mxu0 0.0
    %1107 = vmatprep.subr.mxu0 0.0
    %1108 = vmatpush1.msra.mxu0 0.0
    %1109 = vmatprep.subr.mxu0 0.0
    %1110 = vmatpush1.msra.mxu0 0.0
    %1111 = vmatprep.subr.mxu0 0.0
    %1112 = vmatpush1.msra.mxu0 0.0
    %1113 = vmatprep.subr.mxu0 0.0
    %1114 = vmatpush1.msra.mxu0 0.0
    %1115 = vmatprep.subr.mxu0 0.0
    %1116 = vmatpush1.msra.mxu0 0.0
    %1117 = vmatprep.subr.mxu0 0.0
    %1118 = vmatpush1.msra.mxu0 0.0
    %1119 = vmatprep.subr.mxu0 0.0
    %1120 = vmatpush1.msra.mxu0 0.0
    %1121 = vmatprep.subr.mxu0 0.0
    %1122 = vmatpush1.msra.mxu0 0.0
    %1123 = vmatprep.subr.mxu0 0.0
    %1124 = vmatpush1.msra.mxu0 0.0
    %1125 = vmatprep.subr.mxu0 0.0
    %1126 = vmatpush1.msra.mxu0 0.0
    %1127 = vmatprep.subr.mxu0 0.0
    %1128 = vmatpush1.msra.mxu0 0.0
    %1129 = vmatprep.subr.mxu0 0.0
    %1130 = vmatpush1.msra.mxu0 0.0
    %1131 = vmatprep.subr.mxu0 0.0
    %1132 = vmatpush1.msra.mxu0 0.0
    %1133 = vmatprep.subr.mxu0 0.0
    %1134 = vmatpush1.msra.mxu0 0.0
    %1135 = vmatprep.subr.mxu0 0.0
    %1136 = vmatpush1.msra.mxu0 0.0
    %1137 = vmatprep.subr.mxu0 0.0
    %1138 = vmatpush1.msra.mxu0 0.0
    %1139 = vmatprep.subr.mxu0 0.0
    %1140 = vmatpush1.msra.mxu0 0.0
    %1141 = vmatprep.subr.mxu0 0.0
    %1142 = vmatpush1.msra.mxu0 0.0
    %1143 = vmatprep.subr.mxu0 0.0
    %1144 = vmatpush1.msra.mxu0 0.0
    %1145 = vmatprep.subr.mxu0 0.0
    %1146 = vmatpush1.msra.mxu0 0.0
    %1147 = vmatprep.subr.mxu0 0.0
    %1148 = vmatpush1.msra.mxu0 0.0
    %1149 = vmatprep.mubr.f32.mxu0 0.0
    %1150 = vmatmul.mubr.f32.gmra.mrb[0].mxu0 %v1080
    %v1151 = vpop.f32.mrb[0].mxu0
    %v1152 = vadd.f32 %v1077, %v1151
    %v1153 = vpop.f32.mrb[0].mxu0
    %1154 = vmatprep.mubr.f32.mxu0 0.0
    %1155 = vmatmul.mubr.f32.gmra.mrb[0].mxu0 %v1083
    %v1156 = vpop.f32.mrb[0].mxu0
    %v1157 = vadd.f32 %v1077, %v1156
    %v1158 = vpop.f32.mrb[0].mxu0
    %1159 = vdwg.mxu0
    %v1160 = vmul.f32 %v1152, %v1152
    %v1161 = vmul.f32 %v1157, %v1157
    %v1162 = vmul.f32 %v1152, %v1160
    %v1163 = vmul.f32 %v1157, %v1161
    %v1164 = vmul.f32 %v1162, 0.044715
    %v1165 = vmul.f32 %v1163, 0.044715
    %v1166 = vadd.f32 %v1152, %v1164
    %v1167 = vadd.f32 %v1157, %v1165
    %v1168 = vmul.f32 %v1166, 0.7978846
    %v1169 = vmul.f32 %v1167, 0.7978846
    %v1170 = vtanh.pop %v1168
    %v1171 = vtanh.pop %v1169
    %v1172 = vadd.f32 %v1170, 1.0
    %v1173 = vadd.f32 %v1171, 1.0
    %v1174 = vmul.f32 %v1172, 0.5
    %v1175 = vmul.f32 %v1173, 0.5
    %v1176 = vmul.f32 %v1152, %v1174
    %v1177 = vmul.f32 %v1157, %v1175
    %v1178 = vld [vmem:[%s12] sm:$0xff]
    %v1179 = vld [vmem:[%s12 + $0x8] sm:$0xff]
    %v1180 = vld [vmem:[%s12 + $0x10] sm:$0xff]
    %v1181 = vld [vmem:[%s12 + $0x18] sm:$0xff]
    %v1182 = vld [vmem:[%s12 + $0x20] sm:$0xff]
    %v1183 = vld [vmem:[%s12 + $0x28] sm:$0xff]
    %v1184 = vld [vmem:[%s12 + $0x30] sm:$0xff]
    %v1185 = vld [vmem:[%s12 + $0x38] sm:$0xff]
    %v1186 = vld [vmem:[%s13] sm:$0x1]
    %v1188 = vlaneseq
    %v1189 = vshrl.u32 %v1188, 7
    %v1190 = vsub.s32 0, %v1189
    %v1191 = vrot.slane %v1186, %v1190
    %vm1193 = vcmask 523264
    %v1195 = vsel %vm1193, %v1176, 0
    %v1198 = vsel %vm1193, %v1177, 0
    %1200 = vmatprep.subr.mxu0 0.0
    %1201 = vmatpush1.msra.mxu0 %v1178
    %1202 = vmatprep.subr.mxu0 0.0
    %1203 = vmatpush1.msra.mxu0 %v1179
    %1204 = vmatprep.subr.mxu0 0.0
    %1205 = vmatpush1.msra.mxu0 %v1180
    %1206 = vmatprep.subr.mxu0 0.0
    %1207 = vmatpush1.msra.mxu0 %v1181
    %1208 = vmatprep.subr.mxu0 0.0
    %1209 = vmatpush1.msra.mxu0 %v1182
    %1210 = vmatprep.subr.mxu0 0.0
    %1211 = vmatpush1.msra.mxu0 %v1183
    %1212 = vmatprep.subr.mxu0 0.0
    %1213 = vmatpush1.msra.mxu0 %v1184
    %1214 = vmatprep.subr.mxu0 0.0
    %1215 = vmatpush1.msra.mxu0 %v1185
    %1216 = vmatprep.subr.mxu0 0.0
    %1217 = vmatpush1.msra.mxu0 0.0
    %1218 = vmatprep.subr.mxu0 0.0
    %1219 = vmatpush1.msra.mxu0 0.0
    %1220 = vmatprep.subr.mxu0 0.0
    %1221 = vmatpush1.msra.mxu0 0.0
    %1222 = vmatprep.subr.mxu0 0.0
    %1223 = vmatpush1.msra.mxu0 0.0
    %1224 = vmatprep.subr.mxu0 0.0
    %1225 = vmatpush1.msra.mxu0 0.0
    %1226 = vmatprep.subr.mxu0 0.0
    %1227 = vmatpush1.msra.mxu0 0.0
    %1228 = vmatprep.subr.mxu0 0.0
    %1229 = vmatpush1.msra.mxu0 0.0
    %1230 = vmatprep.subr.mxu0 0.0
    %1231 = vmatpush1.msra.mxu0 0.0
    %1232 = vmatprep.subr.mxu0 0.0
    %1233 = vmatpush1.msra.mxu0 0.0
    %1234 = vmatprep.subr.mxu0 0.0
    %1235 = vmatpush1.msra.mxu0 0.0
    %1236 = vmatprep.subr.mxu0 0.0
    %1237 = vmatpush1.msra.mxu0 0.0
    %1238 = vmatprep.subr.mxu0 0.0
    %1239 = vmatpush1.msra.mxu0 0.0
    %1240 = vmatprep.subr.mxu0 0.0
    %1241 = vmatpush1.msra.mxu0 0.0
    %1242 = vmatprep.subr.mxu0 0.0
    %1243 = vmatpush1.msra.mxu0 0.0
    %1244 = vmatprep.subr.mxu0 0.0
    %1245 = vmatpush1.msra.mxu0 0.0
    %1246 = vmatprep.subr.mxu0 0.0
    %1247 = vmatpush1.msra.mxu0 0.0
    %1248 = vmatprep.subr.mxu0 0.0
    %1249 = vmatpush1.msra.mxu0 0.0
    %1250 = vmatprep.subr.mxu0 0.0
    %1251 = vmatpush1.msra.mxu0 0.0
    %1252 = vmatprep.subr.mxu0 0.0
    %1253 = vmatpush1.msra.mxu0 0.0
    %1254 = vmatprep.subr.mxu0 0.0
    %1255 = vmatpush1.msra.mxu0 0.0
    %1256 = vmatprep.subr.mxu0 0.0
    %1257 = vmatpush1.msra.mxu0 0.0
    %1258 = vmatprep.subr.mxu0 0.0
    %1259 = vmatpush1.msra.mxu0 0.0
    %1260 = vmatprep.subr.mxu0 0.0
    %1261 = vmatpush1.msra.mxu0 0.0
    %1262 = vmatprep.subr.mxu0 0.0
    %1263 = vmatpush1.msra.mxu0 0.0
    %1264 = vmatprep.mubr.f32.mxu0 0.0
    %1265 = vmatmul.mubr.f32.gmra.mrb[0].mxu0 %v1195
    %v1266 = vpop.f32.mrb[0].mxu0
    %v1267 = vadd.f32 %v1191, %v1266
    %v1268 = vpop.f32.mrb[0].mxu0
    %1269 = vmatprep.mubr.f32.mxu0 0.0
    %1270 = vmatmul.mubr.f32.gmra.mrb[0].mxu0 %v1198
    %v1271 = vpop.f32.mrb[0].mxu0
    %v1272 = vadd.f32 %v1191, %v1271
    %v1273 = vpop.f32.mrb[0].mxu0
    %1274 = vdwg.mxu0
    %v1275 = vadd.f32 %v1267, %v1066
    %v1276 = vadd.f32 %v1272, %v1067
    %v1277 = vld [vmem:[%s14] sm:$0x1]
    %v1278 = vld [vmem:[%s15] sm:$0x1]
    %v1279 = vsel %vm78, %v1275, 0.0
    %1280 = vadd.xlane.f32.xlu0 %v1279
    %v1281 = vpop.xlane.xlu0 %1280
    %v1282 = vsel %vm78, %v1276, 0.0
    %1283 = vadd.xlane.f32.xlu0 %v1282
    %v1284 = vpop.xlane.xlu0 %1283
    %v1285 = vmul.f32 %v1281, %v85
    %v1286 = vmul.f32 %v1284, %v85
    %v1287 = vmul.f32 %v1275, %v1275
    %v1288 = vmul.f32 %v1276, %v1276
    %v1289 = vsel %vm78, %v1287, 0.0
    %1290 = vadd.xlane.f32.xlu0 %v1289
    %v1291 = vpop.xlane.xlu0 %1290
    %v1292 = vsel %vm78, %v1288, 0.0
    %1293 = vadd.xlane.f32.xlu0 %v1292
    %v1294 = vpop.xlane.xlu0 %1293
    %v1295 = vmul.f32 %v1291, %v85
    %v1296 = vmul.f32 %v1294, %v85
    %v1297 = vmul.f32 %v1285, %v1285
    %v1298 = vmul.f32 %v1286, %v1286
    %v1299 = vsub.f32 %v1295, %v1297
    %v1300 = vsub.f32 %v1296, %v1298
    %v1301 = vmax.f32 %v1299, 0.0
    %v1302 = vmax.f32 %v1300, 0.0
    %v1303 = vsub.f32 %v1275, %v1285
    %v1304 = vsub.f32 %v1276, %v1286
    %v1305 = vadd.f32 %v1301, 1e-12
    %v1306 = vadd.f32 %v1302, 1e-12
    %v1307 = vrsqrt.pop %v1305
    %v1308 = vrsqrt.pop %v1306
    %v1309 = vmul.f32 %v1303, %v1307
    %v1310 = vmul.f32 %v1304, %v1308
    %v1312 = vlaneseq
    %v1313 = vshrl.u32 %v1312, 7
    %v1314 = vsub.s32 0, %v1313
    %v1315 = vrot.slane %v1277, %v1314
    %v1317 = vmul.f32 %v1309, %v1315
    %v1318 = vmul.f32 %v1310, %v1315
    %v1320 = vlaneseq
    %v1321 = vshrl.u32 %v1320, 7
    %v1322 = vsub.s32 0, %v1321
    %v1323 = vrot.slane %v1278, %v1322
    %v1325 = vadd.f32 %v1317, %v1323
    %v1326 = vadd.f32 %v1318, %v1323
    %s1327 = scalar_lea.vmem %s4, 32
    %v1328 = vld [vmem:[%s1327] sm:$0xff]
    %v1329 = vld [vmem:[%s1327 + $0x8] sm:$0xff]
    %v1330 = vld [vmem:[%s1327 + $0x10] sm:$0xff]
    %v1331 = vld [vmem:[%s1327 + $0x18] sm:$0xff]
    %s1332 = scalar_lea.vmem %s5, 1
    %v1333 = vld [vmem:[%s1332] sm:$0x1]
    %v1335 = vlaneseq
    %v1336 = vshrl.u32 %v1335, 7
    %v1337 = vsub.s32 0, %v1336
    %v1338 = vrot.slane %v1333, %v1337
    %v1341 = vsel %vm78, %v1325, 0
    %v1344 = vsel %vm78, %v1326, 0
    %1346 = vmatprep.subr.mxu0 0.0
    %1347 = vmatpush1.msra.mxu0 %v1328
    %1348 = vmatprep.subr.mxu0 0.0
    %1349 = vmatpush1.msra.mxu0 %v1329
    %1350 = vmatprep.subr.mxu0 0.0
    %1351 = vmatpush1.msra.mxu0 %v1330
    %1352 = vmatprep.subr.mxu0 0.0
    %1353 = vmatpush1.msra.mxu0 %v1331
    %1354 = vmatprep.subr.mxu0 0.0
    %1355 = vmatpush1.msra.mxu0 0.0
    %1356 = vmatprep.subr.mxu0 0.0
    %1357 = vmatpush1.msra.mxu0 0.0
    %1358 = vmatprep.subr.mxu0 0.0
    %1359 = vmatpush1.msra.mxu0 0.0
    %1360 = vmatprep.subr.mxu0 0.0
    %1361 = vmatpush1.msra.mxu0 0.0
    %1362 = vmatprep.subr.mxu0 0.0
    %1363 = vmatpush1.msra.mxu0 0.0
    %1364 = vmatprep.subr.mxu0 0.0
    %1365 = vmatpush1.msra.mxu0 0.0
    %1366 = vmatprep.subr.mxu0 0.0
    %1367 = vmatpush1.msra.mxu0 0.0
    %1368 = vmatprep.subr.mxu0 0.0
    %1369 = vmatpush1.msra.mxu0 0.0
    %1370 = vmatprep.subr.mxu0 0.0
    %1371 = vmatpush1.msra.mxu0 0.0
    %1372 = vmatprep.subr.mxu0 0.0
    %1373 = vmatpush1.msra.mxu0 0.0
    %1374 = vmatprep.subr.mxu0 0.0
    %1375 = vmatpush1.msra.mxu0 0.0
    %1376 = vmatprep.subr.mxu0 0.0
    %1377 = vmatpush1.msra.mxu0 0.0
    %1378 = vmatprep.subr.mxu0 0.0
    %1379 = vmatpush1.msra.mxu0 0.0
    %1380 = vmatprep.subr.mxu0 0.0
    %1381 = vmatpush1.msra.mxu0 0.0
    %1382 = vmatprep.subr.mxu0 0.0
    %1383 = vmatpush1.msra.mxu0 0.0
    %1384 = vmatprep.subr.mxu0 0.0
    %1385 = vmatpush1.msra.mxu0 0.0
    %1386 = vmatprep.subr.mxu0 0.0
    %1387 = vmatpush1.msra.mxu0 0.0
    %1388 = vmatprep.subr.mxu0 0.0
    %1389 = vmatpush1.msra.mxu0 0.0
    %1390 = vmatprep.subr.mxu0 0.0
    %1391 = vmatpush1.msra.mxu0 0.0
    %1392 = vmatprep.subr.mxu0 0.0
    %1393 = vmatpush1.msra.mxu0 0.0
    %1394 = vmatprep.subr.mxu0 0.0
    %1395 = vmatpush1.msra.mxu0 0.0
    %1396 = vmatprep.subr.mxu0 0.0
    %1397 = vmatpush1.msra.mxu0 0.0
    %1398 = vmatprep.subr.mxu0 0.0
    %1399 = vmatpush1.msra.mxu0 0.0
    %1400 = vmatprep.subr.mxu0 0.0
    %1401 = vmatpush1.msra.mxu0 0.0
    %1402 = vmatprep.subr.mxu0 0.0
    %1403 = vmatpush1.msra.mxu0 0.0
    %1404 = vmatprep.subr.mxu0 0.0
    %1405 = vmatpush1.msra.mxu0 0.0
    %1406 = vmatprep.subr.mxu0 0.0
    %1407 = vmatpush1.msra.mxu0 0.0
    %1408 = vmatprep.subr.mxu0 0.0
    %1409 = vmatpush1.msra.mxu0 0.0
    %1410 = vmatprep.mubr.f32.mxu0 0.0
    %1411 = vmatmul.mubr.f32.gmra.mrb[0].mxu0 %v1341
    %v1412 = vpop.f32.mrb[0].mxu0
    %v1413 = vadd.f32 %v1338, %v1412
    %v1414 = vpop.f32.mrb[0].mxu0
    %1415 = vmatprep.mubr.f32.mxu0 0.0
    %1416 = vmatmul.mubr.f32.gmra.mrb[0].mxu0 %v1344
    %v1417 = vpop.f32.mrb[0].mxu0
    %v1418 = vadd.f32 %v1338, %v1417
    %v1419 = vpop.f32.mrb[0].mxu0
    %1420 = vdwg.mxu0
    %1422 = vrot.lane.b32.xlu0 %v1413, 96
    %v1423 = vpop.permute.xlu0 %1422
    %v1424 = vsel %vm257, %v1413, 0
    %v1426 = vsel %vm257, %v1423, 0
    %1428 = vmatprep.subr.mxu0 0.0
    %1429 = vmatpush1.xpose.msra.mxu0 %v1426
    %1430 = vmatprep.subr.mxu0 0.0
    %1431 = vmatpush1.xpose.msra.mxu0 0.0
    %1432 = vmatprep.subr.mxu0 0.0
    %1433 = vmatpush1.xpose.msra.mxu0 0.0
    %1434 = vmatprep.subr.mxu0 0.0
    %1435 = vmatpush1.xpose.msra.mxu0 0.0
    %1436 = vmatprep.subr.mxu0 0.0
    %1437 = vmatpush1.xpose.msra.mxu0 0.0
    %1438 = vmatprep.subr.mxu0 0.0
    %1439 = vmatpush1.xpose.msra.mxu0 0.0
    %1440 = vmatprep.subr.mxu0 0.0
    %1441 = vmatpush1.xpose.msra.mxu0 0.0
    %1442 = vmatprep.subr.mxu0 0.0
    %1443 = vmatpush1.xpose.msra.mxu0 0.0
    %1444 = vmatprep.subr.mxu0 0.0
    %1445 = vmatpush1.xpose.msra.mxu0 0.0
    %1446 = vmatprep.subr.mxu0 0.0
    %1447 = vmatpush1.xpose.msra.mxu0 0.0
    %1448 = vmatprep.subr.mxu0 0.0
    %1449 = vmatpush1.xpose.msra.mxu0 0.0
    %1450 = vmatprep.subr.mxu0 0.0
    %1451 = vmatpush1.xpose.msra.mxu0 0.0
    %1452 = vmatprep.subr.mxu0 0.0
    %1453 = vmatpush1.xpose.msra.mxu0 0.0
    %1454 = vmatprep.subr.mxu0 0.0
    %1455 = vmatpush1.xpose.msra.mxu0 0.0
    %1456 = vmatprep.subr.mxu0 0.0
    %1457 = vmatpush1.xpose.msra.mxu0 0.0
    %1458 = vmatprep.subr.mxu0 0.0
    %1459 = vmatpush1.xpose.msra.mxu0 0.0
    %1460 = vmatprep.subr.mxu0 0.0
    %1461 = vmatpush1.xpose.msra.mxu0 0.0
    %1462 = vmatprep.subr.mxu0 0.0
    %1463 = vmatpush1.xpose.msra.mxu0 0.0
    %1464 = vmatprep.subr.mxu0 0.0
    %1465 = vmatpush1.xpose.msra.mxu0 0.0
    %1466 = vmatprep.subr.mxu0 0.0
    %1467 = vmatpush1.xpose.msra.mxu0 0.0
    %1468 = vmatprep.subr.mxu0 0.0
    %1469 = vmatpush1.xpose.msra.mxu0 0.0
    %1470 = vmatprep.subr.mxu0 0.0
    %1471 = vmatpush1.xpose.msra.mxu0 0.0
    %1472 = vmatprep.subr.mxu0 0.0
    %1473 = vmatpush1.xpose.msra.mxu0 0.0
    %1474 = vmatprep.subr.mxu0 0.0
    %1475 = vmatpush1.xpose.msra.mxu0 0.0
    %1476 = vmatprep.subr.mxu0 0.0
    %1477 = vmatpush1.xpose.msra.mxu0 0.0
    %1478 = vmatprep.subr.mxu0 0.0
    %1479 = vmatpush1.xpose.msra.mxu0 0.0
    %1480 = vmatprep.subr.mxu0 0.0
    %1481 = vmatpush1.xpose.msra.mxu0 0.0
    %1482 = vmatprep.subr.mxu0 0.0
    %1483 = vmatpush1.xpose.msra.mxu0 0.0
    %1484 = vmatprep.subr.mxu0 0.0
    %1485 = vmatpush1.xpose.msra.mxu0 0.0
    %1486 = vmatprep.subr.mxu0 0.0
    %1487 = vmatpush1.xpose.msra.mxu0 0.0
    %1488 = vmatprep.subr.mxu0 0.0
    %1489 = vmatpush1.xpose.msra.mxu0 0.0
    %1490 = vmatprep.subr.mxu0 0.0
    %1491 = vmatpush1.xpose.msra.mxu0 0.0
    %1492 = vmatprep.mubr.f32.mxu0 0.0
    %1493 = vmatmul.mubr.f32.gmra.mrb[0].mxu0 %v1424
    %v1494 = vpop.f32.mrb[0].mxu0
    %v1495 = vadd.f32 %v155, %v1494
    %v1496 = vpop.f32.mrb[0].mxu0
    %1497 = vdwg.mxu0
    %1499 = vrot.lane.b32.xlu0 %v1418, 96
    %v1500 = vpop.permute.xlu0 %1499
    %v1501 = vsel %vm257, %v1418, 0
    %v1503 = vsel %vm257, %v1500, 0
    %1505 = vmatprep.subr.mxu0 0.0
    %1506 = vmatpush1.xpose.msra.mxu0 %v1503
    %1507 = vmatprep.subr.mxu0 0.0
    %1508 = vmatpush1.xpose.msra.mxu0 0.0
    %1509 = vmatprep.subr.mxu0 0.0
    %1510 = vmatpush1.xpose.msra.mxu0 0.0
    %1511 = vmatprep.subr.mxu0 0.0
    %1512 = vmatpush1.xpose.msra.mxu0 0.0
    %1513 = vmatprep.subr.mxu0 0.0
    %1514 = vmatpush1.xpose.msra.mxu0 0.0
    %1515 = vmatprep.subr.mxu0 0.0
    %1516 = vmatpush1.xpose.msra.mxu0 0.0
    %1517 = vmatprep.subr.mxu0 0.0
    %1518 = vmatpush1.xpose.msra.mxu0 0.0
    %1519 = vmatprep.subr.mxu0 0.0
    %1520 = vmatpush1.xpose.msra.mxu0 0.0
    %1521 = vmatprep.subr.mxu0 0.0
    %1522 = vmatpush1.xpose.msra.mxu0 0.0
    %1523 = vmatprep.subr.mxu0 0.0
    %1524 = vmatpush1.xpose.msra.mxu0 0.0
    %1525 = vmatprep.subr.mxu0 0.0
    %1526 = vmatpush1.xpose.msra.mxu0 0.0
    %1527 = vmatprep.subr.mxu0 0.0
    %1528 = vmatpush1.xpose.msra.mxu0 0.0
    %1529 = vmatprep.subr.mxu0 0.0
    %1530 = vmatpush1.xpose.msra.mxu0 0.0
    %1531 = vmatprep.subr.mxu0 0.0
    %1532 = vmatpush1.xpose.msra.mxu0 0.0
    %1533 = vmatprep.subr.mxu0 0.0
    %1534 = vmatpush1.xpose.msra.mxu0 0.0
    %1535 = vmatprep.subr.mxu0 0.0
    %1536 = vmatpush1.xpose.msra.mxu0 0.0
    %1537 = vmatprep.subr.mxu0 0.0
    %1538 = vmatpush1.xpose.msra.mxu0 0.0
    %1539 = vmatprep.subr.mxu0 0.0
    %1540 = vmatpush1.xpose.msra.mxu0 0.0
    %1541 = vmatprep.subr.mxu0 0.0
    %1542 = vmatpush1.xpose.msra.mxu0 0.0
    %1543 = vmatprep.subr.mxu0 0.0
    %1544 = vmatpush1.xpose.msra.mxu0 0.0
    %1545 = vmatprep.subr.mxu0 0.0
    %1546 = vmatpush1.xpose.msra.mxu0 0.0
    %1547 = vmatprep.subr.mxu0 0.0
    %1548 = vmatpush1.xpose.msra.mxu0 0.0
    %1549 = vmatprep.subr.mxu0 0.0
    %1550 = vmatpush1.xpose.msra.mxu0 0.0
    %1551 = vmatprep.subr.mxu0 0.0
    %1552 = vmatpush1.xpose.msra.mxu0 0.0
    %1553 = vmatprep.subr.mxu0 0.0
    %1554 = vmatpush1.xpose.msra.mxu0 0.0
    %1555 = vmatprep.subr.mxu0 0.0
    %1556 = vmatpush1.xpose.msra.mxu0 0.0
    %1557 = vmatprep.subr.mxu0 0.0
    %1558 = vmatpush1.xpose.msra.mxu0 0.0
    %1559 = vmatprep.subr.mxu0 0.0
    %1560 = vmatpush1.xpose.msra.mxu0 0.0
    %1561 = vmatprep.subr.mxu0 0.0
    %1562 = vmatpush1.xpose.msra.mxu0 0.0
    %1563 = vmatprep.subr.mxu0 0.0
    %1564 = vmatpush1.xpose.msra.mxu0 0.0
    %1565 = vmatprep.subr.mxu0 0.0
    %1566 = vmatpush1.xpose.msra.mxu0 0.0
    %1567 = vmatprep.subr.mxu0 0.0
    %1568 = vmatpush1.xpose.msra.mxu0 0.0
    %1569 = vmatprep.mubr.f32.mxu0 0.0
    %1570 = vmatmul.mubr.f32.gmra.mrb[0].mxu0 %v1501
    %v1571 = vpop.f32.mrb[0].mxu0
    %v1572 = vadd.f32 %v159, %v1571
    %v1573 = vpop.f32.mrb[0].mxu0
    %1574 = vdwg.mxu0
    %v1575 = vsel %vm409, %v1495, -inf
    %1576 = vmax.xlane.f32.xlu0 %v1575
    %v1577 = vpop.xlane.xlu0 %1576
    %v1578 = vsel %vm409, %v1572, -inf
    %1579 = vmax.xlane.f32.xlu0 %v1578
    %v1580 = vpop.xlane.xlu0 %1579
    %v1581 = vsub.f32 %v1495, %v1577
    %v1582 = vsub.f32 %v1572, %v1580
    %v1583 = vmul.f32 %v1581, 1.442695
    %v1584 = vpow.pop %v1583
    %v1585 = vmul.f32 %v1582, 1.442695
    %v1586 = vpow.pop %v1585
    %v1587 = vsel %vm409, %v1584, 0.0
    %1588 = vadd.xlane.f32.xlu0 %v1587
    %v1589 = vpop.xlane.xlu0 %1588
    %v1590 = vsel %vm409, %v1586, 0.0
    %1591 = vadd.xlane.f32.xlu0 %v1590
    %v1592 = vpop.xlane.xlu0 %1591
    %v1593 = vrcp.pop %v1589
    %v1594 = vrcp.pop %v1592
    %v1595 = vmul.f32 %v1584, %v1593
    %v1596 = vmul.f32 %v1586, %v1594
    %1597 = vrot.lane.b32.xlu0 %v1413, 64
    %v1598 = vpop.permute.xlu0 %1597
    %v1601 = vsel %vm409, %v1595, 0
    %1603 = vmatprep.subr.mxu0 0.0
    %1604 = vmatpush1.msra.mxu0 %v1598
    %1605 = vmatprep.subr.mxu0 0.0
    %1606 = vmatpush1.msra.mxu0 0.0
    %1607 = vmatprep.subr.mxu0 0.0
    %1608 = vmatpush1.msra.mxu0 0.0
    %1609 = vmatprep.subr.mxu0 0.0
    %1610 = vmatpush1.msra.mxu0 0.0
    %1611 = vmatprep.subr.mxu0 0.0
    %1612 = vmatpush1.msra.mxu0 0.0
    %1613 = vmatprep.subr.mxu0 0.0
    %1614 = vmatpush1.msra.mxu0 0.0
    %1615 = vmatprep.subr.mxu0 0.0
    %1616 = vmatpush1.msra.mxu0 0.0
    %1617 = vmatprep.subr.mxu0 0.0
    %1618 = vmatpush1.msra.mxu0 0.0
    %1619 = vmatprep.subr.mxu0 0.0
    %1620 = vmatpush1.msra.mxu0 0.0
    %1621 = vmatprep.subr.mxu0 0.0
    %1622 = vmatpush1.msra.mxu0 0.0
    %1623 = vmatprep.subr.mxu0 0.0
    %1624 = vmatpush1.msra.mxu0 0.0
    %1625 = vmatprep.subr.mxu0 0.0
    %1626 = vmatpush1.msra.mxu0 0.0
    %1627 = vmatprep.subr.mxu0 0.0
    %1628 = vmatpush1.msra.mxu0 0.0
    %1629 = vmatprep.subr.mxu0 0.0
    %1630 = vmatpush1.msra.mxu0 0.0
    %1631 = vmatprep.subr.mxu0 0.0
    %1632 = vmatpush1.msra.mxu0 0.0
    %1633 = vmatprep.subr.mxu0 0.0
    %1634 = vmatpush1.msra.mxu0 0.0
    %1635 = vmatprep.subr.mxu0 0.0
    %1636 = vmatpush1.msra.mxu0 0.0
    %1637 = vmatprep.subr.mxu0 0.0
    %1638 = vmatpush1.msra.mxu0 0.0
    %1639 = vmatprep.subr.mxu0 0.0
    %1640 = vmatpush1.msra.mxu0 0.0
    %1641 = vmatprep.subr.mxu0 0.0
    %1642 = vmatpush1.msra.mxu0 0.0
    %1643 = vmatprep.subr.mxu0 0.0
    %1644 = vmatpush1.msra.mxu0 0.0
    %1645 = vmatprep.subr.mxu0 0.0
    %1646 = vmatpush1.msra.mxu0 0.0
    %1647 = vmatprep.subr.mxu0 0.0
    %1648 = vmatpush1.msra.mxu0 0.0
    %1649 = vmatprep.subr.mxu0 0.0
    %1650 = vmatpush1.msra.mxu0 0.0
    %1651 = vmatprep.subr.mxu0 0.0
    %1652 = vmatpush1.msra.mxu0 0.0
    %1653 = vmatprep.subr.mxu0 0.0
    %1654 = vmatpush1.msra.mxu0 0.0
    %1655 = vmatprep.subr.mxu0 0.0
    %1656 = vmatpush1.msra.mxu0 0.0
    %1657 = vmatprep.subr.mxu0 0.0
    %1658 = vmatpush1.msra.mxu0 0.0
    %1659 = vmatprep.subr.mxu0 0.0
    %1660 = vmatpush1.msra.mxu0 0.0
    %1661 = vmatprep.subr.mxu0 0.0
    %1662 = vmatpush1.msra.mxu0 0.0
    %1663 = vmatprep.subr.mxu0 0.0
    %1664 = vmatpush1.msra.mxu0 0.0
    %1665 = vmatprep.subr.mxu0 0.0
    %1666 = vmatpush1.msra.mxu0 0.0
    %1667 = vmatprep.mubr.f32.mxu0 0.0
    %1668 = vmatmul.mubr.f32.gmra.mrb[0].mxu0 %v1601
    %v1669 = vpop.f32.mrb[0].mxu0
    %v1670 = vadd.f32 0.0, %v1669
    %v1671 = vpop.f32.mrb[0].mxu0
    %1672 = vdwg.mxu0
    %1673 = vrot.lane.b32.xlu0 %v1418, 64
    %v1674 = vpop.permute.xlu0 %1673
    %v1677 = vsel %vm409, %v1596, 0
    %1679 = vmatprep.subr.mxu0 0.0
    %1680 = vmatpush1.msra.mxu0 %v1674
    %1681 = vmatprep.subr.mxu0 0.0
    %1682 = vmatpush1.msra.mxu0 0.0
    %1683 = vmatprep.subr.mxu0 0.0
    %1684 = vmatpush1.msra.mxu0 0.0
    %1685 = vmatprep.subr.mxu0 0.0
    %1686 = vmatpush1.msra.mxu0 0.0
    %1687 = vmatprep.subr.mxu0 0.0
    %1688 = vmatpush1.msra.mxu0 0.0
    %1689 = vmatprep.subr.mxu0 0.0
    %1690 = vmatpush1.msra.mxu0 0.0
    %1691 = vmatprep.subr.mxu0 0.0
    %1692 = vmatpush1.msra.mxu0 0.0
    %1693 = vmatprep.subr.mxu0 0.0
    %1694 = vmatpush1.msra.mxu0 0.0
    %1695 = vmatprep.subr.mxu0 0.0
    %1696 = vmatpush1.msra.mxu0 0.0
    %1697 = vmatprep.subr.mxu0 0.0
    %1698 = vmatpush1.msra.mxu0 0.0
    %1699 = vmatprep.subr.mxu0 0.0
    %1700 = vmatpush1.msra.mxu0 0.0
    %1701 = vmatprep.subr.mxu0 0.0
    %1702 = vmatpush1.msra.mxu0 0.0
    %1703 = vmatprep.subr.mxu0 0.0
    %1704 = vmatpush1.msra.mxu0 0.0
    %1705 = vmatprep.subr.mxu0 0.0
    %1706 = vmatpush1.msra.mxu0 0.0
    %1707 = vmatprep.subr.mxu0 0.0
    %1708 = vmatpush1.msra.mxu0 0.0
    %1709 = vmatprep.subr.mxu0 0.0
    %1710 = vmatpush1.msra.mxu0 0.0
    %1711 = vmatprep.subr.mxu0 0.0
    %1712 = vmatpush1.msra.mxu0 0.0
    %1713 = vmatprep.subr.mxu0 0.0
    %1714 = vmatpush1.msra.mxu0 0.0
    %1715 = vmatprep.subr.mxu0 0.0
    %1716 = vmatpush1.msra.mxu0 0.0
    %1717 = vmatprep.subr.mxu0 0.0
    %1718 = vmatpush1.msra.mxu0 0.0
    %1719 = vmatprep.subr.mxu0 0.0
    %1720 = vmatpush1.msra.mxu0 0.0
    %1721 = vmatprep.subr.mxu0 0.0
    %1722 = vmatpush1.msra.mxu0 0.0
    %1723 = vmatprep.subr.mxu0 0.0
    %1724 = vmatpush1.msra.mxu0 0.0
    %1725 = vmatprep.subr.mxu0 0.0
    %1726 = vmatpush1.msra.mxu0 0.0
    %1727 = vmatprep.subr.mxu0 0.0
    %1728 = vmatpush1.msra.mxu0 0.0
    %1729 = vmatprep.subr.mxu0 0.0
    %1730 = vmatpush1.msra.mxu0 0.0
    %1731 = vmatprep.subr.mxu0 0.0
    %1732 = vmatpush1.msra.mxu0 0.0
    %1733 = vmatprep.subr.mxu0 0.0
    %1734 = vmatpush1.msra.mxu0 0.0
    %1735 = vmatprep.subr.mxu0 0.0
    %1736 = vmatpush1.msra.mxu0 0.0
    %1737 = vmatprep.subr.mxu0 0.0
    %1738 = vmatpush1.msra.mxu0 0.0
    %1739 = vmatprep.subr.mxu0 0.0
    %1740 = vmatpush1.msra.mxu0 0.0
    %1741 = vmatprep.subr.mxu0 0.0
    %1742 = vmatpush1.msra.mxu0 0.0
    %1743 = vmatprep.mubr.f32.mxu0 0.0
    %1744 = vmatmul.mubr.f32.gmra.mrb[0].mxu0 %v1677
    %v1745 = vpop.f32.mrb[0].mxu0
    %v1746 = vadd.f32 0.0, %v1745
    %v1747 = vpop.f32.mrb[0].mxu0
    %1748 = vdwg.mxu0
    %1749 = vrot.lane.b32.xlu0 %v1413, 112
    %v1750 = vpop.permute.xlu0 %1749
    %1751 = vrot.lane.b32.xlu0 %v1413, 80
    %v1752 = vpop.permute.xlu0 %1751
    %v1753 = vsel %vm257, %v1750, 0
    %v1755 = vsel %vm257, %v1752, 0
    %1757 = vmatprep.subr.mxu0 0.0
    %1758 = vmatpush1.xpose.msra.mxu0 %v1755
    %1759 = vmatprep.subr.mxu0 0.0
    %1760 = vmatpush1.xpose.msra.mxu0 0.0
    %1761 = vmatprep.subr.mxu0 0.0
    %1762 = vmatpush1.xpose.msra.mxu0 0.0
    %1763 = vmatprep.subr.mxu0 0.0
    %1764 = vmatpush1.xpose.msra.mxu0 0.0
    %1765 = vmatprep.subr.mxu0 0.0
    %1766 = vmatpush1.xpose.msra.mxu0 0.0
    %1767 = vmatprep.subr.mxu0 0.0
    %1768 = vmatpush1.xpose.msra.mxu0 0.0
    %1769 = vmatprep.subr.mxu0 0.0
    %1770 = vmatpush1.xpose.msra.mxu0 0.0
    %1771 = vmatprep.subr.mxu0 0.0
    %1772 = vmatpush1.xpose.msra.mxu0 0.0
    %1773 = vmatprep.subr.mxu0 0.0
    %1774 = vmatpush1.xpose.msra.mxu0 0.0
    %1775 = vmatprep.subr.mxu0 0.0
    %1776 = vmatpush1.xpose.msra.mxu0 0.0
    %1777 = vmatprep.subr.mxu0 0.0
    %1778 = vmatpush1.xpose.msra.mxu0 0.0
    %1779 = vmatprep.subr.mxu0 0.0
    %1780 = vmatpush1.xpose.msra.mxu0 0.0
    %1781 = vmatprep.subr.mxu0 0.0
    %1782 = vmatpush1.xpose.msra.mxu0 0.0
    %1783 = vmatprep.subr.mxu0 0.0
    %1784 = vmatpush1.xpose.msra.mxu0 0.0
    %1785 = vmatprep.subr.mxu0 0.0
    %1786 = vmatpush1.xpose.msra.mxu0 0.0
    %1787 = vmatprep.subr.mxu0 0.0
    %1788 = vmatpush1.xpose.msra.mxu0 0.0
    %1789 = vmatprep.subr.mxu0 0.0
    %1790 = vmatpush1.xpose.msra.mxu0 0.0
    %1791 = vmatprep.subr.mxu0 0.0
    %1792 = vmatpush1.xpose.msra.mxu0 0.0
    %1793 = vmatprep.subr.mxu0 0.0
    %1794 = vmatpush1.xpose.msra.mxu0 0.0
    %1795 = vmatprep.subr.mxu0 0.0
    %1796 = vmatpush1.xpose.msra.mxu0 0.0
    %1797 = vmatprep.subr.mxu0 0.0
    %1798 = vmatpush1.xpose.msra.mxu0 0.0
    %1799 = vmatprep.subr.mxu0 0.0
    %1800 = vmatpush1.xpose.msra.mxu0 0.0
    %1801 = vmatprep.subr.mxu0 0.0
    %1802 = vmatpush1.xpose.msra.mxu0 0.0
    %1803 = vmatprep.subr.mxu0 0.0
    %1804 = vmatpush1.xpose.msra.mxu0 0.0
    %1805 = vmatprep.subr.mxu0 0.0
    %1806 = vmatpush1.xpose.msra.mxu0 0.0
    %1807 = vmatprep.subr.mxu0 0.0
    %1808 = vmatpush1.xpose.msra.mxu0 0.0
    %1809 = vmatprep.subr.mxu0 0.0
    %1810 = vmatpush1.xpose.msra.mxu0 0.0
    %1811 = vmatprep.subr.mxu0 0.0
    %1812 = vmatpush1.xpose.msra.mxu0 0.0
    %1813 = vmatprep.subr.mxu0 0.0
    %1814 = vmatpush1.xpose.msra.mxu0 0.0
    %1815 = vmatprep.subr.mxu0 0.0
    %1816 = vmatpush1.xpose.msra.mxu0 0.0
    %1817 = vmatprep.subr.mxu0 0.0
    %1818 = vmatpush1.xpose.msra.mxu0 0.0
    %1819 = vmatprep.subr.mxu0 0.0
    %1820 = vmatpush1.xpose.msra.mxu0 0.0
    %1821 = vmatprep.mubr.f32.mxu0 0.0
    %1822 = vmatmul.mubr.f32.gmra.mrb[0].mxu0 %v1753
    %v1823 = vpop.f32.mrb[0].mxu0
    %v1824 = vadd.f32 %v155, %v1823
    %v1825 = vpop.f32.mrb[0].mxu0
    %1826 = vdwg.mxu0
    %1827 = vrot.lane.b32.xlu0 %v1418, 112
    %v1828 = vpop.permute.xlu0 %1827
    %1829 = vrot.lane.b32.xlu0 %v1418, 80
    %v1830 = vpop.permute.xlu0 %1829
    %v1831 = vsel %vm257, %v1828, 0
    %v1833 = vsel %vm257, %v1830, 0
    %1835 = vmatprep.subr.mxu0 0.0
    %1836 = vmatpush1.xpose.msra.mxu0 %v1833
    %1837 = vmatprep.subr.mxu0 0.0
    %1838 = vmatpush1.xpose.msra.mxu0 0.0
    %1839 = vmatprep.subr.mxu0 0.0
    %1840 = vmatpush1.xpose.msra.mxu0 0.0
    %1841 = vmatprep.subr.mxu0 0.0
    %1842 = vmatpush1.xpose.msra.mxu0 0.0
    %1843 = vmatprep.subr.mxu0 0.0
    %1844 = vmatpush1.xpose.msra.mxu0 0.0
    %1845 = vmatprep.subr.mxu0 0.0
    %1846 = vmatpush1.xpose.msra.mxu0 0.0
    %1847 = vmatprep.subr.mxu0 0.0
    %1848 = vmatpush1.xpose.msra.mxu0 0.0
    %1849 = vmatprep.subr.mxu0 0.0
    %1850 = vmatpush1.xpose.msra.mxu0 0.0
    %1851 = vmatprep.subr.mxu0 0.0
    %1852 = vmatpush1.xpose.msra.mxu0 0.0
    %1853 = vmatprep.subr.mxu0 0.0
    %1854 = vmatpush1.xpose.msra.mxu0 0.0
    %1855 = vmatprep.subr.mxu0 0.0
    %1856 = vmatpush1.xpose.msra.mxu0 0.0
    %1857 = vmatprep.subr.mxu0 0.0
    %1858 = vmatpush1.xpose.msra.mxu0 0.0
    %1859 = vmatprep.subr.mxu0 0.0
    %1860 = vmatpush1.xpose.msra.mxu0 0.0
    %1861 = vmatprep.subr.mxu0 0.0
    %1862 = vmatpush1.xpose.msra.mxu0 0.0
    %1863 = vmatprep.subr.mxu0 0.0
    %1864 = vmatpush1.xpose.msra.mxu0 0.0
    %1865 = vmatprep.subr.mxu0 0.0
    %1866 = vmatpush1.xpose.msra.mxu0 0.0
    %1867 = vmatprep.subr.mxu0 0.0
    %1868 = vmatpush1.xpose.msra.mxu0 0.0
    %1869 = vmatprep.subr.mxu0 0.0
    %1870 = vmatpush1.xpose.msra.mxu0 0.0
    %1871 = vmatprep.subr.mxu0 0.0
    %1872 = vmatpush1.xpose.msra.mxu0 0.0
    %1873 = vmatprep.subr.mxu0 0.0
    %1874 = vmatpush1.xpose.msra.mxu0 0.0
    %1875 = vmatprep.subr.mxu0 0.0
    %1876 = vmatpush1.xpose.msra.mxu0 0.0
    %1877 = vmatprep.subr.mxu0 0.0
    %1878 = vmatpush1.xpose.msra.mxu0 0.0
    %1879 = vmatprep.subr.mxu0 0.0
    %1880 = vmatpush1.xpose.msra.mxu0 0.0
    %1881 = vmatprep.subr.mxu0 0.0
    %1882 = vmatpush1.xpose.msra.mxu0 0.0
    %1883 = vmatprep.subr.mxu0 0.0
    %1884 = vmatpush1.xpose.msra.mxu0 0.0
    %1885 = vmatprep.subr.mxu0 0.0
    %1886 = vmatpush1.xpose.msra.mxu0 0.0
    %1887 = vmatprep.subr.mxu0 0.0
    %1888 = vmatpush1.xpose.msra.mxu0 0.0
    %1889 = vmatprep.subr.mxu0 0.0
    %1890 = vmatpush1.xpose.msra.mxu0 0.0
    %1891 = vmatprep.subr.mxu0 0.0
    %1892 = vmatpush1.xpose.msra.mxu0 0.0
    %1893 = vmatprep.subr.mxu0 0.0
    %1894 = vmatpush1.xpose.msra.mxu0 0.0
    %1895 = vmatprep.subr.mxu0 0.0
    %1896 = vmatpush1.xpose.msra.mxu0 0.0
    %1897 = vmatprep.subr.mxu0 0.0
    %1898 = vmatpush1.xpose.msra.mxu0 0.0
    %1899 = vmatprep.mubr.f32.mxu0 0.0
    %1900 = vmatmul.mubr.f32.gmra.mrb[0].mxu0 %v1831
    %v1901 = vpop.f32.mrb[0].mxu0
    %v1902 = vadd.f32 %v159, %v1901
    %v1903 = vpop.f32.mrb[0].mxu0
    %1904 = vdwg.mxu0
    %v1905 = vsel %vm409, %v1824, -inf
    %1906 = vmax.xlane.f32.xlu0 %v1905
    %v1907 = vpop.xlane.xlu0 %1906
    %v1908 = vsel %vm409, %v1902, -inf
    %1909 = vmax.xlane.f32.xlu0 %v1908
    %v1910 = vpop.xlane.xlu0 %1909
    %v1911 = vsub.f32 %v1824, %v1907
    %v1912 = vsub.f32 %v1902, %v1910
    %v1913 = vmul.f32 %v1911, 1.442695
    %v1914 = vpow.pop %v1913
    %v1915 = vmul.f32 %v1912, 1.442695
    %v1916 = vpow.pop %v1915
    %v1917 = vsel %vm409, %v1914, 0.0
    %1918 = vadd.xlane.f32.xlu0 %v1917
    %v1919 = vpop.xlane.xlu0 %1918
    %v1920 = vsel %vm409, %v1916, 0.0
    %1921 = vadd.xlane.f32.xlu0 %v1920
    %v1922 = vpop.xlane.xlu0 %1921
    %v1923 = vrcp.pop %v1919
    %v1924 = vrcp.pop %v1922
    %v1925 = vmul.f32 %v1914, %v1923
    %v1926 = vmul.f32 %v1916, %v1924
    %1927 = vrot.lane.b32.xlu0 %v1413, 48
    %v1928 = vpop.permute.xlu0 %1927
    %v1931 = vsel %vm409, %v1925, 0
    %1933 = vmatprep.subr.mxu0 0.0
    %1934 = vmatpush1.msra.mxu0 %v1928
    %1935 = vmatprep.subr.mxu0 0.0
    %1936 = vmatpush1.msra.mxu0 0.0
    %1937 = vmatprep.subr.mxu0 0.0
    %1938 = vmatpush1.msra.mxu0 0.0
    %1939 = vmatprep.subr.mxu0 0.0
    %1940 = vmatpush1.msra.mxu0 0.0
    %1941 = vmatprep.subr.mxu0 0.0
    %1942 = vmatpush1.msra.mxu0 0.0
    %1943 = vmatprep.subr.mxu0 0.0
    %1944 = vmatpush1.msra.mxu0 0.0
    %1945 = vmatprep.subr.mxu0 0.0
    %1946 = vmatpush1.msra.mxu0 0.0
    %1947 = vmatprep.subr.mxu0 0.0
    %1948 = vmatpush1.msra.mxu0 0.0
    %1949 = vmatprep.subr.mxu0 0.0
    %1950 = vmatpush1.msra.mxu0 0.0
    %1951 = vmatprep.subr.mxu0 0.0
    %1952 = vmatpush1.msra.mxu0 0.0
    %1953 = vmatprep.subr.mxu0 0.0
    %1954 = vmatpush1.msra.mxu0 0.0
    %1955 = vmatprep.subr.mxu0 0.0
    %1956 = vmatpush1.msra.mxu0 0.0
    %1957 = vmatprep.subr.mxu0 0.0
    %1958 = vmatpush1.msra.mxu0 0.0
    %1959 = vmatprep.subr.mxu0 0.0
    %1960 = vmatpush1.msra.mxu0 0.0
    %1961 = vmatprep.subr.mxu0 0.0
    %1962 = vmatpush1.msra.mxu0 0.0
    %1963 = vmatprep.subr.mxu0 0.0
    %1964 = vmatpush1.msra.mxu0 0.0
    %1965 = vmatprep.subr.mxu0 0.0
    %1966 = vmatpush1.msra.mxu0 0.0
    %1967 = vmatprep.subr.mxu0 0.0
    %1968 = vmatpush1.msra.mxu0 0.0
    %1969 = vmatprep.subr.mxu0 0.0
    %1970 = vmatpush1.msra.mxu0 0.0
    %1971 = vmatprep.subr.mxu0 0.0
    %1972 = vmatpush1.msra.mxu0 0.0
    %1973 = vmatprep.subr.mxu0 0.0
    %1974 = vmatpush1.msra.mxu0 0.0
    %1975 = vmatprep.subr.mxu0 0.0
    %1976 = vmatpush1.msra.mxu0 0.0
    %1977 = vmatprep.subr.mxu0 0.0
    %1978 = vmatpush1.msra.mxu0 0.0
    %1979 = vmatprep.subr.mxu0 0.0
    %1980 = vmatpush1.msra.mxu0 0.0
    %1981 = vmatprep.subr.mxu0 0.0
    %1982 = vmatpush1.msra.mxu0 0.0
    %1983 = vmatprep.subr.mxu0 0.0
    %1984 = vmatpush1.msra.mxu0 0.0
    %1985 = vmatprep.subr.mxu0 0.0
    %1986 = vmatpush1.msra.mxu0 0.0
    %1987 = vmatprep.subr.mxu0 0.0
    %1988 = vmatpush1.msra.mxu0 0.0
    %1989 = vmatprep.subr.mxu0 0.0
    %1990 = vmatpush1.msra.mxu0 0.0
    %1991 = vmatprep.subr.mxu0 0.0
    %1992 = vmatpush1.msra.mxu0 0.0
    %1993 = vmatprep.subr.mxu0 0.0
    %1994 = vmatpush1.msra.mxu0 0.0
    %1995 = vmatprep.subr.mxu0 0.0
    %1996 = vmatpush1.msra.mxu0 0.0
    %1997 = vmatprep.mubr.f32.mxu0 0.0
    %1998 = vmatmul.mubr.f32.gmra.mrb[0].mxu0 %v1931
    %v1999 = vpop.f32.mrb[0].mxu0
    %v2000 = vadd.f32 0.0, %v1999
    %v2001 = vpop.f32.mrb[0].mxu0
    %2002 = vdwg.mxu0
    %2003 = vrot.lane.b32.xlu0 %v1418, 48
    %v2004 = vpop.permute.xlu0 %2003
    %v2007 = vsel %vm409, %v1926, 0
    %2009 = vmatprep.subr.mxu0 0.0
    %2010 = vmatpush1.msra.mxu0 %v2004
    %2011 = vmatprep.subr.mxu0 0.0
    %2012 = vmatpush1.msra.mxu0 0.0
    %2013 = vmatprep.subr.mxu0 0.0
    %2014 = vmatpush1.msra.mxu0 0.0
    %2015 = vmatprep.subr.mxu0 0.0
    %2016 = vmatpush1.msra.mxu0 0.0
    %2017 = vmatprep.subr.mxu0 0.0
    %2018 = vmatpush1.msra.mxu0 0.0
    %2019 = vmatprep.subr.mxu0 0.0
    %2020 = vmatpush1.msra.mxu0 0.0
    %2021 = vmatprep.subr.mxu0 0.0
    %2022 = vmatpush1.msra.mxu0 0.0
    %2023 = vmatprep.subr.mxu0 0.0
    %2024 = vmatpush1.msra.mxu0 0.0
    %2025 = vmatprep.subr.mxu0 0.0
    %2026 = vmatpush1.msra.mxu0 0.0
    %2027 = vmatprep.subr.mxu0 0.0
    %2028 = vmatpush1.msra.mxu0 0.0
    %2029 = vmatprep.subr.mxu0 0.0
    %2030 = vmatpush1.msra.mxu0 0.0
    %2031 = vmatprep.subr.mxu0 0.0
    %2032 = vmatpush1.msra.mxu0 0.0
    %2033 = vmatprep.subr.mxu0 0.0
    %2034 = vmatpush1.msra.mxu0 0.0
    %2035 = vmatprep.subr.mxu0 0.0
    %2036 = vmatpush1.msra.mxu0 0.0
    %2037 = vmatprep.subr.mxu0 0.0
    %2038 = vmatpush1.msra.mxu0 0.0
    %2039 = vmatprep.subr.mxu0 0.0
    %2040 = vmatpush1.msra.mxu0 0.0
    %2041 = vmatprep.subr.mxu0 0.0
    %2042 = vmatpush1.msra.mxu0 0.0
    %2043 = vmatprep.subr.mxu0 0.0
    %2044 = vmatpush1.msra.mxu0 0.0
    %2045 = vmatprep.subr.mxu0 0.0
    %2046 = vmatpush1.msra.mxu0 0.0
    %2047 = vmatprep.subr.mxu0 0.0
    %2048 = vmatpush1.msra.mxu0 0.0
    %2049 = vmatprep.subr.mxu0 0.0
    %2050 = vmatpush1.msra.mxu0 0.0
    %2051 = vmatprep.subr.mxu0 0.0
    %2052 = vmatpush1.msra.mxu0 0.0
    %2053 = vmatprep.subr.mxu0 0.0
    %2054 = vmatpush1.msra.mxu0 0.0
    %2055 = vmatprep.subr.mxu0 0.0
    %2056 = vmatpush1.msra.mxu0 0.0
    %2057 = vmatprep.subr.mxu0 0.0
    %2058 = vmatpush1.msra.mxu0 0.0
    %2059 = vmatprep.subr.mxu0 0.0
    %2060 = vmatpush1.msra.mxu0 0.0
    %2061 = vmatprep.subr.mxu0 0.0
    %2062 = vmatpush1.msra.mxu0 0.0
    %2063 = vmatprep.subr.mxu0 0.0
    %2064 = vmatpush1.msra.mxu0 0.0
    %2065 = vmatprep.subr.mxu0 0.0
    %2066 = vmatpush1.msra.mxu0 0.0
    %2067 = vmatprep.subr.mxu0 0.0
    %2068 = vmatpush1.msra.mxu0 0.0
    %2069 = vmatprep.subr.mxu0 0.0
    %2070 = vmatpush1.msra.mxu0 0.0
    %2071 = vmatprep.subr.mxu0 0.0
    %2072 = vmatpush1.msra.mxu0 0.0
    %2073 = vmatprep.mubr.f32.mxu0 0.0
    %2074 = vmatmul.mubr.f32.gmra.mrb[0].mxu0 %v2007
    %v2075 = vpop.f32.mrb[0].mxu0
    %v2076 = vadd.f32 0.0, %v2075
    %v2077 = vpop.f32.mrb[0].mxu0
    %2078 = vdwg.mxu0
    %2081 = vrot.lane.b32.xlu0 %v2000, 16
    %v2082 = vpop.permute.xlu0 %2081
    %2083 = vrot.lane.b32.xlu0 %v2076, 16
    %v2084 = vpop.permute.xlu0 %2083
    %v2087 = vsel %vm257, %v1670, %v2082
    %v2088 = vsel %vm257, %v1746, %v2084
    %s2089 = scalar_lea.vmem %s6, 32
    %v2090 = vld [vmem:[%s2089] sm:$0xff]
    %v2091 = vld [vmem:[%s2089 + $0x8] sm:$0xff]
    %v2092 = vld [vmem:[%s2089 + $0x10] sm:$0xff]
    %v2093 = vld [vmem:[%s2089 + $0x18] sm:$0xff]
    %s2094 = scalar_lea.vmem %s7, 1
    %v2095 = vld [vmem:[%s2094] sm:$0x1]
    %v2097 = vlaneseq
    %v2098 = vshrl.u32 %v2097, 7
    %v2099 = vsub.s32 0, %v2098
    %v2100 = vrot.slane %v2095, %v2099
    %v2103 = vsel %vm78, %v2087, 0
    %v2106 = vsel %vm78, %v2088, 0
    %2108 = vmatprep.subr.mxu0 0.0
    %2109 = vmatpush1.msra.mxu0 %v2090
    %2110 = vmatprep.subr.mxu0 0.0
    %2111 = vmatpush1.msra.mxu0 %v2091
    %2112 = vmatprep.subr.mxu0 0.0
    %2113 = vmatpush1.msra.mxu0 %v2092
    %2114 = vmatprep.subr.mxu0 0.0
    %2115 = vmatpush1.msra.mxu0 %v2093
    %2116 = vmatprep.subr.mxu0 0.0
    %2117 = vmatpush1.msra.mxu0 0.0
    %2118 = vmatprep.subr.mxu0 0.0
    %2119 = vmatpush1.msra.mxu0 0.0
    %2120 = vmatprep.subr.mxu0 0.0
    %2121 = vmatpush1.msra.mxu0 0.0
    %2122 = vmatprep.subr.mxu0 0.0
    %2123 = vmatpush1.msra.mxu0 0.0
    %2124 = vmatprep.subr.mxu0 0.0
    %2125 = vmatpush1.msra.mxu0 0.0
    %2126 = vmatprep.subr.mxu0 0.0
    %2127 = vmatpush1.msra.mxu0 0.0
    %2128 = vmatprep.subr.mxu0 0.0
    %2129 = vmatpush1.msra.mxu0 0.0
    %2130 = vmatprep.subr.mxu0 0.0
    %2131 = vmatpush1.msra.mxu0 0.0
    %2132 = vmatprep.subr.mxu0 0.0
    %2133 = vmatpush1.msra.mxu0 0.0
    %2134 = vmatprep.subr.mxu0 0.0
    %2135 = vmatpush1.msra.mxu0 0.0
    %2136 = vmatprep.subr.mxu0 0.0
    %2137 = vmatpush1.msra.mxu0 0.0
    %2138 = vmatprep.subr.mxu0 0.0
    %2139 = vmatpush1.msra.mxu0 0.0
    %2140 = vmatprep.subr.mxu0 0.0
    %2141 = vmatpush1.msra.mxu0 0.0
    %2142 = vmatprep.subr.mxu0 0.0
    %2143 = vmatpush1.msra.mxu0 0.0
    %2144 = vmatprep.subr.mxu0 0.0
    %2145 = vmatpush1.msra.mxu0 0.0
    %2146 = vmatprep.subr.mxu0 0.0
    %2147 = vmatpush1.msra.mxu0 0.0
    %2148 = vmatprep.subr.mxu0 0.0
    %2149 = vmatpush1.msra.mxu0 0.0
    %2150 = vmatprep.subr.mxu0 0.0
    %2151 = vmatpush1.msra.mxu0 0.0
    %2152 = vmatprep.subr.mxu0 0.0
    %2153 = vmatpush1.msra.mxu0 0.0
    %2154 = vmatprep.subr.mxu0 0.0
    %2155 = vmatpush1.msra.mxu0 0.0
    %2156 = vmatprep.subr.mxu0 0.0
    %2157 = vmatpush1.msra.mxu0 0.0
    %2158 = vmatprep.subr.mxu0 0.0
    %2159 = vmatpush1.msra.mxu0 0.0
    %2160 = vmatprep.subr.mxu0 0.0
    %2161 = vmatpush1.msra.mxu0 0.0
    %2162 = vmatprep.subr.mxu0 0.0
    %2163 = vmatpush1.msra.mxu0 0.0
    %2164 = vmatprep.subr.mxu0 0.0
    %2165 = vmatpush1.msra.mxu0 0.0
    %2166 = vmatprep.subr.mxu0 0.0
    %2167 = vmatpush1.msra.mxu0 0.0
    %2168 = vmatprep.subr.mxu0 0.0
    %2169 = vmatpush1.msra.mxu0 0.0
    %2170 = vmatprep.subr.mxu0 0.0
    %2171 = vmatpush1.msra.mxu0 0.0
    %2172 = vmatprep.mubr.f32.mxu0 0.0
    %2173 = vmatmul.mubr.f32.gmra.mrb[0].mxu0 %v2103
    %v2174 = vpop.f32.mrb[0].mxu0
    %v2175 = vadd.f32 %v2100, %v2174
    %v2176 = vpop.f32.mrb[0].mxu0
    %2177 = vmatprep.mubr.f32.mxu0 0.0
    %2178 = vmatmul.mubr.f32.gmra.mrb[0].mxu0 %v2106
    %v2179 = vpop.f32.mrb[0].mxu0
    %v2180 = vadd.f32 %v2100, %v2179
    %v2181 = vpop.f32.mrb[0].mxu0
    %2182 = vdwg.mxu0
    %v2183 = vadd.f32 %v2175, %v1325
    %v2184 = vadd.f32 %v2180, %v1326
    %s2185 = scalar_lea.vmem %s8, 1
    %v2186 = vld [vmem:[%s2185] sm:$0x1]
    %s2187 = scalar_lea.vmem %s9, 1
    %v2188 = vld [vmem:[%s2187] sm:$0x1]
    %v2189 = vsel %vm78, %v2183, 0.0
    %2190 = vadd.xlane.f32.xlu0 %v2189
    %v2191 = vpop.xlane.xlu0 %2190
    %v2192 = vsel %vm78, %v2184, 0.0
    %2193 = vadd.xlane.f32.xlu0 %v2192
    %v2194 = vpop.xlane.xlu0 %2193
    %v2195 = vmul.f32 %v2191, %v85
    %v2196 = vmul.f32 %v2194, %v85
    %v2197 = vmul.f32 %v2183, %v2183
    %v2198 = vmul.f32 %v2184, %v2184
    %v2199 = vsel %vm78, %v2197, 0.0
    %2200 = vadd.xlane.f32.xlu0 %v2199
    %v2201 = vpop.xlane.xlu0 %2200
    %v2202 = vsel %vm78, %v2198, 0.0
    %2203 = vadd.xlane.f32.xlu0 %v2202
    %v2204 = vpop.xlane.xlu0 %2203
    %v2205 = vmul.f32 %v2201, %v85
    %v2206 = vmul.f32 %v2204, %v85
    %v2207 = vmul.f32 %v2195, %v2195
    %v2208 = vmul.f32 %v2196, %v2196
    %v2209 = vsub.f32 %v2205, %v2207
    %v2210 = vsub.f32 %v2206, %v2208
    %v2211 = vmax.f32 %v2209, 0.0
    %v2212 = vmax.f32 %v2210, 0.0
    %v2213 = vsub.f32 %v2183, %v2195
    %v2214 = vsub.f32 %v2184, %v2196
    %v2215 = vadd.f32 %v2211, 1e-12
    %v2216 = vadd.f32 %v2212, 1e-12
    %v2217 = vrsqrt.pop %v2215
    %v2218 = vrsqrt.pop %v2216
    %v2219 = vmul.f32 %v2213, %v2217
    %v2220 = vmul.f32 %v2214, %v2218
    %v2222 = vlaneseq
    %v2223 = vshrl.u32 %v2222, 7
    %v2224 = vsub.s32 0, %v2223
    %v2225 = vrot.slane %v2186, %v2224
    %v2227 = vmul.f32 %v2219, %v2225
    %v2228 = vmul.f32 %v2220, %v2225
    %v2230 = vlaneseq
    %v2231 = vshrl.u32 %v2230, 7
    %v2232 = vsub.s32 0, %v2231
    %v2233 = vrot.slane %v2188, %v2232
    %v2235 = vadd.f32 %v2227, %v2233
    %v2236 = vadd.f32 %v2228, %v2233
    %s2237 = scalar_lea.vmem %s10, 32
    %v2238 = vld [vmem:[%s2237] sm:$0xff]
    %v2239 = vld [vmem:[%s2237 + $0x8] sm:$0xff]
    %v2240 = vld [vmem:[%s2237 + $0x10] sm:$0xff]
    %v2241 = vld [vmem:[%s2237 + $0x18] sm:$0xff]
    %s2242 = scalar_lea.vmem %s11, 1
    %v2243 = vld [vmem:[%s2242] sm:$0x1]
    %v2245 = vlaneseq
    %v2246 = vshrl.u32 %v2245, 7
    %v2247 = vsub.s32 0, %v2246
    %v2248 = vrot.slane %v2243, %v2247
    %v2251 = vsel %vm78, %v2235, 0
    %v2254 = vsel %vm78, %v2236, 0
    %2256 = vmatprep.subr.mxu0 0.0
    %2257 = vmatpush1.msra.mxu0 %v2238
    %2258 = vmatprep.subr.mxu0 0.0
    %2259 = vmatpush1.msra.mxu0 %v2239
    %2260 = vmatprep.subr.mxu0 0.0
    %2261 = vmatpush1.msra.mxu0 %v2240
    %2262 = vmatprep.subr.mxu0 0.0
    %2263 = vmatpush1.msra.mxu0 %v2241
    %2264 = vmatprep.subr.mxu0 0.0
    %2265 = vmatpush1.msra.mxu0 0.0
    %2266 = vmatprep.subr.mxu0 0.0
    %2267 = vmatpush1.msra.mxu0 0.0
    %2268 = vmatprep.subr.mxu0 0.0
    %2269 = vmatpush1.msra.mxu0 0.0
    %2270 = vmatprep.subr.mxu0 0.0
    %2271 = vmatpush1.msra.mxu0 0.0
    %2272 = vmatprep.subr.mxu0 0.0
    %2273 = vmatpush1.msra.mxu0 0.0
    %2274 = vmatprep.subr.mxu0 0.0
    %2275 = vmatpush1.msra.mxu0 0.0
    %2276 = vmatprep.subr.mxu0 0.0
    %2277 = vmatpush1.msra.mxu0 0.0
    %2278 = vmatprep.subr.mxu0 0.0
    %2279 = vmatpush1.msra.mxu0 0.0
    %2280 = vmatprep.subr.mxu0 0.0
    %2281 = vmatpush1.msra.mxu0 0.0
    %2282 = vmatprep.subr.mxu0 0.0
    %2283 = vmatpush1.msra.mxu0 0.0
    %2284 = vmatprep.subr.mxu0 0.0
    %2285 = vmatpush1.msra.mxu0 0.0
    %2286 = vmatprep.subr.mxu0 0.0
    %2287 = vmatpush1.msra.mxu0 0.0
    %2288 = vmatprep.subr.mxu0 0.0
    %2289 = vmatpush1.msra.mxu0 0.0
    %2290 = vmatprep.subr.mxu0 0.0
    %2291 = vmatpush1.msra.mxu0 0.0
    %2292 = vmatprep.subr.mxu0 0.0
    %2293 = vmatpush1.msra.mxu0 0.0
    %2294 = vmatprep.subr.mxu0 0.0
    %2295 = vmatpush1.msra.mxu0 0.0
    %2296 = vmatprep.subr.mxu0 0.0
    %2297 = vmatpush1.msra.mxu0 0.0
    %2298 = vmatprep.subr.mxu0 0.0
    %2299 = vmatpush1.msra.mxu0 0.0
    %2300 = vmatprep.subr.mxu0 0.0
    %2301 = vmatpush1.msra.mxu0 0.0
    %2302 = vmatprep.subr.mxu0 0.0
    %2303 = vmatpush1.msra.mxu0 0.0
    %2304 = vmatprep.subr.mxu0 0.0
    %2305 = vmatpush1.msra.mxu0 0.0
    %2306 = vmatprep.subr.mxu0 0.0
    %2307 = vmatpush1.msra.mxu0 0.0
    %2308 = vmatprep.subr.mxu0 0.0
    %2309 = vmatpush1.msra.mxu0 0.0
    %2310 = vmatprep.subr.mxu0 0.0
    %2311 = vmatpush1.msra.mxu0 0.0
    %2312 = vmatprep.subr.mxu0 0.0
    %2313 = vmatpush1.msra.mxu0 0.0
    %2314 = vmatprep.subr.mxu0 0.0
    %2315 = vmatpush1.msra.mxu0 0.0
    %2316 = vmatprep.subr.mxu0 0.0
    %2317 = vmatpush1.msra.mxu0 0.0
    %2318 = vmatprep.subr.mxu0 0.0
    %2319 = vmatpush1.msra.mxu0 0.0
    %2320 = vmatprep.mubr.f32.mxu0 0.0
    %2321 = vmatmul.mubr.f32.gmra.mrb[0].mxu0 %v2251
    %v2322 = vpop.f32.mrb[0].mxu0
    %v2323 = vadd.f32 %v2248, %v2322
    %v2324 = vpop.f32.mrb[0].mxu0
    %2325 = vmatprep.mubr.f32.mxu0 0.0
    %2326 = vmatmul.mubr.f32.gmra.mrb[0].mxu0 %v2254
    %v2327 = vpop.f32.mrb[0].mxu0
    %v2328 = vadd.f32 %v2248, %v2327
    %v2329 = vpop.f32.mrb[0].mxu0
    %2330 = vdwg.mxu0
    %v2331 = vmul.f32 %v2323, %v2323
    %v2332 = vmul.f32 %v2328, %v2328
    %v2333 = vmul.f32 %v2323, %v2331
    %v2334 = vmul.f32 %v2328, %v2332
    %v2335 = vmul.f32 %v2333, 0.044715
    %v2336 = vmul.f32 %v2334, 0.044715
    %v2337 = vadd.f32 %v2323, %v2335
    %v2338 = vadd.f32 %v2328, %v2336
    %v2339 = vmul.f32 %v2337, 0.7978846
    %v2340 = vmul.f32 %v2338, 0.7978846
    %v2341 = vtanh.pop %v2339
    %v2342 = vtanh.pop %v2340
    %v2343 = vadd.f32 %v2341, 1.0
    %v2344 = vadd.f32 %v2342, 1.0
    %v2345 = vmul.f32 %v2343, 0.5
    %v2346 = vmul.f32 %v2344, 0.5
    %v2347 = vmul.f32 %v2323, %v2345
    %v2348 = vmul.f32 %v2328, %v2346
    %s2349 = scalar_lea.vmem %s12, 64
    %v2350 = vld [vmem:[%s2349] sm:$0xff]
    %v2351 = vld [vmem:[%s2349 + $0x8] sm:$0xff]
    %v2352 = vld [vmem:[%s2349 + $0x10] sm:$0xff]
    %v2353 = vld [vmem:[%s2349 + $0x18] sm:$0xff]
    %v2354 = vld [vmem:[%s2349 + $0x20] sm:$0xff]
    %v2355 = vld [vmem:[%s2349 + $0x28] sm:$0xff]
    %v2356 = vld [vmem:[%s2349 + $0x30] sm:$0xff]
    %v2357 = vld [vmem:[%s2349 + $0x38] sm:$0xff]
    %s2358 = scalar_lea.vmem %s13, 1
    %v2359 = vld [vmem:[%s2358] sm:$0x1]
    %v2361 = vlaneseq
    %v2362 = vshrl.u32 %v2361, 7
    %v2363 = vsub.s32 0, %v2362
    %v2364 = vrot.slane %v2359, %v2363
    %v2367 = vsel %vm1193, %v2347, 0
    %v2370 = vsel %vm1193, %v2348, 0
    %2372 = vmatprep.subr.mxu0 0.0
    %2373 = vmatpush1.msra.mxu0 %v2350
    %2374 = vmatprep.subr.mxu0 0.0
    %2375 = vmatpush1.msra.mxu0 %v2351
    %2376 = vmatprep.subr.mxu0 0.0
    %2377 = vmatpush1.msra.mxu0 %v2352
    %2378 = vmatprep.subr.mxu0 0.0
    %2379 = vmatpush1.msra.mxu0 %v2353
    %2380 = vmatprep.subr.mxu0 0.0
    %2381 = vmatpush1.msra.mxu0 %v2354
    %2382 = vmatprep.subr.mxu0 0.0
    %2383 = vmatpush1.msra.mxu0 %v2355
    %2384 = vmatprep.subr.mxu0 0.0
    %2385 = vmatpush1.msra.mxu0 %v2356
    %2386 = vmatprep.subr.mxu0 0.0
    %2387 = vmatpush1.msra.mxu0 %v2357
    %2388 = vmatprep.subr.mxu0 0.0
    %2389 = vmatpush1.msra.mxu0 0.0
    %2390 = vmatprep.subr.mxu0 0.0
    %2391 = vmatpush1.msra.mxu0 0.0
    %2392 = vmatprep.subr.mxu0 0.0
    %2393 = vmatpush1.msra.mxu0 0.0
    %2394 = vmatprep.subr.mxu0 0.0
    %2395 = vmatpush1.msra.mxu0 0.0
    %2396 = vmatprep.subr.mxu0 0.0
    %2397 = vmatpush1.msra.mxu0 0.0
    %2398 = vmatprep.subr.mxu0 0.0
    %2399 = vmatpush1.msra.mxu0 0.0
    %2400 = vmatprep.subr.mxu0 0.0
    %2401 = vmatpush1.msra.mxu0 0.0
    %2402 = vmatprep.subr.mxu0 0.0
    %2403 = vmatpush1.msra.mxu0 0.0
    %2404 = vmatprep.subr.mxu0 0.0
    %2405 = vmatpush1.msra.mxu0 0.0
    %2406 = vmatprep.subr.mxu0 0.0
    %2407 = vmatpush1.msra.mxu0 0.0
    %2408 = vmatprep.subr.mxu0 0.0
    %2409 = vmatpush1.msra.mxu0 0.0
    %2410 = vmatprep.subr.mxu0 0.0
    %2411 = vmatpush1.msra.mxu0 0.0
    %2412 = vmatprep.subr.mxu0 0.0
    %2413 = vmatpush1.msra.mxu0 0.0
    %2414 = vmatprep.subr.mxu0 0.0
    %2415 = vmatpush1.msra.mxu0 0.0
    %2416 = vmatprep.subr.mxu0 0.0
    %2417 = vmatpush1.msra.mxu0 0.0
    %2418 = vmatprep.subr.mxu0 0.0
    %2419 = vmatpush1.msra.mxu0 0.0
    %2420 = vmatprep.subr.mxu0 0.0
    %2421 = vmatpush1.msra.mxu0 0.0
    %2422 = vmatprep.subr.mxu0 0.0
    %2423 = vmatpush1.msra.mxu0 0.0
    %2424 = vmatprep.subr.mxu0 0.0
    %2425 = vmatpush1.msra.mxu0 0.0
    %2426 = vmatprep.subr.mxu0 0.0
    %2427 = vmatpush1.msra.mxu0 0.0
    %2428 = vmatprep.subr.mxu0 0.0
    %2429 = vmatpush1.msra.mxu0 0.0
    %2430 = vmatprep.subr.mxu0 0.0
    %2431 = vmatpush1.msra.mxu0 0.0
    %2432 = vmatprep.subr.mxu0 0.0
    %2433 = vmatpush1.msra.mxu0 0.0
    %2434 = vmatprep.subr.mxu0 0.0
    %2435 = vmatpush1.msra.mxu0 0.0
    %2436 = vmatprep.mubr.f32.mxu0 0.0
    %2437 = vmatmul.mubr.f32.gmra.mrb[0].mxu0 %v2367
    %v2438 = vpop.f32.mrb[0].mxu0
    %v2439 = vadd.f32 %v2364, %v2438
    %v2440 = vpop.f32.mrb[0].mxu0
    %2441 = vmatprep.mubr.f32.mxu0 0.0
    %2442 = vmatmul.mubr.f32.gmra.mrb[0].mxu0 %v2370
    %v2443 = vpop.f32.mrb[0].mxu0
    %v2444 = vadd.f32 %v2364, %v2443
    %v2445 = vpop.f32.mrb[0].mxu0
    %2446 = vdwg.mxu0
    %v2447 = vadd.f32 %v2439, %v2235
    %v2448 = vadd.f32 %v2444, %v2236
    %s2449 = scalar_lea.vmem %s14, 1
    %v2450 = vld [vmem:[%s2449] sm:$0x1]
    %s2451 = scalar_lea.vmem %s15, 1
    %v2452 = vld [vmem:[%s2451] sm:$0x1]
    %v2453 = vsel %vm78, %v2447, 0.0
    %2454 = vadd.xlane.f32.xlu0 %v2453
    %v2455 = vpop.xlane.xlu0 %2454
    %v2456 = vsel %vm78, %v2448, 0.0
    %2457 = vadd.xlane.f32.xlu0 %v2456
    %v2458 = vpop.xlane.xlu0 %2457
    %v2459 = vmul.f32 %v2455, %v85
    %v2460 = vmul.f32 %v2458, %v85
    %v2461 = vmul.f32 %v2447, %v2447
    %v2462 = vmul.f32 %v2448, %v2448
    %v2463 = vsel %vm78, %v2461, 0.0
    %2464 = vadd.xlane.f32.xlu0 %v2463
    %v2465 = vpop.xlane.xlu0 %2464
    %v2466 = vsel %vm78, %v2462, 0.0
    %2467 = vadd.xlane.f32.xlu0 %v2466
    %v2468 = vpop.xlane.xlu0 %2467
    %v2469 = vmul.f32 %v2465, %v85
    %v2470 = vmul.f32 %v2468, %v85
    %v2471 = vmul.f32 %v2459, %v2459
    %v2472 = vmul.f32 %v2460, %v2460
    %v2473 = vsub.f32 %v2469, %v2471
    %v2474 = vsub.f32 %v2470, %v2472
    %v2475 = vmax.f32 %v2473, 0.0
    %v2476 = vmax.f32 %v2474, 0.0
    %v2477 = vsub.f32 %v2447, %v2459
    %v2478 = vsub.f32 %v2448, %v2460
    %v2479 = vadd.f32 %v2475, 1e-12
    %v2480 = vadd.f32 %v2476, 1e-12
    %v2481 = vrsqrt.pop %v2479
    %v2482 = vrsqrt.pop %v2480
    %v2483 = vmul.f32 %v2477, %v2481
    %v2484 = vmul.f32 %v2478, %v2482
    %v2486 = vlaneseq
    %v2487 = vshrl.u32 %v2486, 7
    %v2488 = vsub.s32 0, %v2487
    %v2489 = vrot.slane %v2450, %v2488
    %v2491 = vmul.f32 %v2483, %v2489
    %v2492 = vmul.f32 %v2484, %v2489
    %v2494 = vlaneseq
    %v2495 = vshrl.u32 %v2494, 7
    %v2496 = vsub.s32 0, %v2495
    %v2497 = vrot.slane %v2452, %v2496
    %v2499 = vadd.f32 %v2491, %v2497
    %v2500 = vadd.f32 %v2492, %v2497
    %v2501 = vld [vmem:[%s16] sm:$0xff]
    %v2502 = vld [vmem:[%s16 + $0x8] sm:$0xff]
    %v2503 = vld [vmem:[%s16 + $0x10] sm:$0xff]
    %v2504 = vld [vmem:[%s16 + $0x18] sm:$0xff]
    %v2505 = vld [vmem:[%s17] sm:$0x1]
    %v2507 = vlaneseq
    %v2508 = vshrl.u32 %v2507, 7
    %v2509 = vsub.s32 0, %v2508
    %v2510 = vrot.slane %v2505, %v2509
    %v2514 = vrot.slane %v2500, 7
    %vm2515 = vcmask 1041409
    %v2516 = vsel %vm2515, %v2514, %v2499
    %v2517 = vsel %vm78, %v2516, 0
    %2519 = vmatprep.subr.mxu0 0.0
    %2520 = vmatpush1.msra.mxu0 %v2501
    %2521 = vmatprep.subr.mxu0 0.0
    %2522 = vmatpush1.msra.mxu0 %v2502
    %2523 = vmatprep.subr.mxu0 0.0
    %2524 = vmatpush1.msra.mxu0 %v2503
    %2525 = vmatprep.subr.mxu0 0.0
    %2526 = vmatpush1.msra.mxu0 %v2504
    %2527 = vmatprep.subr.mxu0 0.0
    %2528 = vmatpush1.msra.mxu0 0.0
    %2529 = vmatprep.subr.mxu0 0.0
    %2530 = vmatpush1.msra.mxu0 0.0
    %2531 = vmatprep.subr.mxu0 0.0
    %2532 = vmatpush1.msra.mxu0 0.0
    %2533 = vmatprep.subr.mxu0 0.0
    %2534 = vmatpush1.msra.mxu0 0.0
    %2535 = vmatprep.subr.mxu0 0.0
    %2536 = vmatpush1.msra.mxu0 0.0
    %2537 = vmatprep.subr.mxu0 0.0
    %2538 = vmatpush1.msra.mxu0 0.0
    %2539 = vmatprep.subr.mxu0 0.0
    %2540 = vmatpush1.msra.mxu0 0.0
    %2541 = vmatprep.subr.mxu0 0.0
    %2542 = vmatpush1.msra.mxu0 0.0
    %2543 = vmatprep.subr.mxu0 0.0
    %2544 = vmatpush1.msra.mxu0 0.0
    %2545 = vmatprep.subr.mxu0 0.0
    %2546 = vmatpush1.msra.mxu0 0.0
    %2547 = vmatprep.subr.mxu0 0.0
    %2548 = vmatpush1.msra.mxu0 0.0
    %2549 = vmatprep.subr.mxu0 0.0
    %2550 = vmatpush1.msra.mxu0 0.0
    %2551 = vmatprep.subr.mxu0 0.0
    %2552 = vmatpush1.msra.mxu0 0.0
    %2553 = vmatprep.subr.mxu0 0.0
    %2554 = vmatpush1.msra.mxu0 0.0
    %2555 = vmatprep.subr.mxu0 0.0
    %2556 = vmatpush1.msra.mxu0 0.0
    %2557 = vmatprep.subr.mxu0 0.0
    %2558 = vmatpush1.msra.mxu0 0.0
    %2559 = vmatprep.subr.mxu0 0.0
    %2560 = vmatpush1.msra.mxu0 0.0
    %2561 = vmatprep.subr.mxu0 0.0
    %2562 = vmatpush1.msra.mxu0 0.0
    %2563 = vmatprep.subr.mxu0 0.0
    %2564 = vmatpush1.msra.mxu0 0.0
    %2565 = vmatprep.subr.mxu0 0.0
    %2566 = vmatpush1.msra.mxu0 0.0
    %2567 = vmatprep.subr.mxu0 0.0
    %2568 = vmatpush1.msra.mxu0 0.0
    %2569 = vmatprep.subr.mxu0 0.0
    %2570 = vmatpush1.msra.mxu0 0.0
    %2571 = vmatprep.subr.mxu0 0.0
    %2572 = vmatpush1.msra.mxu0 0.0
    %2573 = vmatprep.subr.mxu0 0.0
    %2574 = vmatpush1.msra.mxu0 0.0
    %2575 = vmatprep.subr.mxu0 0.0
    %2576 = vmatpush1.msra.mxu0 0.0
    %2577 = vmatprep.subr.mxu0 0.0
    %2578 = vmatpush1.msra.mxu0 0.0
    %2579 = vmatprep.subr.mxu0 0.0
    %2580 = vmatpush1.msra.mxu0 0.0
    %2581 = vmatprep.subr.mxu0 0.0
    %2582 = vmatpush1.msra.mxu0 0.0
    %2583 = vmatprep.mubr.f32.mxu0 0.0
    %2584 = vmatmul.mubr.f32.gmra.mrb[0].mxu0 %v2517
    %v2585 = vpop.f32.mrb[0].mxu0
    %v2586 = vadd.f32 %v2510, %v2585
    %v2587 = vpop.f32.mrb[0].mxu0
    %2588 = vdwg.mxu0
    %v2589 = vtanh.pop %v2586
    %v2590 = vld [vmem:[%s18] sm:$0xff]
    %v2591 = vld [vmem:[%s18 + $0x8] sm:$0xff]
    %v2592 = vld [vmem:[%s18 + $0x10] sm:$0xff]
    %v2593 = vld [vmem:[%s18 + $0x18] sm:$0xff]
    %v2594 = vld [vmem:[%s19] sm:$0x1]
    %v2596 = vlaneseq
    %v2597 = vshrl.u32 %v2596, 7
    %v2598 = vsub.s32 0, %v2597
    %v2599 = vrot.slane %v2594, %v2598
    %v2602 = vsel %vm78, %v2589, 0
    %2604 = vmatprep.subr.mxu0 0.0
    %2605 = vmatpush1.msra.mxu0 %v2590
    %2606 = vmatprep.subr.mxu0 0.0
    %2607 = vmatpush1.msra.mxu0 %v2591
    %2608 = vmatprep.subr.mxu0 0.0
    %2609 = vmatpush1.msra.mxu0 %v2592
    %2610 = vmatprep.subr.mxu0 0.0
    %2611 = vmatpush1.msra.mxu0 %v2593
    %2612 = vmatprep.subr.mxu0 0.0
    %2613 = vmatpush1.msra.mxu0 0.0
    %2614 = vmatprep.subr.mxu0 0.0
    %2615 = vmatpush1.msra.mxu0 0.0
    %2616 = vmatprep.subr.mxu0 0.0
    %2617 = vmatpush1.msra.mxu0 0.0
    %2618 = vmatprep.subr.mxu0 0.0
    %2619 = vmatpush1.msra.mxu0 0.0
    %2620 = vmatprep.subr.mxu0 0.0
    %2621 = vmatpush1.msra.mxu0 0.0
    %2622 = vmatprep.subr.mxu0 0.0
    %2623 = vmatpush1.msra.mxu0 0.0
    %2624 = vmatprep.subr.mxu0 0.0
    %2625 = vmatpush1.msra.mxu0 0.0
    %2626 = vmatprep.subr.mxu0 0.0
    %2627 = vmatpush1.msra.mxu0 0.0
    %2628 = vmatprep.subr.mxu0 0.0
    %2629 = vmatpush1.msra.mxu0 0.0
    %2630 = vmatprep.subr.mxu0 0.0
    %2631 = vmatpush1.msra.mxu0 0.0
    %2632 = vmatprep.subr.mxu0 0.0
    %2633 = vmatpush1.msra.mxu0 0.0
    %2634 = vmatprep.subr.mxu0 0.0
    %2635 = vmatpush1.msra.mxu0 0.0
    %2636 = vmatprep.subr.mxu0 0.0
    %2637 = vmatpush1.msra.mxu0 0.0
    %2638 = vmatprep.subr.mxu0 0.0
    %2639 = vmatpush1.msra.mxu0 0.0
    %2640 = vmatprep.subr.mxu0 0.0
    %2641 = vmatpush1.msra.mxu0 0.0
    %2642 = vmatprep.subr.mxu0 0.0
    %2643 = vmatpush1.msra.mxu0 0.0
    %2644 = vmatprep.subr.mxu0 0.0
    %2645 = vmatpush1.msra.mxu0 0.0
    %2646 = vmatprep.subr.mxu0 0.0
    %2647 = vmatpush1.msra.mxu0 0.0
    %2648 = vmatprep.subr.mxu0 0.0
    %2649 = vmatpush1.msra.mxu0 0.0
    %2650 = vmatprep.subr.mxu0 0.0
    %2651 = vmatpush1.msra.mxu0 0.0
    %2652 = vmatprep.subr.mxu0 0.0
    %2653 = vmatpush1.msra.mxu0 0.0
    %2654 = vmatprep.subr.mxu0 0.0
    %2655 = vmatpush1.msra.mxu0 0.0
    %2656 = vmatprep.subr.mxu0 0.0
    %2657 = vmatpush1.msra.mxu0 0.0
    %2658 = vmatprep.subr.mxu0 0.0
    %2659 = vmatpush1.msra.mxu0 0.0
    %2660 = vmatprep.subr.mxu0 0.0
    %2661 = vmatpush1.msra.mxu0 0.0
    %2662 = vmatprep.subr.mxu0 0.0
    %2663 = vmatpush1.msra.mxu0 0.0
    %2664 = vmatprep.subr.mxu0 0.0
    %2665 = vmatpush1.msra.mxu0 0.0
    %2666 = vmatprep.subr.mxu0 0.0
    %2667 = vmatpush1.msra.mxu0 0.0
    %2668 = vmatprep.mubr.f32.mxu0 0.0
    %2669 = vmatmul.mubr.f32.gmra.mrb[0].mxu0 %v2602
    %v2670 = vpop.f32.mrb[0].mxu0
    %v2671 = vadd.f32 %v2599, %v2670
    %v2672 = vpop.f32.mrb[0].mxu0
    %2673 = vdwg.mxu0
    %2674 = vst [vmem:[#allocation2] sm:$0x3] %v2671
    %v2675 = vld [vmem:[%s20] sm:$0xff]
    %v2676 = vld [vmem:[%s20 + $0x8] sm:$0xff]
    %v2677 = vld [vmem:[%s20 + $0x10] sm:$0xff]
    %v2678 = vld [vmem:[%s20 + $0x18] sm:$0xff]
    %v2679 = vld [vmem:[%s21] sm:$0x1]
    %v2681 = vlaneseq
    %v2682 = vshrl.u32 %v2681, 7
    %v2683 = vsub.s32 0, %v2682
    %v2684 = vrot.slane %v2679, %v2683
    %v2686 = vsel %vm78, %v2499, 0
    %v2688 = vsel %vm78, %v2500, 0
    %2690 = vmatprep.subr.mxu0 0.0
    %2691 = vmatpush1.msra.mxu0 %v2675
    %2692 = vmatprep.subr.mxu0 0.0
    %2693 = vmatpush1.msra.mxu0 %v2676
    %2694 = vmatprep.subr.mxu0 0.0
    %2695 = vmatpush1.msra.mxu0 %v2677
    %2696 = vmatprep.subr.mxu0 0.0
    %2697 = vmatpush1.msra.mxu0 %v2678
    %2698 = vmatprep.subr.mxu0 0.0
    %2699 = vmatpush1.msra.mxu0 0.0
    %2700 = vmatprep.subr.mxu0 0.0
    %2701 = vmatpush1.msra.mxu0 0.0
    %2702 = vmatprep.subr.mxu0 0.0
    %2703 = vmatpush1.msra.mxu0 0.0
    %2704 = vmatprep.subr.mxu0 0.0
    %2705 = vmatpush1.msra.mxu0 0.0
    %2706 = vmatprep.subr.mxu0 0.0
    %2707 = vmatpush1.msra.mxu0 0.0
    %2708 = vmatprep.subr.mxu0 0.0
    %2709 = vmatpush1.msra.mxu0 0.0
    %2710 = vmatprep.subr.mxu0 0.0
    %2711 = vmatpush1.msra.mxu0 0.0
    %2712 = vmatprep.subr.mxu0 0.0
    %2713 = vmatpush1.msra.mxu0 0.0
    %2714 = vmatprep.subr.mxu0 0.0
    %2715 = vmatpush1.msra.mxu0 0.0
    %2716 = vmatprep.subr.mxu0 0.0
    %2717 = vmatpush1.msra.mxu0 0.0
    %2718 = vmatprep.subr.mxu0 0.0
    %2719 = vmatpush1.msra.mxu0 0.0
    %2720 = vmatprep.subr.mxu0 0.0
    %2721 = vmatpush1.msra.mxu0 0.0
    %2722 = vmatprep.subr.mxu0 0.0
    %2723 = vmatpush1.msra.mxu0 0.0
    %2724 = vmatprep.subr.mxu0 0.0
    %2725 = vmatpush1.msra.mxu0 0.0
    %2726 = vmatprep.subr.mxu0 0.0
    %2727 = vmatpush1.msra.mxu0 0.0
    %2728 = vmatprep.subr.mxu0 0.0
    %2729 = vmatpush1.msra.mxu0 0.0
    %2730 = vmatprep.subr.mxu0 0.0
    %2731 = vmatpush1.msra.mxu0 0.0
    %2732 = vmatprep.subr.mxu0 0.0
    %2733 = vmatpush1.msra.mxu0 0.0
    %2734 = vmatprep.subr.mxu0 0.0
    %2735 = vmatpush1.msra.mxu0 0.0
    %2736 = vmatprep.subr.mxu0 0.0
    %2737 = vmatpush1.msra.mxu0 0.0
    %2738 = vmatprep.subr.mxu0 0.0
    %2739 = vmatpush1.msra.mxu0 0.0
    %2740 = vmatprep.subr.mxu0 0.0
    %2741 = vmatpush1.msra.mxu0 0.0
    %2742 = vmatprep.subr.mxu0 0.0
    %2743 = vmatpush1.msra.mxu0 0.0
    %2744 = vmatprep.subr.mxu0 0.0
    %2745 = vmatpush1.msra.mxu0 0.0
    %2746 = vmatprep.subr.mxu0 0.0
    %2747 = vmatpush1.msra.mxu0 0.0
    %2748 = vmatprep.subr.mxu0 0.0
    %2749 = vmatpush1.msra.mxu0 0.0
    %2750 = vmatprep.subr.mxu0 0.0
    %2751 = vmatpush1.msra.mxu0 0.0
    %2752 = vmatprep.subr.mxu0 0.0
    %2753 = vmatpush1.msra.mxu0 0.0
    %2754 = vmatprep.mubr.f32.mxu0 0.0
    %2755 = vmatmul.mubr.f32.gmra.mrb[0].mxu0 %v2686
    %v2756 = vpop.f32.mrb[0].mxu0
    %v2757 = vadd.f32 %v2684, %v2756
    %v2758 = vpop.f32.mrb[0].mxu0
    %2759 = vmatprep.mubr.f32.mxu0 0.0
    %2760 = vmatmul.mubr.f32.gmra.mrb[0].mxu0 %v2688
    %v2761 = vpop.f32.mrb[0].mxu0
    %v2762 = vadd.f32 %v2684, %v2761
    %v2763 = vpop.f32.mrb[0].mxu0
    %2764 = vdwg.mxu0
    %2765 = vst [vmem:[%s23] sm:$0xff] %v2757
    %2766 = vst [vmem:[%s23 + $0x8] sm:$0xff] %v2762
    // Predicated region
    $region90: #{bert_forward.1} parent=1 // pred_check
      _
    $region91: #{bert_forward.1} parent=1 // pred_check_branch
      %2768 = sbr.rel (0) target = $region93
    $region92: #{bert_forward.1} parent=1 // pred_region
      %s2770 = ssub.s32 32, 32
      %2771 = vsyncadd [#allocation3], %s2770
      %s2773 = sshll.u32 [#allocation2], 4
      %s2774 = int_to_ptr.vmem [resolvable:$true] %s2773
      %2776 = dma.vmem_to_hbm [thread:$0]  %s2774, 32, %s22, [#allocation3]
    $region93: #{bert_forward.1} parent=1 // pred_fallthru
      _
    // Predicated region
    $region94: #{bert_forward.1} parent=1 // pred_check
      _
    $region95: #{bert_forward.1} parent=1 // pred_check_branch
      %2778 = sbr.rel (0) target = $region97
    $region96: #{bert_forward.1} parent=1 // pred_region
      _
    $region97: #{bert_forward.1} parent=1 // pred_fallthru
      _
    // Predicated region
    $region98: #{bert_forward.1} parent=1 // pred_check
      _
    $region99: #{bert_forward.1} parent=1 // pred_check_branch
      %2780 = sbr.rel (0) target = $region101
    $region100: #{bert_forward.1} parent=1 // pred_region
      %2781 = dma.done [#allocation3], 32
    $region101: #{bert_forward.1} parent=1 // pred_fallthru
      _
    // Predicated region
    $region102: #{bert_forward.1} parent=1 // pred_check
      _
    $region103: #{bert_forward.1} parent=1 // pred_check_branch
      %2783 = sbr.rel (0) target = $region105
    $region104: #{bert_forward.1} parent=1 // pred_region
      _
    $region105: #{bert_forward.1} parent=1 // pred_fallthru
      _
    %2784 = vsyncpa [#allocation3], 1

</llo_original>
